<compile_context>
chip_gen: v5e
topology: v5e:2x2
jax: 0.10.0
libtpu: 0.0.40
codegen_flags: <defaults>
</compile_context>

<pallas_src>
import functools

import jax
import jax.numpy as jnp
import numpy as np
from jax import lax
from jax.experimental import pallas as pl
from jax.experimental.pallas import tpu as pltpu


# ----------------------------------------------------------------------------
# Fused Pallas kernel
# ----------------------------------------------------------------------------
def _pick_row_tile(hout, max_rows=8):
  """Largest divisor of `hout` that is <= max_rows (output-row tile height)."""
  for th in range(min(hout, max_rows), 0, -1):
    if hout % th == 0:
      return th
  return 1


def _fused_inverted_residual_kernel(*refs, stride, TH, H, W, Wp, Wout,
                                    has_conv_sc):
  """One grid step = (batch n, row-tile j): produces TH output rows."""
  if has_conv_sc:
    (x_ref, we_ref, s1_ref, b1_ref, wdw_ref, s2_ref, b2_ref,
     wp_ref, s3_ref, b3_ref, ws_ref, ssc_ref, bsc_ref,
     o_ref, h1_scr, xs_scr) = refs
  else:
    (x_ref, we_ref, s1_ref, b1_ref, wdw_ref, s2_ref, b2_ref,
     wp_ref, s3_ref, b3_ref, o_ref, h1_scr, xs_scr) = refs

  j = pl.program_id(1)
  p0 = j * (TH * stride)              # first padded-input row this tile needs
  TR = stride * (TH - 1) + 3          # padded rows needed (incl. 3x3 halo)
  Cexp = wdw_ref.shape[1]

  # Columns 0 and W+1 of the padded width (and alignment-pad columns >= W+2)
  # are conv zero-padding; the expand conv there would give relu(bias) != 0,
  # so mask them back to zero to reproduce zero padding of the expanded
  # activation. (Holds for both the plain and the [even|odd] rearranged width.)
  col_ids = lax.broadcasted_iota(jnp.int32, (Wp, 1), 0)
  col_valid = jnp.logical_and(col_ids >= 1, col_ids <= W)

  we = we_ref[...]
  s1 = s1_ref[...]
  b1 = b1_ref[...]

  # ---- stage 1: 1x1 expand + BN + ReLU into VMEM scratch (row by row) ----
  for r in range(TR):
    p = p0 + r                        # global padded-row index (dynamic)
    xrow = x_ref[p]                   # (Wp, Cin)
    xs_scr[r] = xrow                  # keep raw rows around for the shortcut
    h = jnp.dot(xrow, we, preferred_element_type=jnp.float32)
    h = jnp.maximum(h * s1 + b1, 0.0)
    row_valid = jnp.logical_and(p >= 1, p <= H)
    h1_scr[r] = jnp.where(jnp.logical_and(col_valid, row_valid), h, 0.0)

  # Column offset of each depthwise tap / of the shortcut inside the padded
  # (and, for stride 2, even|odd rearranged) width axis.
  if stride == 1:
    tap_off = (0, 1, 2)
    sc_off = 1
  else:  # stride == 2: wrapper stored columns as [even | odd | align pad]
    tap_off = (0, Wout + 1, 1)
    sc_off = Wout + 1

  s2 = s2_ref[...]
  b2 = b2_ref[...]
  wpj = wp_ref[...]
  s3 = s3_ref[...]
  b3 = b3_ref[...]
  if has_conv_sc:
    ws = ws_ref[...]
    ssc = ssc_ref[...]
    bsc = bsc_ref[...]

  # ---- stage 2: depthwise 3x3 + BN + ReLU, 1x1 project + BN,
  #               shortcut, residual add, final ReLU, store ----
  for t in range(TH):
    acc = jnp.zeros((Wout, Cexp), jnp.float32)
    for kh in range(3):
      r = stride * t + kh
      for kw in range(3):
        o = tap_off[kw]
        acc = acc + h1_scr[r, o:o + Wout, :] * wdw_ref[3 * kh + kw, :]
    h2 = jnp.maximum(acc * s2 + b2, 0.0)
    y = jnp.dot(h2, wpj, preferred_element_type=jnp.float32) * s3 + b3

    xs = xs_scr[stride * t + 1, sc_off:sc_off + Wout, :]   # (Wout, Cin)
    if has_conv_sc:
      sc = jnp.dot(xs, ws, preferred_element_type=jnp.float32) * ssc + bsc
    else:
      sc = xs                         # identity shortcut (Cin == Cout, s == 1)

    o_ref[t] = jnp.maximum(y + sc, 0.0).astype(o_ref.dtype)


# ----------------------------------------------------------------------------
# Module wrapper
# ----------------------------------------------------------------------------
def bn_fold(gamma, beta, mean, var, eps=1e-5):
  scale = gamma / jnp.sqrt(var + eps)
  bias = beta - mean * scale
  return scale[None, :], bias[None, :]


def inverted_residual_forward(x_nchw, params, *, stride):
  """x_nchw: (N, Cin, H, W) float32 -> (N, Cout, H/stride, W/stride)."""
  assert stride in (1, 2)
  N, Cin, H, W = x_nchw.shape
  if stride == 2:
    assert H % 2 == 0 and W % 2 == 0
  Hout, Wout = H // stride, W // stride
  Cexp = params["w_expand"].shape[1]
  Cout = params["w_project"].shape[1]
  has_conv_sc = (stride != 1) or (Cin != Cout)

  x = jnp.transpose(x_nchw, (0, 2, 3, 1))                   # NHWC
  # Zero-pad only the small pre-expansion input for the 3x3 halo; the large
  # expanded activation stays in VMEM and never gets a padded HBM copy.
  xp = jnp.pad(x, ((0, 0), (1, 1), (1, 1), (0, 0)))
  if stride == 2:
    # [even cols | odd cols]: strided column taps of the depthwise (and the
    # strided shortcut) become contiguous slices inside the kernel.
    xp = jnp.concatenate([xp[:, :, 0::2, :], xp[:, :, 1::2, :]], axis=2)
  Hp = H + 2
  Wpad = W + 2
  Wp = ((Wpad + 7) // 8) * 8          # sublane-align the padded width
  if Wp > Wpad:
    xp = jnp.pad(xp, ((0, 0), (0, 0), (0, Wp - Wpad), (0, 0)))

  TH = _pick_row_tile(Hout)           # output rows per grid step
  TR = stride * (TH - 1) + 3
  grid = (N, Hout // TH)

  wdw = params["w_dw"].reshape(9, Cexp)
  s1, b1 = params["bn1"]
  s2, b2 = params["bn2"]
  s3, b3 = params["bn3"]

  def fix2d(shape):
    return pl.BlockSpec(shape, lambda n, j: (0, 0))

  in_specs = [
      # Full padded image per batch; block index only depends on n, so it is
      # DMA'd once per image and reused across the row tiles.
      pl.BlockSpec((None, Hp, Wp, Cin), lambda n, j: (n, 0, 0, 0)),
      fix2d((Cin, Cexp)), fix2d((1, Cexp)), fix2d((1, Cexp)),   # expand + bn1
      fix2d((9, Cexp)), fix2d((1, Cexp)), fix2d((1, Cexp)),     # dw + bn2
      fix2d((Cexp, Cout)), fix2d((1, Cout)), fix2d((1, Cout)),  # project + bn3
  ]
  args = [xp, params["w_expand"], s1, b1, wdw, s2, b2,
          params["w_project"], s3, b3]
  if has_conv_sc:
    ssc, bsc = params["bn_sc"]
    in_specs += [fix2d((Cin, Cout)), fix2d((1, Cout)), fix2d((1, Cout))]
    args += [params["w_shortcut"], ssc, bsc]

  kernel = functools.partial(
      _fused_inverted_residual_kernel, stride=stride, TH=TH, H=H, W=W,
      Wp=Wp, Wout=Wout, has_conv_sc=has_conv_sc)

  out_nhwc = pl.pallas_call(
      kernel,
      out_shape=jax.ShapeDtypeStruct((N, Hout, Wout, Cout), jnp.float32),
      grid=grid,
      in_specs=in_specs,
      out_specs=pl.BlockSpec((None, TH, Wout, Cout), lambda n, j: (n, j, 0, 0)),
      scratch_shapes=[
          pltpu.VMEM((TR, Wp, Cexp), jnp.float32),   # expanded activation tile
          pltpu.VMEM((TR, Wp, Cin), jnp.float32),    # raw input rows (shortcut)
      ],
      compiler_params=pltpu.CompilerParams(
          dimension_semantics=("parallel", "parallel")),
  )(*args)
  return jnp.transpose(out_nhwc, (0, 3, 1, 2))               # NCHW


# ----------------------------------------------------------------------------
# Pure-JAX reference (lax.conv) for validation
# ----------------------------------------------------------------------------
def reference_forward(x_nchw, params, *, stride):
  x = jnp.transpose(x_nchw, (0, 2, 3, 1))  # NHWC
  dn = ("NHWC", "HWIO", "NHWC")
  Cin = x.shape[-1]
  Cexp = params["w_expand"].shape[1]
  Cout = params["w_project"].shape[1]

  w1 = params["w_expand"].reshape(1, 1, Cin, Cexp)
  s1, b1 = params["bn1"]
  y = lax.conv_general_dilated(x, w1, (1, 1), "VALID", dimension_numbers=dn)
  y = jnp.maximum(y * s1[0] + b1[0], 0.0)

  wdw = params["w_dw"].reshape(3, 3, 1, Cexp)
  s2, b2 = params["bn2"]
  y = lax.conv_general_dilated(y, wdw, (stride, stride), ((1, 1), (1, 1)),
                               dimension_numbers=dn, feature_group_count=Cexp)
  y = jnp.maximum(y * s2[0] + b2[0], 0.0)

  w3 = params["w_project"].reshape(1, 1, Cexp, Cout)
  s3, b3 = params["bn3"]
  y = lax.conv_general_dilated(y, w3, (1, 1), "VALID", dimension_numbers=dn)
  y = y * s3[0] + b3[0]

  if stride != 1 or Cin != Cout:
    ws = params["w_shortcut"].reshape(1, 1, Cin, Cout)
    ss, bs = params["bn_sc"]
    sc = lax.conv_general_dilated(x, ws, (stride, stride), "VALID",
                                  dimension_numbers=dn)
    sc = sc * ss[0] + bs[0]
  else:
    sc = x
  out = jnp.maximum(y + sc, 0.0)
  return jnp.transpose(out, (0, 3, 1, 2))


# ----------------------------------------------------------------------------
# Deterministic parameter init + main
# ----------------------------------------------------------------------------
def make_bn_params(key, c):
  k1, k2, k3, k4 = jax.random.split(key, 4)
  gamma = jax.random.uniform(k1, (c,), jnp.float32, 0.5, 1.5)
  beta = 0.1 * jax.random.normal(k2, (c,), jnp.float32)
  mean = 0.1 * jax.random.normal(k3, (c,), jnp.float32)
  var = jax.random.uniform(k4, (c,), jnp.float32, 0.5, 1.5)
  return bn_fold(gamma, beta, mean, var)


def make_params(key, cin, cout, expansion):
  cexp = cin * expansion
  keys = jax.random.split(key, 8)
  return {
      "w_expand": 0.2 * jax.random.normal(keys[0], (cin, cexp), jnp.float32),
      "w_dw": 0.2 * jax.random.normal(keys[1], (3, 3, cexp), jnp.float32),
      "w_project": 0.2 * jax.random.normal(keys[2], (cexp, cout), jnp.float32),
      "w_shortcut": 0.2 * jax.random.normal(keys[3], (cin, cout), jnp.float32),
      "bn1": make_bn_params(keys[4], cexp),
      "bn2": make_bn_params(keys[5], cexp),
      "bn3": make_bn_params(keys[6], cout),
      "bn_sc": make_bn_params(keys[7], cout),
  }


if __name__ == "__main__":
  key = jax.random.PRNGKey(0)
  N, H, W = 2, 16, 16
  configs = [
      # (Cin, Cout, expansion, stride)
      (4, 8, 4, 1),   # conv shortcut (Cin != Cout), stride 1
      (4, 8, 4, 2),   # conv shortcut, stride 2 (downsampling)
      (8, 8, 4, 1),   # identity shortcut (Cin == Cout, stride 1)
  ]
  for cin, cout, expansion, stride in configs:
    key, kx, kp = jax.random.split(key, 3)
    x = jax.random.normal(kx, (N, cin, H, W), jnp.float32)
    params = make_params(kp, cin, cout, expansion)

    out = jax.block_until_ready(
        inverted_residual_forward(x, params, stride=stride))
    ref = jax.block_until_ready(reference_forward(x, params, stride=stride))
    assert out.shape == ref.shape
    np.testing.assert_allclose(np.asarray(out), np.asarray(ref),
                               rtol=2e-4, atol=2e-4)
  print("KERNEL_OK")
</pallas_src>

<mosaic_0001>
module attributes {stable_mosaic.version = 11 : i64} {
  func.func @_fused_inverted_residual_kernel(%arg0: i32, %arg1: i32, %arg2: memref<1x18x24x4xf32, #tpu.memory_space<vmem>>, %arg3: memref<4x16xf32, #tpu.memory_space<vmem>>, %arg4: memref<1x16xf32, #tpu.memory_space<vmem>>, %arg5: memref<1x16xf32, #tpu.memory_space<vmem>>, %arg6: memref<9x16xf32, #tpu.memory_space<vmem>>, %arg7: memref<1x16xf32, #tpu.memory_space<vmem>>, %arg8: memref<1x16xf32, #tpu.memory_space<vmem>>, %arg9: memref<16x8xf32, #tpu.memory_space<vmem>>, %arg10: memref<1x8xf32, #tpu.memory_space<vmem>>, %arg11: memref<1x8xf32, #tpu.memory_space<vmem>>, %arg12: memref<4x8xf32, #tpu.memory_space<vmem>>, %arg13: memref<1x8xf32, #tpu.memory_space<vmem>>, %arg14: memref<1x8xf32, #tpu.memory_space<vmem>>, %arg15: memref<1x8x16x8xf32, #tpu.memory_space<vmem>>, %arg16: memref<10x24x16xf32, #tpu.memory_space<vmem>>, %arg17: memref<10x24x4xf32, #tpu.memory_space<vmem>>) attributes {dimension_semantics = [#tpu.dimension_semantics<parallel>, #tpu.dimension_semantics<parallel>], iteration_bounds = array<i64: 2, 2>, scalar_prefetch = 0 : i64, scratch_operands = 2 : i64, tpu.core_type = #tpu.core_type<tc>, window_params = [{transform_indices = @transform_0, window_bounds = array<i64: 1, 18, 24, 4>}, {pipeline_mode = #tpu.pipeline_mode<synchronous>, transform_indices = @transform_1, window_bounds = array<i64: 4, 16>}, {pipeline_mode = #tpu.pipeline_mode<synchronous>, transform_indices = @transform_2, window_bounds = array<i64: 1, 16>}, {pipeline_mode = #tpu.pipeline_mode<synchronous>, transform_indices = @transform_3, window_bounds = array<i64: 1, 16>}, {pipeline_mode = #tpu.pipeline_mode<synchronous>, transform_indices = @transform_4, window_bounds = array<i64: 9, 16>}, {pipeline_mode = #tpu.pipeline_mode<synchronous>, transform_indices = @transform_5, window_bounds = array<i64: 1, 16>}, {pipeline_mode = #tpu.pipeline_mode<synchronous>, transform_indices = @transform_6, window_bounds = array<i64: 1, 16>}, {pipeline_mode = #tpu.pipeline_mode<synchronous>, transform_indices = @transform_7, window_bounds = array<i64: 16, 8>}, {pipeline_mode = #tpu.pipeline_mode<synchronous>, transform_indices = @transform_8, window_bounds = array<i64: 1, 8>}, {pipeline_mode = #tpu.pipeline_mode<synchronous>, transform_indices = @transform_9, window_bounds = array<i64: 1, 8>}, {pipeline_mode = #tpu.pipeline_mode<synchronous>, transform_indices = @transform_10, window_bounds = array<i64: 4, 8>}, {pipeline_mode = #tpu.pipeline_mode<synchronous>, transform_indices = @transform_11, window_bounds = array<i64: 1, 8>}, {pipeline_mode = #tpu.pipeline_mode<synchronous>, transform_indices = @transform_12, window_bounds = array<i64: 1, 8>}, {transform_indices = @transform_13, window_bounds = array<i64: 1, 8, 16, 8>}]} {
    %c8_i32 = arith.constant 8 : i32
    %0 = arith.muli %arg1, %c8_i32 : i32
    %1 = tpu.iota {dimensions = array<i32: 0>} : vector<24x1xi32>
    %c1_i32 = arith.constant 1 : i32
    %2 = vector.broadcast %c1_i32 : i32 to vector<24x1xi32>
    %3 = arith.cmpi sge, %1, %2 : vector<24x1xi32>
    %c16_i32 = arith.constant 16 : i32
    %4 = vector.broadcast %c16_i32 : i32 to vector<24x1xi32>
    %5 = arith.cmpi sle, %1, %4 : vector<24x1xi32>
    %6 = arith.andi %3, %5 : vector<24x1xi1>
    %c0 = arith.constant 0 : index
    %c0_0 = arith.constant 0 : index
    %7 = vector.load %arg3[%c0, %c0_0] : memref<4x16xf32, #tpu.memory_space<vmem>>, vector<4x16xf32>
    %c0_1 = arith.constant 0 : index
    %c0_2 = arith.constant 0 : index
    %8 = vector.load %arg4[%c0_1, %c0_2] : memref<1x16xf32, #tpu.memory_space<vmem>>, vector<1x16xf32>
    %c0_3 = arith.constant 0 : index
    %c0_4 = arith.constant 0 : index
    %9 = vector.load %arg5[%c0_3, %c0_4] : memref<1x16xf32, #tpu.memory_space<vmem>>, vector<1x16xf32>
    %c0_i32 = arith.constant 0 : i32
    %10 = arith.addi %0, %c0_i32 : i32
    %c0_5 = arith.constant 0 : index
    %11 = arith.index_cast %10 : i32 to index
    %c0_6 = arith.constant 0 : index
    %c0_7 = arith.constant 0 : index
    %12 = vector.load %arg2[%c0_5, %11, %c0_6, %c0_7] : memref<1x18x24x4xf32, #tpu.memory_space<vmem>>, vector<1x1x24x4xf32>
    %13 = vector.shape_cast %12 : vector<1x1x24x4xf32> to vector<24x4xf32>
    %c0_8 = arith.constant 0 : index
    %c0_9 = arith.constant 0 : index
    %c0_10 = arith.constant 0 : index
    %14 = vector.load %arg17[%c0_8, %c0_9, %c0_10] : memref<10x24x4xf32, #tpu.memory_space<vmem>>, vector<1x24x4xf32>
    %15 = vector.shape_cast %14 : vector<1x24x4xf32> to vector<24x4xf32>
    %16 = vector.shape_cast %13 : vector<24x4xf32> to vector<1x24x4xf32>
    tpu.vector_store %arg17[%c0_8, %c0_9, %c0_10], %16 {strides = array<i32>} : memref<10x24x4xf32, #tpu.memory_space<vmem>>, vector<1x24x4xf32>,
    %cst = arith.constant dense<0.000000e+00> : vector<24x16xf32>
    %17 = tpu.matmul %13, %7, %cst {dimension_numbers = #tpu.dot_dimension_numbers<[1], [0], [0], [1], [0, 0, 1, 1], [], []>} : vector<24x4xf32>, vector<4x16xf32>, vector<24x16xf32> -> vector<24x16xf32>
    %18 = vector.broadcast %8 : vector<1x16xf32> to vector<24x16xf32>
    %19 = arith.mulf %17, %18 : vector<24x16xf32>
    %20 = vector.broadcast %9 : vector<1x16xf32> to vector<24x16xf32>
    %21 = arith.addf %19, %20 : vector<24x16xf32>
    %cst_11 = arith.constant 0.000000e+00 : f32
    %22 = vector.broadcast %cst_11 : f32 to vector<24x16xf32>
    %23 = arith.maximumf %21, %22 : vector<24x16xf32>
    %c1_i32_12 = arith.constant 1 : i32
    %24 = arith.cmpi sge, %10, %c1_i32_12 : i32
    %c16_i32_13 = arith.constant 16 : i32
    %25 = arith.cmpi sle, %10, %c16_i32_13 : i32
    %26 = arith.andi %24, %25 : i1
    %27 = vector.broadcast %26 : i1 to vector<24x1xi1>
    %28 = arith.andi %6, %27 : vector<24x1xi1>
    %cst_14 = arith.constant 0.000000e+00 : f32
    %29 = vector.shape_cast %28 : vector<24x1xi1> to vector<24x1xi1>
    %30 = vector.broadcast %29 : vector<24x1xi1> to vector<24x16xi1>
    %31 = vector.broadcast %cst_14 : f32 to vector<24x16xf32>
    %32 = arith.select %30, %23, %31 : vector<24x16xi1>, vector<24x16xf32>
    %c0_15 = arith.constant 0 : index
    %c0_16 = arith.constant 0 : index
    %c0_17 = arith.constant 0 : index
    %33 = vector.load %arg16[%c0_15, %c0_16, %c0_17] : memref<10x24x16xf32, #tpu.memory_space<vmem>>, vector<1x24x16xf32>
    %34 = vector.shape_cast %33 : vector<1x24x16xf32> to vector<24x16xf32>
    %35 = vector.shape_cast %32 : vector<24x16xf32> to vector<1x24x16xf32>
    tpu.vector_store %arg16[%c0_15, %c0_16, %c0_17], %35 {strides = array<i32>} : memref<10x24x16xf32, #tpu.memory_space<vmem>>, vector<1x24x16xf32>,
    %c1_i32_18 = arith.constant 1 : i32
    %36 = arith.addi %0, %c1_i32_18 : i32
    %c0_19 = arith.constant 0 : index
    %37 = arith.index_cast %36 : i32 to index
    %c0_20 = arith.constant 0 : index
    %c0_21 = arith.constant 0 : index
    %38 = vector.load %arg2[%c0_19, %37, %c0_20, %c0_21] : memref<1x18x24x4xf32, #tpu.memory_space<vmem>>, vector<1x1x24x4xf32>
    %39 = vector.shape_cast %38 : vector<1x1x24x4xf32> to vector<24x4xf32>
    %c1 = arith.constant 1 : index
    %c0_22 = arith.constant 0 : index
    %c0_23 = arith.constant 0 : index
    %40 = vector.load %arg17[%c1, %c0_22, %c0_23] : memref<10x24x4xf32, #tpu.memory_space<vmem>>, vector<1x24x4xf32>
    %41 = vector.shape_cast %40 : vector<1x24x4xf32> to vector<24x4xf32>
    %42 = vector.shape_cast %39 : vector<24x4xf32> to vector<1x24x4xf32>
    tpu.vector_store %arg17[%c1, %c0_22, %c0_23], %42 {strides = array<i32>} : memref<10x24x4xf32, #tpu.memory_space<vmem>>, vector<1x24x4xf32>,
    %cst_24 = arith.constant dense<0.000000e+00> : vector<24x16xf32>
    %43 = tpu.matmul %39, %7, %cst_24 {dimension_numbers = #tpu.dot_dimension_numbers<[1], [0], [0], [1], [0, 0, 1, 1], [], []>} : vector<24x4xf32>, vector<4x16xf32>, vector<24x16xf32> -> vector<24x16xf32>
    %44 = vector.broadcast %8 : vector<1x16xf32> to vector<24x16xf32>
    %45 = arith.mulf %43, %44 : vector<24x16xf32>
    %46 = vector.broadcast %9 : vector<1x16xf32> to vector<24x16xf32>
    %47 = arith.addf %45, %46 : vector<24x16xf32>
    %cst_25 = arith.constant 0.000000e+00 : f32
    %48 = vector.broadcast %cst_25 : f32 to vector<24x16xf32>
    %49 = arith.maximumf %47, %48 : vector<24x16xf32>
    %c1_i32_26 = arith.constant 1 : i32
    %50 = arith.cmpi sge, %36, %c1_i32_26 : i32
    %c16_i32_27 = arith.constant 16 : i32
    %51 = arith.cmpi sle, %36, %c16_i32_27 : i32
    %52 = arith.andi %50, %51 : i1
    %53 = vector.broadcast %52 : i1 to vector<24x1xi1>
    %54 = arith.andi %6, %53 : vector<24x1xi1>
    %cst_28 = arith.constant 0.000000e+00 : f32
    %55 = vector.shape_cast %54 : vector<24x1xi1> to vector<24x1xi1>
    %56 = vector.broadcast %55 : vector<24x1xi1> to vector<24x16xi1>
    %57 = vector.broadcast %cst_28 : f32 to vector<24x16xf32>
    %58 = arith.select %56, %49, %57 : vector<24x16xi1>, vector<24x16xf32>
    %c1_29 = arith.constant 1 : index
    %c0_30 = arith.constant 0 : index
    %c0_31 = arith.constant 0 : index
    %59 = vector.load %arg16[%c1_29, %c0_30, %c0_31] : memref<10x24x16xf32, #tpu.memory_space<vmem>>, vector<1x24x16xf32>
    %60 = vector.shape_cast %59 : vector<1x24x16xf32> to vector<24x16xf32>
    %61 = vector.shape_cast %58 : vector<24x16xf32> to vector<1x24x16xf32>
    tpu.vector_store %arg16[%c1_29, %c0_30, %c0_31], %61 {strides = array<i32>} : memref<10x24x16xf32, #tpu.memory_space<vmem>>, vector<1x24x16xf32>,
    %c2_i32 = arith.constant 2 : i32
    %62 = arith.addi %0, %c2_i32 : i32
    %c0_32 = arith.constant 0 : index
    %63 = arith.index_cast %62 : i32 to index
    %c0_33 = arith.constant 0 : index
    %c0_34 = arith.constant 0 : index
    %64 = vector.load %arg2[%c0_32, %63, %c0_33, %c0_34] : memref<1x18x24x4xf32, #tpu.memory_space<vmem>>, vector<1x1x24x4xf32>
    %65 = vector.shape_cast %64 : vector<1x1x24x4xf32> to vector<24x4xf32>
    %c2 = arith.constant 2 : index
    %c0_35 = arith.constant 0 : index
    %c0_36 = arith.constant 0 : index
    %66 = vector.load %arg17[%c2, %c0_35, %c0_36] : memref<10x24x4xf32, #tpu.memory_space<vmem>>, vector<1x24x4xf32>
    %67 = vector.shape_cast %66 : vector<1x24x4xf32> to vector<24x4xf32>
    %68 = vector.shape_cast %65 : vector<24x4xf32> to vector<1x24x4xf32>
    tpu.vector_store %arg17[%c2, %c0_35, %c0_36], %68 {strides = array<i32>} : memref<10x24x4xf32, #tpu.memory_space<vmem>>, vector<1x24x4xf32>,
    %cst_37 = arith.constant dense<0.000000e+00> : vector<24x16xf32>
    %69 = tpu.matmul %65, %7, %cst_37 {dimension_numbers = #tpu.dot_dimension_numbers<[1], [0], [0], [1], [0, 0, 1, 1], [], []>} : vector<24x4xf32>, vector<4x16xf32>, vector<24x16xf32> -> vector<24x16xf32>
    %70 = vector.broadcast %8 : vector<1x16xf32> to vector<24x16xf32>
    %71 = arith.mulf %69, %70 : vector<24x16xf32>
    %72 = vector.broadcast %9 : vector<1x16xf32> to vector<24x16xf32>
    %73 = arith.addf %71, %72 : vector<24x16xf32>
    %cst_38 = arith.constant 0.000000e+00 : f32
    %74 = vector.broadcast %cst_38 : f32 to vector<24x16xf32>
    %75 = arith.maximumf %73, %74 : vector<24x16xf32>
    %c1_i32_39 = arith.constant 1 : i32
    %76 = arith.cmpi sge, %62, %c1_i32_39 : i32
    %c16_i32_40 = arith.constant 16 : i32
    %77 = arith.cmpi sle, %62, %c16_i32_40 : i32
    %78 = arith.andi %76, %77 : i1
    %79 = vector.broadcast %78 : i1 to vector<24x1xi1>
    %80 = arith.andi %6, %79 : vector<24x1xi1>
    %cst_41 = arith.constant 0.000000e+00 : f32
    %81 = vector.shape_cast %80 : vector<24x1xi1> to vector<24x1xi1>
    %82 = vector.broadcast %81 : vector<24x1xi1> to vector<24x16xi1>
    %83 = vector.broadcast %cst_41 : f32 to vector<24x16xf32>
    %84 = arith.select %82, %75, %83 : vector<24x16xi1>, vector<24x16xf32>
    %c2_42 = arith.constant 2 : index
    %c0_43 = arith.constant 0 : index
    %c0_44 = arith.constant 0 : index
    %85 = vector.load %arg16[%c2_42, %c0_43, %c0_44] : memref<10x24x16xf32, #tpu.memory_space<vmem>>, vector<1x24x16xf32>
    %86 = vector.shape_cast %85 : vector<1x24x16xf32> to vector<24x16xf32>
    %87 = vector.shape_cast %84 : vector<24x16xf32> to vector<1x24x16xf32>
    tpu.vector_store %arg16[%c2_42, %c0_43, %c0_44], %87 {strides = array<i32>} : memref<10x24x16xf32, #tpu.memory_space<vmem>>, vector<1x24x16xf32>,
    %c3_i32 = arith.constant 3 : i32
    %88 = arith.addi %0, %c3_i32 : i32
    %c0_45 = arith.constant 0 : index
    %89 = arith.index_cast %88 : i32 to index
    %c0_46 = arith.constant 0 : index
    %c0_47 = arith.constant 0 : index
    %90 = vector.load %arg2[%c0_45, %89, %c0_46, %c0_47] : memref<1x18x24x4xf32, #tpu.memory_space<vmem>>, vector<1x1x24x4xf32>
    %91 = vector.shape_cast %90 : vector<1x1x24x4xf32> to vector<24x4xf32>
    %c3 = arith.constant 3 : index
    %c0_48 = arith.constant 0 : index
    %c0_49 = arith.constant 0 : index
    %92 = vector.load %arg17[%c3, %c0_48, %c0_49] : memref<10x24x4xf32, #tpu.memory_space<vmem>>, vector<1x24x4xf32>
    %93 = vector.shape_cast %92 : vector<1x24x4xf32> to vector<24x4xf32>
    %94 = vector.shape_cast %91 : vector<24x4xf32> to vector<1x24x4xf32>
    tpu.vector_store %arg17[%c3, %c0_48, %c0_49], %94 {strides = array<i32>} : memref<10x24x4xf32, #tpu.memory_space<vmem>>, vector<1x24x4xf32>,
    %cst_50 = arith.constant dense<0.000000e+00> : vector<24x16xf32>
    %95 = tpu.matmul %91, %7, %cst_50 {dimension_numbers = #tpu.dot_dimension_numbers<[1], [0], [0], [1], [0, 0, 1, 1], [], []>} : vector<24x4xf32>, vector<4x16xf32>, vector<24x16xf32> -> vector<24x16xf32>
    %96 = vector.broadcast %8 : vector<1x16xf32> to vector<24x16xf32>
    %97 = arith.mulf %95, %96 : vector<24x16xf32>
    %98 = vector.broadcast %9 : vector<1x16xf32> to vector<24x16xf32>
    %99 = arith.addf %97, %98 : vector<24x16xf32>
    %cst_51 = arith.constant 0.000000e+00 : f32
    %100 = vector.broadcast %cst_51 : f32 to vector<24x16xf32>
    %101 = arith.maximumf %99, %100 : vector<24x16xf32>
    %c1_i32_52 = arith.constant 1 : i32
    %102 = arith.cmpi sge, %88, %c1_i32_52 : i32
    %c16_i32_53 = arith.constant 16 : i32
    %103 = arith.cmpi sle, %88, %c16_i32_53 : i32
    %104 = arith.andi %102, %103 : i1
    %105 = vector.broadcast %104 : i1 to vector<24x1xi1>
    %106 = arith.andi %6, %105 : vector<24x1xi1>
    %cst_54 = arith.constant 0.000000e+00 : f32
    %107 = vector.shape_cast %106 : vector<24x1xi1> to vector<24x1xi1>
    %108 = vector.broadcast %107 : vector<24x1xi1> to vector<24x16xi1>
    %109 = vector.broadcast %cst_54 : f32 to vector<24x16xf32>
    %110 = arith.select %108, %101, %109 : vector<24x16xi1>, vector<24x16xf32>
    %c3_55 = arith.constant 3 : index
    %c0_56 = arith.constant 0 : index
    %c0_57 = arith.constant 0 : index
    %111 = vector.load %arg16[%c3_55, %c0_56, %c0_57] : memref<10x24x16xf32, #tpu.memory_space<vmem>>, vector<1x24x16xf32>
    %112 = vector.shape_cast %111 : vector<1x24x16xf32> to vector<24x16xf32>
    %113 = vector.shape_cast %110 : vector<24x16xf32> to vector<1x24x16xf32>
    tpu.vector_store %arg16[%c3_55, %c0_56, %c0_57], %113 {strides = array<i32>} : memref<10x24x16xf32, #tpu.memory_space<vmem>>, vector<1x24x16xf32>,
    %c4_i32 = arith.constant 4 : i32
    %114 = arith.addi %0, %c4_i32 : i32
    %c0_58 = arith.constant 0 : index
    %115 = arith.index_cast %114 : i32 to index
    %c0_59 = arith.constant 0 : index
    %c0_60 = arith.constant 0 : index
    %116 = vector.load %arg2[%c0_58, %115, %c0_59, %c0_60] : memref<1x18x24x4xf32, #tpu.memory_space<vmem>>, vector<1x1x24x4xf32>
    %117 = vector.shape_cast %116 : vector<1x1x24x4xf32> to vector<24x4xf32>
    %c4 = arith.constant 4 : index
    %c0_61 = arith.constant 0 : index
    %c0_62 = arith.constant 0 : index
    %118 = vector.load %arg17[%c4, %c0_61, %c0_62] : memref<10x24x4xf32, #tpu.memory_space<vmem>>, vector<1x24x4xf32>
    %119 = vector.shape_cast %118 : vector<1x24x4xf32> to vector<24x4xf32>
    %120 = vector.shape_cast %117 : vector<24x4xf32> to vector<1x24x4xf32>
    tpu.vector_store %arg17[%c4, %c0_61, %c0_62], %120 {strides = array<i32>} : memref<10x24x4xf32, #tpu.memory_space<vmem>>, vector<1x24x4xf32>,
    %cst_63 = arith.constant dense<0.000000e+00> : vector<24x16xf32>
    %121 = tpu.matmul %117, %7, %cst_63 {dimension_numbers = #tpu.dot_dimension_numbers<[1], [0], [0], [1], [0, 0, 1, 1], [], []>} : vector<24x4xf32>, vector<4x16xf32>, vector<24x16xf32> -> vector<24x16xf32>
    %122 = vector.broadcast %8 : vector<1x16xf32> to vector<24x16xf32>
    %123 = arith.mulf %121, %122 : vector<24x16xf32>
    %124 = vector.broadcast %9 : vector<1x16xf32> to vector<24x16xf32>
    %125 = arith.addf %123, %124 : vector<24x16xf32>
    %cst_64 = arith.constant 0.000000e+00 : f32
    %126 = vector.broadcast %cst_64 : f32 to vector<24x16xf32>
    %127 = arith.maximumf %125, %126 : vector<24x16xf32>
    %c1_i32_65 = arith.constant 1 : i32
    %128 = arith.cmpi sge, %114, %c1_i32_65 : i32
    %c16_i32_66 = arith.constant 16 : i32
    %129 = arith.cmpi sle, %114, %c16_i32_66 : i32
    %130 = arith.andi %128, %129 : i1
    %131 = vector.broadcast %130 : i1 to vector<24x1xi1>
    %132 = arith.andi %6, %131 : vector<24x1xi1>
    %cst_67 = arith.constant 0.000000e+00 : f32
    %133 = vector.shape_cast %132 : vector<24x1xi1> to vector<24x1xi1>
    %134 = vector.broadcast %133 : vector<24x1xi1> to vector<24x16xi1>
    %135 = vector.broadcast %cst_67 : f32 to vector<24x16xf32>
    %136 = arith.select %134, %127, %135 : vector<24x16xi1>, vector<24x16xf32>
    %c4_68 = arith.constant 4 : index
    %c0_69 = arith.constant 0 : index
    %c0_70 = arith.constant 0 : index
    %137 = vector.load %arg16[%c4_68, %c0_69, %c0_70] : memref<10x24x16xf32, #tpu.memory_space<vmem>>, vector<1x24x16xf32>
    %138 = vector.shape_cast %137 : vector<1x24x16xf32> to vector<24x16xf32>
    %139 = vector.shape_cast %136 : vector<24x16xf32> to vector<1x24x16xf32>
    tpu.vector_store %arg16[%c4_68, %c0_69, %c0_70], %139 {strides = array<i32>} : memref<10x24x16xf32, #tpu.memory_space<vmem>>, vector<1x24x16xf32>,
    %c5_i32 = arith.constant 5 : i32
    %140 = arith.addi %0, %c5_i32 : i32
    %c0_71 = arith.constant 0 : index
    %141 = arith.index_cast %140 : i32 to index
    %c0_72 = arith.constant 0 : index
    %c0_73 = arith.constant 0 : index
    %142 = vector.load %arg2[%c0_71, %141, %c0_72, %c0_73] : memref<1x18x24x4xf32, #tpu.memory_space<vmem>>, vector<1x1x24x4xf32>
    %143 = vector.shape_cast %142 : vector<1x1x24x4xf32> to vector<24x4xf32>
    %c5 = arith.constant 5 : index
    %c0_74 = arith.constant 0 : index
    %c0_75 = arith.constant 0 : index
    %144 = vector.load %arg17[%c5, %c0_74, %c0_75] : memref<10x24x4xf32, #tpu.memory_space<vmem>>, vector<1x24x4xf32>
    %145 = vector.shape_cast %144 : vector<1x24x4xf32> to vector<24x4xf32>
    %146 = vector.shape_cast %143 : vector<24x4xf32> to vector<1x24x4xf32>
    tpu.vector_store %arg17[%c5, %c0_74, %c0_75], %146 {strides = array<i32>} : memref<10x24x4xf32, #tpu.memory_space<vmem>>, vector<1x24x4xf32>,
    %cst_76 = arith.constant dense<0.000000e+00> : vector<24x16xf32>
    %147 = tpu.matmul %143, %7, %cst_76 {dimension_numbers = #tpu.dot_dimension_numbers<[1], [0], [0], [1], [0, 0, 1, 1], [], []>} : vector<24x4xf32>, vector<4x16xf32>, vector<24x16xf32> -> vector<24x16xf32>
    %148 = vector.broadcast %8 : vector<1x16xf32> to vector<24x16xf32>
    %149 = arith.mulf %147, %148 : vector<24x16xf32>
    %150 = vector.broadcast %9 : vector<1x16xf32> to vector<24x16xf32>
    %151 = arith.addf %149, %150 : vector<24x16xf32>
    %cst_77 = arith.constant 0.000000e+00 : f32
    %152 = vector.broadcast %cst_77 : f32 to vector<24x16xf32>
    %153 = arith.maximumf %151, %152 : vector<24x16xf32>
    %c1_i32_78 = arith.constant 1 : i32
    %154 = arith.cmpi sge, %140, %c1_i32_78 : i32
    %c16_i32_79 = arith.constant 16 : i32
    %155 = arith.cmpi sle, %140, %c16_i32_79 : i32
    %156 = arith.andi %154, %155 : i1
    %157 = vector.broadcast %156 : i1 to vector<24x1xi1>
    %158 = arith.andi %6, %157 : vector<24x1xi1>
    %cst_80 = arith.constant 0.000000e+00 : f32
    %159 = vector.shape_cast %158 : vector<24x1xi1> to vector<24x1xi1>
    %160 = vector.broadcast %159 : vector<24x1xi1> to vector<24x16xi1>
    %161 = vector.broadcast %cst_80 : f32 to vector<24x16xf32>
    %162 = arith.select %160, %153, %161 : vector<24x16xi1>, vector<24x16xf32>
    %c5_81 = arith.constant 5 : index
    %c0_82 = arith.constant 0 : index
    %c0_83 = arith.constant 0 : index
    %163 = vector.load %arg16[%c5_81, %c0_82, %c0_83] : memref<10x24x16xf32, #tpu.memory_space<vmem>>, vector<1x24x16xf32>
    %164 = vector.shape_cast %163 : vector<1x24x16xf32> to vector<24x16xf32>
    %165 = vector.shape_cast %162 : vector<24x16xf32> to vector<1x24x16xf32>
    tpu.vector_store %arg16[%c5_81, %c0_82, %c0_83], %165 {strides = array<i32>} : memref<10x24x16xf32, #tpu.memory_space<vmem>>, vector<1x24x16xf32>,
    %c6_i32 = arith.constant 6 : i32
    %166 = arith.addi %0, %c6_i32 : i32
    %c0_84 = arith.constant 0 : index
    %167 = arith.index_cast %166 : i32 to index
    %c0_85 = arith.constant 0 : index
    %c0_86 = arith.constant 0 : index
    %168 = vector.load %arg2[%c0_84, %167, %c0_85, %c0_86] : memref<1x18x24x4xf32, #tpu.memory_space<vmem>>, vector<1x1x24x4xf32>
    %169 = vector.shape_cast %168 : vector<1x1x24x4xf32> to vector<24x4xf32>
    %c6 = arith.constant 6 : index
    %c0_87 = arith.constant 0 : index
    %c0_88 = arith.constant 0 : index
    %170 = vector.load %arg17[%c6, %c0_87, %c0_88] : memref<10x24x4xf32, #tpu.memory_space<vmem>>, vector<1x24x4xf32>
    %171 = vector.shape_cast %170 : vector<1x24x4xf32> to vector<24x4xf32>
    %172 = vector.shape_cast %169 : vector<24x4xf32> to vector<1x24x4xf32>
    tpu.vector_store %arg17[%c6, %c0_87, %c0_88], %172 {strides = array<i32>} : memref<10x24x4xf32, #tpu.memory_space<vmem>>, vector<1x24x4xf32>,
    %cst_89 = arith.constant dense<0.000000e+00> : vector<24x16xf32>
    %173 = tpu.matmul %169, %7, %cst_89 {dimension_numbers = #tpu.dot_dimension_numbers<[1], [0], [0], [1], [0, 0, 1, 1], [], []>} : vector<24x4xf32>, vector<4x16xf32>, vector<24x16xf32> -> vector<24x16xf32>
    %174 = vector.broadcast %8 : vector<1x16xf32> to vector<24x16xf32>
    %175 = arith.mulf %173, %174 : vector<24x16xf32>
    %176 = vector.broadcast %9 : vector<1x16xf32> to vector<24x16xf32>
    %177 = arith.addf %175, %176 : vector<24x16xf32>
    %cst_90 = arith.constant 0.000000e+00 : f32
    %178 = vector.broadcast %cst_90 : f32 to vector<24x16xf32>
    %179 = arith.maximumf %177, %178 : vector<24x16xf32>
    %c1_i32_91 = arith.constant 1 : i32
    %180 = arith.cmpi sge, %166, %c1_i32_91 : i32
    %c16_i32_92 = arith.constant 16 : i32
    %181 = arith.cmpi sle, %166, %c16_i32_92 : i32
    %182 = arith.andi %180, %181 : i1
    %183 = vector.broadcast %182 : i1 to vector<24x1xi1>
    %184 = arith.andi %6, %183 : vector<24x1xi1>
    %cst_93 = arith.constant 0.000000e+00 : f32
    %185 = vector.shape_cast %184 : vector<24x1xi1> to vector<24x1xi1>
    %186 = vector.broadcast %185 : vector<24x1xi1> to vector<24x16xi1>
    %187 = vector.broadcast %cst_93 : f32 to vector<24x16xf32>
    %188 = arith.select %186, %179, %187 : vector<24x16xi1>, vector<24x16xf32>
    %c6_94 = arith.constant 6 : index
    %c0_95 = arith.constant 0 : index
    %c0_96 = arith.constant 0 : index
    %189 = vector.load %arg16[%c6_94, %c0_95, %c0_96] : memref<10x24x16xf32, #tpu.memory_space<vmem>>, vector<1x24x16xf32>
    %190 = vector.shape_cast %189 : vector<1x24x16xf32> to vector<24x16xf32>
    %191 = vector.shape_cast %188 : vector<24x16xf32> to vector<1x24x16xf32>
    tpu.vector_store %arg16[%c6_94, %c0_95, %c0_96], %191 {strides = array<i32>} : memref<10x24x16xf32, #tpu.memory_space<vmem>>, vector<1x24x16xf32>,
    %c7_i32 = arith.constant 7 : i32
    %192 = arith.addi %0, %c7_i32 : i32
    %c0_97 = arith.constant 0 : index
    %193 = arith.index_cast %192 : i32 to index
    %c0_98 = arith.constant 0 : index
    %c0_99 = arith.constant 0 : index
    %194 = vector.load %arg2[%c0_97, %193, %c0_98, %c0_99] : memref<1x18x24x4xf32, #tpu.memory_space<vmem>>, vector<1x1x24x4xf32>
    %195 = vector.shape_cast %194 : vector<1x1x24x4xf32> to vector<24x4xf32>
    %c7 = arith.constant 7 : index
    %c0_100 = arith.constant 0 : index
    %c0_101 = arith.constant 0 : index
    %196 = vector.load %arg17[%c7, %c0_100, %c0_101] : memref<10x24x4xf32, #tpu.memory_space<vmem>>, vector<1x24x4xf32>
    %197 = vector.shape_cast %196 : vector<1x24x4xf32> to vector<24x4xf32>
    %198 = vector.shape_cast %195 : vector<24x4xf32> to vector<1x24x4xf32>
    tpu.vector_store %arg17[%c7, %c0_100, %c0_101], %198 {strides = array<i32>} : memref<10x24x4xf32, #tpu.memory_space<vmem>>, vector<1x24x4xf32>,
    %cst_102 = arith.constant dense<0.000000e+00> : vector<24x16xf32>
    %199 = tpu.matmul %195, %7, %cst_102 {dimension_numbers = #tpu.dot_dimension_numbers<[1], [0], [0], [1], [0, 0, 1, 1], [], []>} : vector<24x4xf32>, vector<4x16xf32>, vector<24x16xf32> -> vector<24x16xf32>
    %200 = vector.broadcast %8 : vector<1x16xf32> to vector<24x16xf32>
    %201 = arith.mulf %199, %200 : vector<24x16xf32>
    %202 = vector.broadcast %9 : vector<1x16xf32> to vector<24x16xf32>
    %203 = arith.addf %201, %202 : vector<24x16xf32>
    %cst_103 = arith.constant 0.000000e+00 : f32
    %204 = vector.broadcast %cst_103 : f32 to vector<24x16xf32>
    %205 = arith.maximumf %203, %204 : vector<24x16xf32>
    %c1_i32_104 = arith.constant 1 : i32
    %206 = arith.cmpi sge, %192, %c1_i32_104 : i32
    %c16_i32_105 = arith.constant 16 : i32
    %207 = arith.cmpi sle, %192, %c16_i32_105 : i32
    %208 = arith.andi %206, %207 : i1
    %209 = vector.broadcast %208 : i1 to vector<24x1xi1>
    %210 = arith.andi %6, %209 : vector<24x1xi1>
    %cst_106 = arith.constant 0.000000e+00 : f32
    %211 = vector.shape_cast %210 : vector<24x1xi1> to vector<24x1xi1>
    %212 = vector.broadcast %211 : vector<24x1xi1> to vector<24x16xi1>
    %213 = vector.broadcast %cst_106 : f32 to vector<24x16xf32>
    %214 = arith.select %212, %205, %213 : vector<24x16xi1>, vector<24x16xf32>
    %c7_107 = arith.constant 7 : index
    %c0_108 = arith.constant 0 : index
    %c0_109 = arith.constant 0 : index
    %215 = vector.load %arg16[%c7_107, %c0_108, %c0_109] : memref<10x24x16xf32, #tpu.memory_space<vmem>>, vector<1x24x16xf32>
    %216 = vector.shape_cast %215 : vector<1x24x16xf32> to vector<24x16xf32>
    %217 = vector.shape_cast %214 : vector<24x16xf32> to vector<1x24x16xf32>
    tpu.vector_store %arg16[%c7_107, %c0_108, %c0_109], %217 {strides = array<i32>} : memref<10x24x16xf32, #tpu.memory_space<vmem>>, vector<1x24x16xf32>,
    %c8_i32_110 = arith.constant 8 : i32
    %218 = arith.addi %0, %c8_i32_110 : i32
    %c0_111 = arith.constant 0 : index
    %219 = arith.index_cast %218 : i32 to index
    %c0_112 = arith.constant 0 : index
    %c0_113 = arith.constant 0 : index
    %220 = vector.load %arg2[%c0_111, %219, %c0_112, %c0_113] : memref<1x18x24x4xf32, #tpu.memory_space<vmem>>, vector<1x1x24x4xf32>
    %221 = vector.shape_cast %220 : vector<1x1x24x4xf32> to vector<24x4xf32>
    %c8 = arith.constant 8 : index
    %c0_114 = arith.constant 0 : index
    %c0_115 = arith.constant 0 : index
    %222 = vector.load %arg17[%c8, %c0_114, %c0_115] : memref<10x24x4xf32, #tpu.memory_space<vmem>>, vector<1x24x4xf32>
    %223 = vector.shape_cast %222 : vector<1x24x4xf32> to vector<24x4xf32>
    %224 = vector.shape_cast %221 : vector<24x4xf32> to vector<1x24x4xf32>
    tpu.vector_store %arg17[%c8, %c0_114, %c0_115], %224 {strides = array<i32>} : memref<10x24x4xf32, #tpu.memory_space<vmem>>, vector<1x24x4xf32>,
    %cst_116 = arith.constant dense<0.000000e+00> : vector<24x16xf32>
    %225 = tpu.matmul %221, %7, %cst_116 {dimension_numbers = #tpu.dot_dimension_numbers<[1], [0], [0], [1], [0, 0, 1, 1], [], []>} : vector<24x4xf32>, vector<4x16xf32>, vector<24x16xf32> -> vector<24x16xf32>
    %226 = vector.broadcast %8 : vector<1x16xf32> to vector<24x16xf32>
    %227 = arith.mulf %225, %226 : vector<24x16xf32>
    %228 = vector.broadcast %9 : vector<1x16xf32> to vector<24x16xf32>
    %229 = arith.addf %227, %228 : vector<24x16xf32>
    %cst_117 = arith.constant 0.000000e+00 : f32
    %230 = vector.broadcast %cst_117 : f32 to vector<24x16xf32>
    %231 = arith.maximumf %229, %230 : vector<24x16xf32>
    %c1_i32_118 = arith.constant 1 : i32
    %232 = arith.cmpi sge, %218, %c1_i32_118 : i32
    %c16_i32_119 = arith.constant 16 : i32
    %233 = arith.cmpi sle, %218, %c16_i32_119 : i32
    %234 = arith.andi %232, %233 : i1
    %235 = vector.broadcast %234 : i1 to vector<24x1xi1>
    %236 = arith.andi %6, %235 : vector<24x1xi1>
    %cst_120 = arith.constant 0.000000e+00 : f32
    %237 = vector.shape_cast %236 : vector<24x1xi1> to vector<24x1xi1>
    %238 = vector.broadcast %237 : vector<24x1xi1> to vector<24x16xi1>
    %239 = vector.broadcast %cst_120 : f32 to vector<24x16xf32>
    %240 = arith.select %238, %231, %239 : vector<24x16xi1>, vector<24x16xf32>
    %c8_121 = arith.constant 8 : index
    %c0_122 = arith.constant 0 : index
    %c0_123 = arith.constant 0 : index
    %241 = vector.load %arg16[%c8_121, %c0_122, %c0_123] : memref<10x24x16xf32, #tpu.memory_space<vmem>>, vector<1x24x16xf32>
    %242 = vector.shape_cast %241 : vector<1x24x16xf32> to vector<24x16xf32>
    %243 = vector.shape_cast %240 : vector<24x16xf32> to vector<1x24x16xf32>
    tpu.vector_store %arg16[%c8_121, %c0_122, %c0_123], %243 {strides = array<i32>} : memref<10x24x16xf32, #tpu.memory_space<vmem>>, vector<1x24x16xf32>,
    %c9_i32 = arith.constant 9 : i32
    %244 = arith.addi %0, %c9_i32 : i32
    %c0_124 = arith.constant 0 : index
    %245 = arith.index_cast %244 : i32 to index
    %c0_125 = arith.constant 0 : index
    %c0_126 = arith.constant 0 : index
    %246 = vector.load %arg2[%c0_124, %245, %c0_125, %c0_126] : memref<1x18x24x4xf32, #tpu.memory_space<vmem>>, vector<1x1x24x4xf32>
    %247 = vector.shape_cast %246 : vector<1x1x24x4xf32> to vector<24x4xf32>
    %c9 = arith.constant 9 : index
    %c0_127 = arith.constant 0 : index
    %c0_128 = arith.constant 0 : index
    %248 = vector.load %arg17[%c9, %c0_127, %c0_128] : memref<10x24x4xf32, #tpu.memory_space<vmem>>, vector<1x24x4xf32>
    %249 = vector.shape_cast %248 : vector<1x24x4xf32> to vector<24x4xf32>
    %250 = vector.shape_cast %247 : vector<24x4xf32> to vector<1x24x4xf32>
    tpu.vector_store %arg17[%c9, %c0_127, %c0_128], %250 {strides = array<i32>} : memref<10x24x4xf32, #tpu.memory_space<vmem>>, vector<1x24x4xf32>,
    %cst_129 = arith.constant dense<0.000000e+00> : vector<24x16xf32>
    %251 = tpu.matmul %247, %7, %cst_129 {dimension_numbers = #tpu.dot_dimension_numbers<[1], [0], [0], [1], [0, 0, 1, 1], [], []>} : vector<24x4xf32>, vector<4x16xf32>, vector<24x16xf32> -> vector<24x16xf32>
    %252 = vector.broadcast %8 : vector<1x16xf32> to vector<24x16xf32>
    %253 = arith.mulf %251, %252 : vector<24x16xf32>
    %254 = vector.broadcast %9 : vector<1x16xf32> to vector<24x16xf32>
    %255 = arith.addf %253, %254 : vector<24x16xf32>
    %cst_130 = arith.constant 0.000000e+00 : f32
    %256 = vector.broadcast %cst_130 : f32 to vector<24x16xf32>
    %257 = arith.maximumf %255, %256 : vector<24x16xf32>
    %c1_i32_131 = arith.constant 1 : i32
    %258 = arith.cmpi sge, %244, %c1_i32_131 : i32
    %c16_i32_132 = arith.constant 16 : i32
    %259 = arith.cmpi sle, %244, %c16_i32_132 : i32
    %260 = arith.andi %258, %259 : i1
    %261 = vector.broadcast %260 : i1 to vector<24x1xi1>
    %262 = arith.andi %6, %261 : vector<24x1xi1>
    %cst_133 = arith.constant 0.000000e+00 : f32
    %263 = vector.shape_cast %262 : vector<24x1xi1> to vector<24x1xi1>
    %264 = vector.broadcast %263 : vector<24x1xi1> to vector<24x16xi1>
    %265 = vector.broadcast %cst_133 : f32 to vector<24x16xf32>
    %266 = arith.select %264, %257, %265 : vector<24x16xi1>, vector<24x16xf32>
    %c9_134 = arith.constant 9 : index
    %c0_135 = arith.constant 0 : index
    %c0_136 = arith.constant 0 : index
    %267 = vector.load %arg16[%c9_134, %c0_135, %c0_136] : memref<10x24x16xf32, #tpu.memory_space<vmem>>, vector<1x24x16xf32>
    %268 = vector.shape_cast %267 : vector<1x24x16xf32> to vector<24x16xf32>
    %269 = vector.shape_cast %266 : vector<24x16xf32> to vector<1x24x16xf32>
    tpu.vector_store %arg16[%c9_134, %c0_135, %c0_136], %269 {strides = array<i32>} : memref<10x24x16xf32, #tpu.memory_space<vmem>>, vector<1x24x16xf32>,
    %c0_137 = arith.constant 0 : index
    %c0_138 = arith.constant 0 : index
    %270 = vector.load %arg7[%c0_137, %c0_138] : memref<1x16xf32, #tpu.memory_space<vmem>>, vector<1x16xf32>
    %c0_139 = arith.constant 0 : index
    %c0_140 = arith.constant 0 : index
    %271 = vector.load %arg8[%c0_139, %c0_140] : memref<1x16xf32, #tpu.memory_space<vmem>>, vector<1x16xf32>
    %c0_141 = arith.constant 0 : index
    %c0_142 = arith.constant 0 : index
    %272 = vector.load %arg9[%c0_141, %c0_142] : memref<16x8xf32, #tpu.memory_space<vmem>>, vector<16x8xf32>
    %c0_143 = arith.constant 0 : index
    %c0_144 = arith.constant 0 : index
    %273 = vector.load %arg10[%c0_143, %c0_144] : memref<1x8xf32, #tpu.memory_space<vmem>>, vector<1x8xf32>
    %c0_145 = arith.constant 0 : index
    %c0_146 = arith.constant 0 : index
    %274 = vector.load %arg11[%c0_145, %c0_146] : memref<1x8xf32, #tpu.memory_space<vmem>>, vector<1x8xf32>
    %c0_147 = arith.constant 0 : index
    %c0_148 = arith.constant 0 : index
    %275 = vector.load %arg12[%c0_147, %c0_148] : memref<4x8xf32, #tpu.memory_space<vmem>>, vector<4x8xf32>
    %c0_149 = arith.constant 0 : index
    %c0_150 = arith.constant 0 : index
    %276 = vector.load %arg13[%c0_149, %c0_150] : memref<1x8xf32, #tpu.memory_space<vmem>>, vector<1x8xf32>
    %c0_151 = arith.constant 0 : index
    %c0_152 = arith.constant 0 : index
    %277 = vector.load %arg14[%c0_151, %c0_152] : memref<1x8xf32, #tpu.memory_space<vmem>>, vector<1x8xf32>
    %cst_153 = arith.constant 0.000000e+00 : f32
    %278 = vector.broadcast %cst_153 : f32 to vector<16x16xf32>
    %c0_154 = arith.constant 0 : index
    %c0_155 = arith.constant 0 : index
    %c0_156 = arith.constant 0 : index
    %279 = vector.load %arg16[%c0_154, %c0_155, %c0_156] : memref<10x24x16xf32, #tpu.memory_space<vmem>>, vector<1x16x16xf32>
    %280 = vector.shape_cast %279 : vector<1x16x16xf32> to vector<16x16xf32>
    %c0_157 = arith.constant 0 : index
    %c0_158 = arith.constant 0 : index
    %281 = vector.load %arg6[%c0_157, %c0_158] : memref<9x16xf32, #tpu.memory_space<vmem>>, vector<1x16xf32>
    %282 = vector.shape_cast %281 : vector<1x16xf32> to vector<16xf32>
    %283 = vector.shape_cast %282 : vector<16xf32> to vector<1x16xf32>
    %284 = vector.broadcast %283 : vector<1x16xf32> to vector<16x16xf32>
    %285 = arith.mulf %280, %284 : vector<16x16xf32>
    %286 = arith.addf %278, %285 : vector<16x16xf32>
    %c0_159 = arith.constant 0 : index
    %c1_160 = arith.constant 1 : index
    %c0_161 = arith.constant 0 : index
    %287 = vector.load %arg16[%c0_159, %c1_160, %c0_161] : memref<10x24x16xf32, #tpu.memory_space<vmem>>, vector<1x16x16xf32>
    %288 = vector.shape_cast %287 : vector<1x16x16xf32> to vector<16x16xf32>
    %c1_162 = arith.constant 1 : index
    %c0_163 = arith.constant 0 : index
    %289 = vector.load %arg6[%c1_162, %c0_163] : memref<9x16xf32, #tpu.memory_space<vmem>>, vector<1x16xf32>
    %290 = vector.shape_cast %289 : vector<1x16xf32> to vector<16xf32>
    %291 = vector.shape_cast %290 : vector<16xf32> to vector<1x16xf32>
    %292 = vector.broadcast %291 : vector<1x16xf32> to vector<16x16xf32>
    %293 = arith.mulf %288, %292 : vector<16x16xf32>
    %294 = arith.addf %286, %293 : vector<16x16xf32>
    %c0_164 = arith.constant 0 : index
    %c2_165 = arith.constant 2 : index
    %c0_166 = arith.constant 0 : index
    %295 = vector.load %arg16[%c0_164, %c2_165, %c0_166] : memref<10x24x16xf32, #tpu.memory_space<vmem>>, vector<1x16x16xf32>
    %296 = vector.shape_cast %295 : vector<1x16x16xf32> to vector<16x16xf32>
    %c2_167 = arith.constant 2 : index
    %c0_168 = arith.constant 0 : index
    %297 = vector.load %arg6[%c2_167, %c0_168] : memref<9x16xf32, #tpu.memory_space<vmem>>, vector<1x16xf32>
    %298 = vector.shape_cast %297 : vector<1x16xf32> to vector<16xf32>
    %299 = vector.shape_cast %298 : vector<16xf32> to vector<1x16xf32>
    %300 = vector.broadcast %299 : vector<1x16xf32> to vector<16x16xf32>
    %301 = arith.mulf %296, %300 : vector<16x16xf32>
    %302 = arith.addf %294, %301 : vector<16x16xf32>
    %c1_169 = arith.constant 1 : index
    %c0_170 = arith.constant 0 : index
    %c0_171 = arith.constant 0 : index
    %303 = vector.load %arg16[%c1_169, %c0_170, %c0_171] : memref<10x24x16xf32, #tpu.memory_space<vmem>>, vector<1x16x16xf32>
    %304 = vector.shape_cast %303 : vector<1x16x16xf32> to vector<16x16xf32>
    %c3_172 = arith.constant 3 : index
    %c0_173 = arith.constant 0 : index
    %305 = vector.load %arg6[%c3_172, %c0_173] : memref<9x16xf32, #tpu.memory_space<vmem>>, vector<1x16xf32>
    %306 = vector.shape_cast %305 : vector<1x16xf32> to vector<16xf32>
    %307 = vector.shape_cast %306 : vector<16xf32> to vector<1x16xf32>
    %308 = vector.broadcast %307 : vector<1x16xf32> to vector<16x16xf32>
    %309 = arith.mulf %304, %308 : vector<16x16xf32>
    %310 = arith.addf %302, %309 : vector<16x16xf32>
    %c1_174 = arith.constant 1 : index
    %c1_175 = arith.constant 1 : index
    %c0_176 = arith.constant 0 : index
    %311 = vector.load %arg16[%c1_174, %c1_175, %c0_176] : memref<10x24x16xf32, #tpu.memory_space<vmem>>, vector<1x16x16xf32>
    %312 = vector.shape_cast %311 : vector<1x16x16xf32> to vector<16x16xf32>
    %c4_177 = arith.constant 4 : index
    %c0_178 = arith.constant 0 : index
    %313 = vector.load %arg6[%c4_177, %c0_178] : memref<9x16xf32, #tpu.memory_space<vmem>>, vector<1x16xf32>
    %314 = vector.shape_cast %313 : vector<1x16xf32> to vector<16xf32>
    %315 = vector.shape_cast %314 : vector<16xf32> to vector<1x16xf32>
    %316 = vector.broadcast %315 : vector<1x16xf32> to vector<16x16xf32>
    %317 = arith.mulf %312, %316 : vector<16x16xf32>
    %318 = arith.addf %310, %317 : vector<16x16xf32>
    %c1_179 = arith.constant 1 : index
    %c2_180 = arith.constant 2 : index
    %c0_181 = arith.constant 0 : index
    %319 = vector.load %arg16[%c1_179, %c2_180, %c0_181] : memref<10x24x16xf32, #tpu.memory_space<vmem>>, vector<1x16x16xf32>
    %320 = vector.shape_cast %319 : vector<1x16x16xf32> to vector<16x16xf32>
    %c5_182 = arith.constant 5 : index
    %c0_183 = arith.constant 0 : index
    %321 = vector.load %arg6[%c5_182, %c0_183] : memref<9x16xf32, #tpu.memory_space<vmem>>, vector<1x16xf32>
    %322 = vector.shape_cast %321 : vector<1x16xf32> to vector<16xf32>
    %323 = vector.shape_cast %322 : vector<16xf32> to vector<1x16xf32>
    %324 = vector.broadcast %323 : vector<1x16xf32> to vector<16x16xf32>
    %325 = arith.mulf %320, %324 : vector<16x16xf32>
    %326 = arith.addf %318, %325 : vector<16x16xf32>
    %c2_184 = arith.constant 2 : index
    %c0_185 = arith.constant 0 : index
    %c0_186 = arith.constant 0 : index
    %327 = vector.load %arg16[%c2_184, %c0_185, %c0_186] : memref<10x24x16xf32, #tpu.memory_space<vmem>>, vector<1x16x16xf32>
    %328 = vector.shape_cast %327 : vector<1x16x16xf32> to vector<16x16xf32>
    %c6_187 = arith.constant 6 : index
    %c0_188 = arith.constant 0 : index
    %329 = vector.load %arg6[%c6_187, %c0_188] : memref<9x16xf32, #tpu.memory_space<vmem>>, vector<1x16xf32>
    %330 = vector.shape_cast %329 : vector<1x16xf32> to vector<16xf32>
    %331 = vector.shape_cast %330 : vector<16xf32> to vector<1x16xf32>
    %332 = vector.broadcast %331 : vector<1x16xf32> to vector<16x16xf32>
    %333 = arith.mulf %328, %332 : vector<16x16xf32>
    %334 = arith.addf %326, %333 : vector<16x16xf32>
    %c2_189 = arith.constant 2 : index
    %c1_190 = arith.constant 1 : index
    %c0_191 = arith.constant 0 : index
    %335 = vector.load %arg16[%c2_189, %c1_190, %c0_191] : memref<10x24x16xf32, #tpu.memory_space<vmem>>, vector<1x16x16xf32>
    %336 = vector.shape_cast %335 : vector<1x16x16xf32> to vector<16x16xf32>
    %c7_192 = arith.constant 7 : index
    %c0_193 = arith.constant 0 : index
    %337 = vector.load %arg6[%c7_192, %c0_193] : memref<9x16xf32, #tpu.memory_space<vmem>>, vector<1x16xf32>
    %338 = vector.shape_cast %337 : vector<1x16xf32> to vector<16xf32>
    %339 = vector.shape_cast %338 : vector<16xf32> to vector<1x16xf32>
    %340 = vector.broadcast %339 : vector<1x16xf32> to vector<16x16xf32>
    %341 = arith.mulf %336, %340 : vector<16x16xf32>
    %342 = arith.addf %334, %341 : vector<16x16xf32>
    %c2_194 = arith.constant 2 : index
    %c2_195 = arith.constant 2 : index
    %c0_196 = arith.constant 0 : index
    %343 = vector.load %arg16[%c2_194, %c2_195, %c0_196] : memref<10x24x16xf32, #tpu.memory_space<vmem>>, vector<1x16x16xf32>
    %344 = vector.shape_cast %343 : vector<1x16x16xf32> to vector<16x16xf32>
    %c8_197 = arith.constant 8 : index
    %c0_198 = arith.constant 0 : index
    %345 = vector.load %arg6[%c8_197, %c0_198] : memref<9x16xf32, #tpu.memory_space<vmem>>, vector<1x16xf32>
    %346 = vector.shape_cast %345 : vector<1x16xf32> to vector<16xf32>
    %347 = vector.shape_cast %346 : vector<16xf32> to vector<1x16xf32>
    %348 = vector.broadcast %347 : vector<1x16xf32> to vector<16x16xf32>
    %349 = arith.mulf %344, %348 : vector<16x16xf32>
    %350 = arith.addf %342, %349 : vector<16x16xf32>
    %351 = vector.broadcast %270 : vector<1x16xf32> to vector<16x16xf32>
    %352 = arith.mulf %350, %351 : vector<16x16xf32>
    %353 = vector.broadcast %271 : vector<1x16xf32> to vector<16x16xf32>
    %354 = arith.addf %352, %353 : vector<16x16xf32>
    %cst_199 = arith.constant 0.000000e+00 : f32
    %355 = vector.broadcast %cst_199 : f32 to vector<16x16xf32>
    %356 = arith.maximumf %354, %355 : vector<16x16xf32>
    %cst_200 = arith.constant dense<0.000000e+00> : vector<16x8xf32>
    %357 = tpu.matmul %356, %272, %cst_200 {dimension_numbers = #tpu.dot_dimension_numbers<[1], [0], [0], [1], [0, 0, 1, 1], [], []>} : vector<16x16xf32>, vector<16x8xf32>, vector<16x8xf32> -> vector<16x8xf32>
    %358 = vector.broadcast %273 : vector<1x8xf32> to vector<16x8xf32>
    %359 = arith.mulf %357, %358 : vector<16x8xf32>
    %360 = vector.broadcast %274 : vector<1x8xf32> to vector<16x8xf32>
    %361 = arith.addf %359, %360 : vector<16x8xf32>
    %c1_201 = arith.constant 1 : index
    %c1_202 = arith.constant 1 : index
    %c0_203 = arith.constant 0 : index
    %362 = vector.load %arg17[%c1_201, %c1_202, %c0_203] : memref<10x24x4xf32, #tpu.memory_space<vmem>>, vector<1x16x4xf32>
    %363 = vector.shape_cast %362 : vector<1x16x4xf32> to vector<16x4xf32>
    %cst_204 = arith.constant dense<0.000000e+00> : vector<16x8xf32>
    %364 = tpu.matmul %363, %275, %cst_204 {dimension_numbers = #tpu.dot_dimension_numbers<[1], [0], [0], [1], [0, 0, 1, 1], [], []>} : vector<16x4xf32>, vector<4x8xf32>, vector<16x8xf32> -> vector<16x8xf32>
    %365 = vector.broadcast %276 : vector<1x8xf32> to vector<16x8xf32>
    %366 = arith.mulf %364, %365 : vector<16x8xf32>
    %367 = vector.broadcast %277 : vector<1x8xf32> to vector<16x8xf32>
    %368 = arith.addf %366, %367 : vector<16x8xf32>
    %369 = arith.addf %361, %368 : vector<16x8xf32>
    %cst_205 = arith.constant 0.000000e+00 : f32
    %370 = vector.broadcast %cst_205 : f32 to vector<16x8xf32>
    %371 = arith.maximumf %369, %370 : vector<16x8xf32>
    %c0_206 = arith.constant 0 : index
    %c0_207 = arith.constant 0 : index
    %c0_208 = arith.constant 0 : index
    %c0_209 = arith.constant 0 : index
    %372 = vector.load %arg15[%c0_206, %c0_207, %c0_208, %c0_209] : memref<1x8x16x8xf32, #tpu.memory_space<vmem>>, vector<1x1x16x8xf32>
    %373 = vector.shape_cast %372 : vector<1x1x16x8xf32> to vector<16x8xf32>
    %374 = vector.shape_cast %371 : vector<16x8xf32> to vector<1x1x16x8xf32>
    tpu.vector_store %arg15[%c0_206, %c0_207, %c0_208, %c0_209], %374 {strides = array<i32>} : memref<1x8x16x8xf32, #tpu.memory_space<vmem>>, vector<1x1x16x8xf32>,
    %cst_210 = arith.constant 0.000000e+00 : f32
    %375 = vector.broadcast %cst_210 : f32 to vector<16x16xf32>
    %c1_211 = arith.constant 1 : index
    %c0_212 = arith.constant 0 : index
    %c0_213 = arith.constant 0 : index
    %376 = vector.load %arg16[%c1_211, %c0_212, %c0_213] : memref<10x24x16xf32, #tpu.memory_space<vmem>>, vector<1x16x16xf32>
    %377 = vector.shape_cast %376 : vector<1x16x16xf32> to vector<16x16xf32>
    %c0_214 = arith.constant 0 : index
    %c0_215 = arith.constant 0 : index
    %378 = vector.load %arg6[%c0_214, %c0_215] : memref<9x16xf32, #tpu.memory_space<vmem>>, vector<1x16xf32>
    %379 = vector.shape_cast %378 : vector<1x16xf32> to vector<16xf32>
    %380 = vector.shape_cast %379 : vector<16xf32> to vector<1x16xf32>
    %381 = vector.broadcast %380 : vector<1x16xf32> to vector<16x16xf32>
    %382 = arith.mulf %377, %381 : vector<16x16xf32>
    %383 = arith.addf %375, %382 : vector<16x16xf32>
    %c1_216 = arith.constant 1 : index
    %c1_217 = arith.constant 1 : index
    %c0_218 = arith.constant 0 : index
    %384 = vector.load %arg16[%c1_216, %c1_217, %c0_218] : memref<10x24x16xf32, #tpu.memory_space<vmem>>, vector<1x16x16xf32>
    %385 = vector.shape_cast %384 : vector<1x16x16xf32> to vector<16x16xf32>
    %c1_219 = arith.constant 1 : index
    %c0_220 = arith.constant 0 : index
    %386 = vector.load %arg6[%c1_219, %c0_220] : memref<9x16xf32, #tpu.memory_space<vmem>>, vector<1x16xf32>
    %387 = vector.shape_cast %386 : vector<1x16xf32> to vector<16xf32>
    %388 = vector.shape_cast %387 : vector<16xf32> to vector<1x16xf32>
    %389 = vector.broadcast %388 : vector<1x16xf32> to vector<16x16xf32>
    %390 = arith.mulf %385, %389 : vector<16x16xf32>
    %391 = arith.addf %383, %390 : vector<16x16xf32>
    %c1_221 = arith.constant 1 : index
    %c2_222 = arith.constant 2 : index
    %c0_223 = arith.constant 0 : index
    %392 = vector.load %arg16[%c1_221, %c2_222, %c0_223] : memref<10x24x16xf32, #tpu.memory_space<vmem>>, vector<1x16x16xf32>
    %393 = vector.shape_cast %392 : vector<1x16x16xf32> to vector<16x16xf32>
    %c2_224 = arith.constant 2 : index
    %c0_225 = arith.constant 0 : index
    %394 = vector.load %arg6[%c2_224, %c0_225] : memref<9x16xf32, #tpu.memory_space<vmem>>, vector<1x16xf32>
    %395 = vector.shape_cast %394 : vector<1x16xf32> to vector<16xf32>
    %396 = vector.shape_cast %395 : vector<16xf32> to vector<1x16xf32>
    %397 = vector.broadcast %396 : vector<1x16xf32> to vector<16x16xf32>
    %398 = arith.mulf %393, %397 : vector<16x16xf32>
    %399 = arith.addf %391, %398 : vector<16x16xf32>
    %c2_226 = arith.constant 2 : index
    %c0_227 = arith.constant 0 : index
    %c0_228 = arith.constant 0 : index
    %400 = vector.load %arg16[%c2_226, %c0_227, %c0_228] : memref<10x24x16xf32, #tpu.memory_space<vmem>>, vector<1x16x16xf32>
    %401 = vector.shape_cast %400 : vector<1x16x16xf32> to vector<16x16xf32>
    %c3_229 = arith.constant 3 : index
    %c0_230 = arith.constant 0 : index
    %402 = vector.load %arg6[%c3_229, %c0_230] : memref<9x16xf32, #tpu.memory_space<vmem>>, vector<1x16xf32>
    %403 = vector.shape_cast %402 : vector<1x16xf32> to vector<16xf32>
    %404 = vector.shape_cast %403 : vector<16xf32> to vector<1x16xf32>
    %405 = vector.broadcast %404 : vector<1x16xf32> to vector<16x16xf32>
    %406 = arith.mulf %401, %405 : vector<16x16xf32>
    %407 = arith.addf %399, %406 : vector<16x16xf32>
    %c2_231 = arith.constant 2 : index
    %c1_232 = arith.constant 1 : index
    %c0_233 = arith.constant 0 : index
    %408 = vector.load %arg16[%c2_231, %c1_232, %c0_233] : memref<10x24x16xf32, #tpu.memory_space<vmem>>, vector<1x16x16xf32>
    %409 = vector.shape_cast %408 : vector<1x16x16xf32> to vector<16x16xf32>
    %c4_234 = arith.constant 4 : index
    %c0_235 = arith.constant 0 : index
    %410 = vector.load %arg6[%c4_234, %c0_235] : memref<9x16xf32, #tpu.memory_space<vmem>>, vector<1x16xf32>
    %411 = vector.shape_cast %410 : vector<1x16xf32> to vector<16xf32>
    %412 = vector.shape_cast %411 : vector<16xf32> to vector<1x16xf32>
    %413 = vector.broadcast %412 : vector<1x16xf32> to vector<16x16xf32>
    %414 = arith.mulf %409, %413 : vector<16x16xf32>
    %415 = arith.addf %407, %414 : vector<16x16xf32>
    %c2_236 = arith.constant 2 : index
    %c2_237 = arith.constant 2 : index
    %c0_238 = arith.constant 0 : index
    %416 = vector.load %arg16[%c2_236, %c2_237, %c0_238] : memref<10x24x16xf32, #tpu.memory_space<vmem>>, vector<1x16x16xf32>
    %417 = vector.shape_cast %416 : vector<1x16x16xf32> to vector<16x16xf32>
    %c5_239 = arith.constant 5 : index
    %c0_240 = arith.constant 0 : index
    %418 = vector.load %arg6[%c5_239, %c0_240] : memref<9x16xf32, #tpu.memory_space<vmem>>, vector<1x16xf32>
    %419 = vector.shape_cast %418 : vector<1x16xf32> to vector<16xf32>
    %420 = vector.shape_cast %419 : vector<16xf32> to vector<1x16xf32>
    %421 = vector.broadcast %420 : vector<1x16xf32> to vector<16x16xf32>
    %422 = arith.mulf %417, %421 : vector<16x16xf32>
    %423 = arith.addf %415, %422 : vector<16x16xf32>
    %c3_241 = arith.constant 3 : index
    %c0_242 = arith.constant 0 : index
    %c0_243 = arith.constant 0 : index
    %424 = vector.load %arg16[%c3_241, %c0_242, %c0_243] : memref<10x24x16xf32, #tpu.memory_space<vmem>>, vector<1x16x16xf32>
    %425 = vector.shape_cast %424 : vector<1x16x16xf32> to vector<16x16xf32>
    %c6_244 = arith.constant 6 : index
    %c0_245 = arith.constant 0 : index
    %426 = vector.load %arg6[%c6_244, %c0_245] : memref<9x16xf32, #tpu.memory_space<vmem>>, vector<1x16xf32>
    %427 = vector.shape_cast %426 : vector<1x16xf32> to vector<16xf32>
    %428 = vector.shape_cast %427 : vector<16xf32> to vector<1x16xf32>
    %429 = vector.broadcast %428 : vector<1x16xf32> to vector<16x16xf32>
    %430 = arith.mulf %425, %429 : vector<16x16xf32>
    %431 = arith.addf %423, %430 : vector<16x16xf32>
    %c3_246 = arith.constant 3 : index
    %c1_247 = arith.constant 1 : index
    %c0_248 = arith.constant 0 : index
    %432 = vector.load %arg16[%c3_246, %c1_247, %c0_248] : memref<10x24x16xf32, #tpu.memory_space<vmem>>, vector<1x16x16xf32>
    %433 = vector.shape_cast %432 : vector<1x16x16xf32> to vector<16x16xf32>
    %c7_249 = arith.constant 7 : index
    %c0_250 = arith.constant 0 : index
    %434 = vector.load %arg6[%c7_249, %c0_250] : memref<9x16xf32, #tpu.memory_space<vmem>>, vector<1x16xf32>
    %435 = vector.shape_cast %434 : vector<1x16xf32> to vector<16xf32>
    %436 = vector.shape_cast %435 : vector<16xf32> to vector<1x16xf32>
    %437 = vector.broadcast %436 : vector<1x16xf32> to vector<16x16xf32>
    %438 = arith.mulf %433, %437 : vector<16x16xf32>
    %439 = arith.addf %431, %438 : vector<16x16xf32>
    %c3_251 = arith.constant 3 : index
    %c2_252 = arith.constant 2 : index
    %c0_253 = arith.constant 0 : index
    %440 = vector.load %arg16[%c3_251, %c2_252, %c0_253] : memref<10x24x16xf32, #tpu.memory_space<vmem>>, vector<1x16x16xf32>
    %441 = vector.shape_cast %440 : vector<1x16x16xf32> to vector<16x16xf32>
    %c8_254 = arith.constant 8 : index
    %c0_255 = arith.constant 0 : index
    %442 = vector.load %arg6[%c8_254, %c0_255] : memref<9x16xf32, #tpu.memory_space<vmem>>, vector<1x16xf32>
    %443 = vector.shape_cast %442 : vector<1x16xf32> to vector<16xf32>
    %444 = vector.shape_cast %443 : vector<16xf32> to vector<1x16xf32>
    %445 = vector.broadcast %444 : vector<1x16xf32> to vector<16x16xf32>
    %446 = arith.mulf %441, %445 : vector<16x16xf32>
    %447 = arith.addf %439, %446 : vector<16x16xf32>
    %448 = vector.broadcast %270 : vector<1x16xf32> to vector<16x16xf32>
    %449 = arith.mulf %447, %448 : vector<16x16xf32>
    %450 = vector.broadcast %271 : vector<1x16xf32> to vector<16x16xf32>
    %451 = arith.addf %449, %450 : vector<16x16xf32>
    %cst_256 = arith.constant 0.000000e+00 : f32
    %452 = vector.broadcast %cst_256 : f32 to vector<16x16xf32>
    %453 = arith.maximumf %451, %452 : vector<16x16xf32>
    %cst_257 = arith.constant dense<0.000000e+00> : vector<16x8xf32>
    %454 = tpu.matmul %453, %272, %cst_257 {dimension_numbers = #tpu.dot_dimension_numbers<[1], [0], [0], [1], [0, 0, 1, 1], [], []>} : vector<16x16xf32>, vector<16x8xf32>, vector<16x8xf32> -> vector<16x8xf32>
    %455 = vector.broadcast %273 : vector<1x8xf32> to vector<16x8xf32>
    %456 = arith.mulf %454, %455 : vector<16x8xf32>
    %457 = vector.broadcast %274 : vector<1x8xf32> to vector<16x8xf32>
    %458 = arith.addf %456, %457 : vector<16x8xf32>
    %c2_258 = arith.constant 2 : index
    %c1_259 = arith.constant 1 : index
    %c0_260 = arith.constant 0 : index
    %459 = vector.load %arg17[%c2_258, %c1_259, %c0_260] : memref<10x24x4xf32, #tpu.memory_space<vmem>>, vector<1x16x4xf32>
    %460 = vector.shape_cast %459 : vector<1x16x4xf32> to vector<16x4xf32>
    %cst_261 = arith.constant dense<0.000000e+00> : vector<16x8xf32>
    %461 = tpu.matmul %460, %275, %cst_261 {dimension_numbers = #tpu.dot_dimension_numbers<[1], [0], [0], [1], [0, 0, 1, 1], [], []>} : vector<16x4xf32>, vector<4x8xf32>, vector<16x8xf32> -> vector<16x8xf32>
    %462 = vector.broadcast %276 : vector<1x8xf32> to vector<16x8xf32>
    %463 = arith.mulf %461, %462 : vector<16x8xf32>
    %464 = vector.broadcast %277 : vector<1x8xf32> to vector<16x8xf32>
    %465 = arith.addf %463, %464 : vector<16x8xf32>
    %466 = arith.addf %458, %465 : vector<16x8xf32>
    %cst_262 = arith.constant 0.000000e+00 : f32
    %467 = vector.broadcast %cst_262 : f32 to vector<16x8xf32>
    %468 = arith.maximumf %466, %467 : vector<16x8xf32>
    %c0_263 = arith.constant 0 : index
    %c1_264 = arith.constant 1 : index
    %c0_265 = arith.constant 0 : index
    %c0_266 = arith.constant 0 : index
    %469 = vector.load %arg15[%c0_263, %c1_264, %c0_265, %c0_266] : memref<1x8x16x8xf32, #tpu.memory_space<vmem>>, vector<1x1x16x8xf32>
    %470 = vector.shape_cast %469 : vector<1x1x16x8xf32> to vector<16x8xf32>
    %471 = vector.shape_cast %468 : vector<16x8xf32> to vector<1x1x16x8xf32>
    tpu.vector_store %arg15[%c0_263, %c1_264, %c0_265, %c0_266], %471 {strides = array<i32>} : memref<1x8x16x8xf32, #tpu.memory_space<vmem>>, vector<1x1x16x8xf32>,
    %cst_267 = arith.constant 0.000000e+00 : f32
    %472 = vector.broadcast %cst_267 : f32 to vector<16x16xf32>
    %c2_268 = arith.constant 2 : index
    %c0_269 = arith.constant 0 : index
    %c0_270 = arith.constant 0 : index
    %473 = vector.load %arg16[%c2_268, %c0_269, %c0_270] : memref<10x24x16xf32, #tpu.memory_space<vmem>>, vector<1x16x16xf32>
    %474 = vector.shape_cast %473 : vector<1x16x16xf32> to vector<16x16xf32>
    %c0_271 = arith.constant 0 : index
    %c0_272 = arith.constant 0 : index
    %475 = vector.load %arg6[%c0_271, %c0_272] : memref<9x16xf32, #tpu.memory_space<vmem>>, vector<1x16xf32>
    %476 = vector.shape_cast %475 : vector<1x16xf32> to vector<16xf32>
    %477 = vector.shape_cast %476 : vector<16xf32> to vector<1x16xf32>
    %478 = vector.broadcast %477 : vector<1x16xf32> to vector<16x16xf32>
    %479 = arith.mulf %474, %478 : vector<16x16xf32>
    %480 = arith.addf %472, %479 : vector<16x16xf32>
    %c2_273 = arith.constant 2 : index
    %c1_274 = arith.constant 1 : index
    %c0_275 = arith.constant 0 : index
    %481 = vector.load %arg16[%c2_273, %c1_274, %c0_275] : memref<10x24x16xf32, #tpu.memory_space<vmem>>, vector<1x16x16xf32>
    %482 = vector.shape_cast %481 : vector<1x16x16xf32> to vector<16x16xf32>
    %c1_276 = arith.constant 1 : index
    %c0_277 = arith.constant 0 : index
    %483 = vector.load %arg6[%c1_276, %c0_277] : memref<9x16xf32, #tpu.memory_space<vmem>>, vector<1x16xf32>
    %484 = vector.shape_cast %483 : vector<1x16xf32> to vector<16xf32>
    %485 = vector.shape_cast %484 : vector<16xf32> to vector<1x16xf32>
    %486 = vector.broadcast %485 : vector<1x16xf32> to vector<16x16xf32>
    %487 = arith.mulf %482, %486 : vector<16x16xf32>
    %488 = arith.addf %480, %487 : vector<16x16xf32>
    %c2_278 = arith.constant 2 : index
    %c2_279 = arith.constant 2 : index
    %c0_280 = arith.constant 0 : index
    %489 = vector.load %arg16[%c2_278, %c2_279, %c0_280] : memref<10x24x16xf32, #tpu.memory_space<vmem>>, vector<1x16x16xf32>
    %490 = vector.shape_cast %489 : vector<1x16x16xf32> to vector<16x16xf32>
    %c2_281 = arith.constant 2 : index
    %c0_282 = arith.constant 0 : index
    %491 = vector.load %arg6[%c2_281, %c0_282] : memref<9x16xf32, #tpu.memory_space<vmem>>, vector<1x16xf32>
    %492 = vector.shape_cast %491 : vector<1x16xf32> to vector<16xf32>
    %493 = vector.shape_cast %492 : vector<16xf32> to vector<1x16xf32>
    %494 = vector.broadcast %493 : vector<1x16xf32> to vector<16x16xf32>
    %495 = arith.mulf %490, %494 : vector<16x16xf32>
    %496 = arith.addf %488, %495 : vector<16x16xf32>
    %c3_283 = arith.constant 3 : index
    %c0_284 = arith.constant 0 : index
    %c0_285 = arith.constant 0 : index
    %497 = vector.load %arg16[%c3_283, %c0_284, %c0_285] : memref<10x24x16xf32, #tpu.memory_space<vmem>>, vector<1x16x16xf32>
    %498 = vector.shape_cast %497 : vector<1x16x16xf32> to vector<16x16xf32>
    %c3_286 = arith.constant 3 : index
    %c0_287 = arith.constant 0 : index
    %499 = vector.load %arg6[%c3_286, %c0_287] : memref<9x16xf32, #tpu.memory_space<vmem>>, vector<1x16xf32>
    %500 = vector.shape_cast %499 : vector<1x16xf32> to vector<16xf32>
    %501 = vector.shape_cast %500 : vector<16xf32> to vector<1x16xf32>
    %502 = vector.broadcast %501 : vector<1x16xf32> to vector<16x16xf32>
    %503 = arith.mulf %498, %502 : vector<16x16xf32>
    %504 = arith.addf %496, %503 : vector<16x16xf32>
    %c3_288 = arith.constant 3 : index
    %c1_289 = arith.constant 1 : index
    %c0_290 = arith.constant 0 : index
    %505 = vector.load %arg16[%c3_288, %c1_289, %c0_290] : memref<10x24x16xf32, #tpu.memory_space<vmem>>, vector<1x16x16xf32>
    %506 = vector.shape_cast %505 : vector<1x16x16xf32> to vector<16x16xf32>
    %c4_291 = arith.constant 4 : index
    %c0_292 = arith.constant 0 : index
    %507 = vector.load %arg6[%c4_291, %c0_292] : memref<9x16xf32, #tpu.memory_space<vmem>>, vector<1x16xf32>
    %508 = vector.shape_cast %507 : vector<1x16xf32> to vector<16xf32>
    %509 = vector.shape_cast %508 : vector<16xf32> to vector<1x16xf32>
    %510 = vector.broadcast %509 : vector<1x16xf32> to vector<16x16xf32>
    %511 = arith.mulf %506, %510 : vector<16x16xf32>
    %512 = arith.addf %504, %511 : vector<16x16xf32>
    %c3_293 = arith.constant 3 : index
    %c2_294 = arith.constant 2 : index
    %c0_295 = arith.constant 0 : index
    %513 = vector.load %arg16[%c3_293, %c2_294, %c0_295] : memref<10x24x16xf32, #tpu.memory_space<vmem>>, vector<1x16x16xf32>
    %514 = vector.shape_cast %513 : vector<1x16x16xf32> to vector<16x16xf32>
    %c5_296 = arith.constant 5 : index
    %c0_297 = arith.constant 0 : index
    %515 = vector.load %arg6[%c5_296, %c0_297] : memref<9x16xf32, #tpu.memory_space<vmem>>, vector<1x16xf32>
    %516 = vector.shape_cast %515 : vector<1x16xf32> to vector<16xf32>
    %517 = vector.shape_cast %516 : vector<16xf32> to vector<1x16xf32>
    %518 = vector.broadcast %517 : vector<1x16xf32> to vector<16x16xf32>
    %519 = arith.mulf %514, %518 : vector<16x16xf32>
    %520 = arith.addf %512, %519 : vector<16x16xf32>
    %c4_298 = arith.constant 4 : index
    %c0_299 = arith.constant 0 : index
    %c0_300 = arith.constant 0 : index
    %521 = vector.load %arg16[%c4_298, %c0_299, %c0_300] : memref<10x24x16xf32, #tpu.memory_space<vmem>>, vector<1x16x16xf32>
    %522 = vector.shape_cast %521 : vector<1x16x16xf32> to vector<16x16xf32>
    %c6_301 = arith.constant 6 : index
    %c0_302 = arith.constant 0 : index
    %523 = vector.load %arg6[%c6_301, %c0_302] : memref<9x16xf32, #tpu.memory_space<vmem>>, vector<1x16xf32>
    %524 = vector.shape_cast %523 : vector<1x16xf32> to vector<16xf32>
    %525 = vector.shape_cast %524 : vector<16xf32> to vector<1x16xf32>
    %526 = vector.broadcast %525 : vector<1x16xf32> to vector<16x16xf32>
    %527 = arith.mulf %522, %526 : vector<16x16xf32>
    %528 = arith.addf %520, %527 : vector<16x16xf32>
    %c4_303 = arith.constant 4 : index
    %c1_304 = arith.constant 1 : index
    %c0_305 = arith.constant 0 : index
    %529 = vector.load %arg16[%c4_303, %c1_304, %c0_305] : memref<10x24x16xf32, #tpu.memory_space<vmem>>, vector<1x16x16xf32>
    %530 = vector.shape_cast %529 : vector<1x16x16xf32> to vector<16x16xf32>
    %c7_306 = arith.constant 7 : index
    %c0_307 = arith.constant 0 : index
    %531 = vector.load %arg6[%c7_306, %c0_307] : memref<9x16xf32, #tpu.memory_space<vmem>>, vector<1x16xf32>
    %532 = vector.shape_cast %531 : vector<1x16xf32> to vector<16xf32>
    %533 = vector.shape_cast %532 : vector<16xf32> to vector<1x16xf32>
    %534 = vector.broadcast %533 : vector<1x16xf32> to vector<16x16xf32>
    %535 = arith.mulf %530, %534 : vector<16x16xf32>
    %536 = arith.addf %528, %535 : vector<16x16xf32>
    %c4_308 = arith.constant 4 : index
    %c2_309 = arith.constant 2 : index
    %c0_310 = arith.constant 0 : index
    %537 = vector.load %arg16[%c4_308, %c2_309, %c0_310] : memref<10x24x16xf32, #tpu.memory_space<vmem>>, vector<1x16x16xf32>
    %538 = vector.shape_cast %537 : vector<1x16x16xf32> to vector<16x16xf32>
    %c8_311 = arith.constant 8 : index
    %c0_312 = arith.constant 0 : index
    %539 = vector.load %arg6[%c8_311, %c0_312] : memref<9x16xf32, #tpu.memory_space<vmem>>, vector<1x16xf32>
    %540 = vector.shape_cast %539 : vector<1x16xf32> to vector<16xf32>
    %541 = vector.shape_cast %540 : vector<16xf32> to vector<1x16xf32>
    %542 = vector.broadcast %541 : vector<1x16xf32> to vector<16x16xf32>
    %543 = arith.mulf %538, %542 : vector<16x16xf32>
    %544 = arith.addf %536, %543 : vector<16x16xf32>
    %545 = vector.broadcast %270 : vector<1x16xf32> to vector<16x16xf32>
    %546 = arith.mulf %544, %545 : vector<16x16xf32>
    %547 = vector.broadcast %271 : vector<1x16xf32> to vector<16x16xf32>
    %548 = arith.addf %546, %547 : vector<16x16xf32>
    %cst_313 = arith.constant 0.000000e+00 : f32
    %549 = vector.broadcast %cst_313 : f32 to vector<16x16xf32>
    %550 = arith.maximumf %548, %549 : vector<16x16xf32>
    %cst_314 = arith.constant dense<0.000000e+00> : vector<16x8xf32>
    %551 = tpu.matmul %550, %272, %cst_314 {dimension_numbers = #tpu.dot_dimension_numbers<[1], [0], [0], [1], [0, 0, 1, 1], [], []>} : vector<16x16xf32>, vector<16x8xf32>, vector<16x8xf32> -> vector<16x8xf32>
    %552 = vector.broadcast %273 : vector<1x8xf32> to vector<16x8xf32>
    %553 = arith.mulf %551, %552 : vector<16x8xf32>
    %554 = vector.broadcast %274 : vector<1x8xf32> to vector<16x8xf32>
    %555 = arith.addf %553, %554 : vector<16x8xf32>
    %c3_315 = arith.constant 3 : index
    %c1_316 = arith.constant 1 : index
    %c0_317 = arith.constant 0 : index
    %556 = vector.load %arg17[%c3_315, %c1_316, %c0_317] : memref<10x24x4xf32, #tpu.memory_space<vmem>>, vector<1x16x4xf32>
    %557 = vector.shape_cast %556 : vector<1x16x4xf32> to vector<16x4xf32>
    %cst_318 = arith.constant dense<0.000000e+00> : vector<16x8xf32>
    %558 = tpu.matmul %557, %275, %cst_318 {dimension_numbers = #tpu.dot_dimension_numbers<[1], [0], [0], [1], [0, 0, 1, 1], [], []>} : vector<16x4xf32>, vector<4x8xf32>, vector<16x8xf32> -> vector<16x8xf32>
    %559 = vector.broadcast %276 : vector<1x8xf32> to vector<16x8xf32>
    %560 = arith.mulf %558, %559 : vector<16x8xf32>
    %561 = vector.broadcast %277 : vector<1x8xf32> to vector<16x8xf32>
    %562 = arith.addf %560, %561 : vector<16x8xf32>
    %563 = arith.addf %555, %562 : vector<16x8xf32>
    %cst_319 = arith.constant 0.000000e+00 : f32
    %564 = vector.broadcast %cst_319 : f32 to vector<16x8xf32>
    %565 = arith.maximumf %563, %564 : vector<16x8xf32>
    %c0_320 = arith.constant 0 : index
    %c2_321 = arith.constant 2 : index
    %c0_322 = arith.constant 0 : index
    %c0_323 = arith.constant 0 : index
    %566 = vector.load %arg15[%c0_320, %c2_321, %c0_322, %c0_323] : memref<1x8x16x8xf32, #tpu.memory_space<vmem>>, vector<1x1x16x8xf32>
    %567 = vector.shape_cast %566 : vector<1x1x16x8xf32> to vector<16x8xf32>
    %568 = vector.shape_cast %565 : vector<16x8xf32> to vector<1x1x16x8xf32>
    tpu.vector_store %arg15[%c0_320, %c2_321, %c0_322, %c0_323], %568 {strides = array<i32>} : memref<1x8x16x8xf32, #tpu.memory_space<vmem>>, vector<1x1x16x8xf32>,
    %cst_324 = arith.constant 0.000000e+00 : f32
    %569 = vector.broadcast %cst_324 : f32 to vector<16x16xf32>
    %c3_325 = arith.constant 3 : index
    %c0_326 = arith.constant 0 : index
    %c0_327 = arith.constant 0 : index
    %570 = vector.load %arg16[%c3_325, %c0_326, %c0_327] : memref<10x24x16xf32, #tpu.memory_space<vmem>>, vector<1x16x16xf32>
    %571 = vector.shape_cast %570 : vector<1x16x16xf32> to vector<16x16xf32>
    %c0_328 = arith.constant 0 : index
    %c0_329 = arith.constant 0 : index
    %572 = vector.load %arg6[%c0_328, %c0_329] : memref<9x16xf32, #tpu.memory_space<vmem>>, vector<1x16xf32>
    %573 = vector.shape_cast %572 : vector<1x16xf32> to vector<16xf32>
    %574 = vector.shape_cast %573 : vector<16xf32> to vector<1x16xf32>
    %575 = vector.broadcast %574 : vector<1x16xf32> to vector<16x16xf32>
    %576 = arith.mulf %571, %575 : vector<16x16xf32>
    %577 = arith.addf %569, %576 : vector<16x16xf32>
    %c3_330 = arith.constant 3 : index
    %c1_331 = arith.constant 1 : index
    %c0_332 = arith.constant 0 : index
    %578 = vector.load %arg16[%c3_330, %c1_331, %c0_332] : memref<10x24x16xf32, #tpu.memory_space<vmem>>, vector<1x16x16xf32>
    %579 = vector.shape_cast %578 : vector<1x16x16xf32> to vector<16x16xf32>
    %c1_333 = arith.constant 1 : index
    %c0_334 = arith.constant 0 : index
    %580 = vector.load %arg6[%c1_333, %c0_334] : memref<9x16xf32, #tpu.memory_space<vmem>>, vector<1x16xf32>
    %581 = vector.shape_cast %580 : vector<1x16xf32> to vector<16xf32>
    %582 = vector.shape_cast %581 : vector<16xf32> to vector<1x16xf32>
    %583 = vector.broadcast %582 : vector<1x16xf32> to vector<16x16xf32>
    %584 = arith.mulf %579, %583 : vector<16x16xf32>
    %585 = arith.addf %577, %584 : vector<16x16xf32>
    %c3_335 = arith.constant 3 : index
    %c2_336 = arith.constant 2 : index
    %c0_337 = arith.constant 0 : index
    %586 = vector.load %arg16[%c3_335, %c2_336, %c0_337] : memref<10x24x16xf32, #tpu.memory_space<vmem>>, vector<1x16x16xf32>
    %587 = vector.shape_cast %586 : vector<1x16x16xf32> to vector<16x16xf32>
    %c2_338 = arith.constant 2 : index
    %c0_339 = arith.constant 0 : index
    %588 = vector.load %arg6[%c2_338, %c0_339] : memref<9x16xf32, #tpu.memory_space<vmem>>, vector<1x16xf32>
    %589 = vector.shape_cast %588 : vector<1x16xf32> to vector<16xf32>
    %590 = vector.shape_cast %589 : vector<16xf32> to vector<1x16xf32>
    %591 = vector.broadcast %590 : vector<1x16xf32> to vector<16x16xf32>
    %592 = arith.mulf %587, %591 : vector<16x16xf32>
    %593 = arith.addf %585, %592 : vector<16x16xf32>
    %c4_340 = arith.constant 4 : index
    %c0_341 = arith.constant 0 : index
    %c0_342 = arith.constant 0 : index
    %594 = vector.load %arg16[%c4_340, %c0_341, %c0_342] : memref<10x24x16xf32, #tpu.memory_space<vmem>>, vector<1x16x16xf32>
    %595 = vector.shape_cast %594 : vector<1x16x16xf32> to vector<16x16xf32>
    %c3_343 = arith.constant 3 : index
    %c0_344 = arith.constant 0 : index
    %596 = vector.load %arg6[%c3_343, %c0_344] : memref<9x16xf32, #tpu.memory_space<vmem>>, vector<1x16xf32>
    %597 = vector.shape_cast %596 : vector<1x16xf32> to vector<16xf32>
    %598 = vector.shape_cast %597 : vector<16xf32> to vector<1x16xf32>
    %599 = vector.broadcast %598 : vector<1x16xf32> to vector<16x16xf32>
    %600 = arith.mulf %595, %599 : vector<16x16xf32>
    %601 = arith.addf %593, %600 : vector<16x16xf32>
    %c4_345 = arith.constant 4 : index
    %c1_346 = arith.constant 1 : index
    %c0_347 = arith.constant 0 : index
    %602 = vector.load %arg16[%c4_345, %c1_346, %c0_347] : memref<10x24x16xf32, #tpu.memory_space<vmem>>, vector<1x16x16xf32>
    %603 = vector.shape_cast %602 : vector<1x16x16xf32> to vector<16x16xf32>
    %c4_348 = arith.constant 4 : index
    %c0_349 = arith.constant 0 : index
    %604 = vector.load %arg6[%c4_348, %c0_349] : memref<9x16xf32, #tpu.memory_space<vmem>>, vector<1x16xf32>
    %605 = vector.shape_cast %604 : vector<1x16xf32> to vector<16xf32>
    %606 = vector.shape_cast %605 : vector<16xf32> to vector<1x16xf32>
    %607 = vector.broadcast %606 : vector<1x16xf32> to vector<16x16xf32>
    %608 = arith.mulf %603, %607 : vector<16x16xf32>
    %609 = arith.addf %601, %608 : vector<16x16xf32>
    %c4_350 = arith.constant 4 : index
    %c2_351 = arith.constant 2 : index
    %c0_352 = arith.constant 0 : index
    %610 = vector.load %arg16[%c4_350, %c2_351, %c0_352] : memref<10x24x16xf32, #tpu.memory_space<vmem>>, vector<1x16x16xf32>
    %611 = vector.shape_cast %610 : vector<1x16x16xf32> to vector<16x16xf32>
    %c5_353 = arith.constant 5 : index
    %c0_354 = arith.constant 0 : index
    %612 = vector.load %arg6[%c5_353, %c0_354] : memref<9x16xf32, #tpu.memory_space<vmem>>, vector<1x16xf32>
    %613 = vector.shape_cast %612 : vector<1x16xf32> to vector<16xf32>
    %614 = vector.shape_cast %613 : vector<16xf32> to vector<1x16xf32>
    %615 = vector.broadcast %614 : vector<1x16xf32> to vector<16x16xf32>
    %616 = arith.mulf %611, %615 : vector<16x16xf32>
    %617 = arith.addf %609, %616 : vector<16x16xf32>
    %c5_355 = arith.constant 5 : index
    %c0_356 = arith.constant 0 : index
    %c0_357 = arith.constant 0 : index
    %618 = vector.load %arg16[%c5_355, %c0_356, %c0_357] : memref<10x24x16xf32, #tpu.memory_space<vmem>>, vector<1x16x16xf32>
    %619 = vector.shape_cast %618 : vector<1x16x16xf32> to vector<16x16xf32>
    %c6_358 = arith.constant 6 : index
    %c0_359 = arith.constant 0 : index
    %620 = vector.load %arg6[%c6_358, %c0_359] : memref<9x16xf32, #tpu.memory_space<vmem>>, vector<1x16xf32>
    %621 = vector.shape_cast %620 : vector<1x16xf32> to vector<16xf32>
    %622 = vector.shape_cast %621 : vector<16xf32> to vector<1x16xf32>
    %623 = vector.broadcast %622 : vector<1x16xf32> to vector<16x16xf32>
    %624 = arith.mulf %619, %623 : vector<16x16xf32>
    %625 = arith.addf %617, %624 : vector<16x16xf32>
    %c5_360 = arith.constant 5 : index
    %c1_361 = arith.constant 1 : index
    %c0_362 = arith.constant 0 : index
    %626 = vector.load %arg16[%c5_360, %c1_361, %c0_362] : memref<10x24x16xf32, #tpu.memory_space<vmem>>, vector<1x16x16xf32>
    %627 = vector.shape_cast %626 : vector<1x16x16xf32> to vector<16x16xf32>
    %c7_363 = arith.constant 7 : index
    %c0_364 = arith.constant 0 : index
    %628 = vector.load %arg6[%c7_363, %c0_364] : memref<9x16xf32, #tpu.memory_space<vmem>>, vector<1x16xf32>
    %629 = vector.shape_cast %628 : vector<1x16xf32> to vector<16xf32>
    %630 = vector.shape_cast %629 : vector<16xf32> to vector<1x16xf32>
    %631 = vector.broadcast %630 : vector<1x16xf32> to vector<16x16xf32>
    %632 = arith.mulf %627, %631 : vector<16x16xf32>
    %633 = arith.addf %625, %632 : vector<16x16xf32>
    %c5_365 = arith.constant 5 : index
    %c2_366 = arith.constant 2 : index
    %c0_367 = arith.constant 0 : index
    %634 = vector.load %arg16[%c5_365, %c2_366, %c0_367] : memref<10x24x16xf32, #tpu.memory_space<vmem>>, vector<1x16x16xf32>
    %635 = vector.shape_cast %634 : vector<1x16x16xf32> to vector<16x16xf32>
    %c8_368 = arith.constant 8 : index
    %c0_369 = arith.constant 0 : index
    %636 = vector.load %arg6[%c8_368, %c0_369] : memref<9x16xf32, #tpu.memory_space<vmem>>, vector<1x16xf32>
    %637 = vector.shape_cast %636 : vector<1x16xf32> to vector<16xf32>
    %638 = vector.shape_cast %637 : vector<16xf32> to vector<1x16xf32>
    %639 = vector.broadcast %638 : vector<1x16xf32> to vector<16x16xf32>
    %640 = arith.mulf %635, %639 : vector<16x16xf32>
    %641 = arith.addf %633, %640 : vector<16x16xf32>
    %642 = vector.broadcast %270 : vector<1x16xf32> to vector<16x16xf32>
    %643 = arith.mulf %641, %642 : vector<16x16xf32>
    %644 = vector.broadcast %271 : vector<1x16xf32> to vector<16x16xf32>
    %645 = arith.addf %643, %644 : vector<16x16xf32>
    %cst_370 = arith.constant 0.000000e+00 : f32
    %646 = vector.broadcast %cst_370 : f32 to vector<16x16xf32>
    %647 = arith.maximumf %645, %646 : vector<16x16xf32>
    %cst_371 = arith.constant dense<0.000000e+00> : vector<16x8xf32>
    %648 = tpu.matmul %647, %272, %cst_371 {dimension_numbers = #tpu.dot_dimension_numbers<[1], [0], [0], [1], [0, 0, 1, 1], [], []>} : vector<16x16xf32>, vector<16x8xf32>, vector<16x8xf32> -> vector<16x8xf32>
    %649 = vector.broadcast %273 : vector<1x8xf32> to vector<16x8xf32>
    %650 = arith.mulf %648, %649 : vector<16x8xf32>
    %651 = vector.broadcast %274 : vector<1x8xf32> to vector<16x8xf32>
    %652 = arith.addf %650, %651 : vector<16x8xf32>
    %c4_372 = arith.constant 4 : index
    %c1_373 = arith.constant 1 : index
    %c0_374 = arith.constant 0 : index
    %653 = vector.load %arg17[%c4_372, %c1_373, %c0_374] : memref<10x24x4xf32, #tpu.memory_space<vmem>>, vector<1x16x4xf32>
    %654 = vector.shape_cast %653 : vector<1x16x4xf32> to vector<16x4xf32>
    %cst_375 = arith.constant dense<0.000000e+00> : vector<16x8xf32>
    %655 = tpu.matmul %654, %275, %cst_375 {dimension_numbers = #tpu.dot_dimension_numbers<[1], [0], [0], [1], [0, 0, 1, 1], [], []>} : vector<16x4xf32>, vector<4x8xf32>, vector<16x8xf32> -> vector<16x8xf32>
    %656 = vector.broadcast %276 : vector<1x8xf32> to vector<16x8xf32>
    %657 = arith.mulf %655, %656 : vector<16x8xf32>
    %658 = vector.broadcast %277 : vector<1x8xf32> to vector<16x8xf32>
    %659 = arith.addf %657, %658 : vector<16x8xf32>
    %660 = arith.addf %652, %659 : vector<16x8xf32>
    %cst_376 = arith.constant 0.000000e+00 : f32
    %661 = vector.broadcast %cst_376 : f32 to vector<16x8xf32>
    %662 = arith.maximumf %660, %661 : vector<16x8xf32>
    %c0_377 = arith.constant 0 : index
    %c3_378 = arith.constant 3 : index
    %c0_379 = arith.constant 0 : index
    %c0_380 = arith.constant 0 : index
    %663 = vector.load %arg15[%c0_377, %c3_378, %c0_379, %c0_380] : memref<1x8x16x8xf32, #tpu.memory_space<vmem>>, vector<1x1x16x8xf32>
    %664 = vector.shape_cast %663 : vector<1x1x16x8xf32> to vector<16x8xf32>
    %665 = vector.shape_cast %662 : vector<16x8xf32> to vector<1x1x16x8xf32>
    tpu.vector_store %arg15[%c0_377, %c3_378, %c0_379, %c0_380], %665 {strides = array<i32>} : memref<1x8x16x8xf32, #tpu.memory_space<vmem>>, vector<1x1x16x8xf32>,
    %cst_381 = arith.constant 0.000000e+00 : f32
    %666 = vector.broadcast %cst_381 : f32 to vector<16x16xf32>
    %c4_382 = arith.constant 4 : index
    %c0_383 = arith.constant 0 : index
    %c0_384 = arith.constant 0 : index
    %667 = vector.load %arg16[%c4_382, %c0_383, %c0_384] : memref<10x24x16xf32, #tpu.memory_space<vmem>>, vector<1x16x16xf32>
    %668 = vector.shape_cast %667 : vector<1x16x16xf32> to vector<16x16xf32>
    %c0_385 = arith.constant 0 : index
    %c0_386 = arith.constant 0 : index
    %669 = vector.load %arg6[%c0_385, %c0_386] : memref<9x16xf32, #tpu.memory_space<vmem>>, vector<1x16xf32>
    %670 = vector.shape_cast %669 : vector<1x16xf32> to vector<16xf32>
    %671 = vector.shape_cast %670 : vector<16xf32> to vector<1x16xf32>
    %672 = vector.broadcast %671 : vector<1x16xf32> to vector<16x16xf32>
    %673 = arith.mulf %668, %672 : vector<16x16xf32>
    %674 = arith.addf %666, %673 : vector<16x16xf32>
    %c4_387 = arith.constant 4 : index
    %c1_388 = arith.constant 1 : index
    %c0_389 = arith.constant 0 : index
    %675 = vector.load %arg16[%c4_387, %c1_388, %c0_389] : memref<10x24x16xf32, #tpu.memory_space<vmem>>, vector<1x16x16xf32>
    %676 = vector.shape_cast %675 : vector<1x16x16xf32> to vector<16x16xf32>
    %c1_390 = arith.constant 1 : index
    %c0_391 = arith.constant 0 : index
    %677 = vector.load %arg6[%c1_390, %c0_391] : memref<9x16xf32, #tpu.memory_space<vmem>>, vector<1x16xf32>
    %678 = vector.shape_cast %677 : vector<1x16xf32> to vector<16xf32>
    %679 = vector.shape_cast %678 : vector<16xf32> to vector<1x16xf32>
    %680 = vector.broadcast %679 : vector<1x16xf32> to vector<16x16xf32>
    %681 = arith.mulf %676, %680 : vector<16x16xf32>
    %682 = arith.addf %674, %681 : vector<16x16xf32>
    %c4_392 = arith.constant 4 : index
    %c2_393 = arith.constant 2 : index
    %c0_394 = arith.constant 0 : index
    %683 = vector.load %arg16[%c4_392, %c2_393, %c0_394] : memref<10x24x16xf32, #tpu.memory_space<vmem>>, vector<1x16x16xf32>
    %684 = vector.shape_cast %683 : vector<1x16x16xf32> to vector<16x16xf32>
    %c2_395 = arith.constant 2 : index
    %c0_396 = arith.constant 0 : index
    %685 = vector.load %arg6[%c2_395, %c0_396] : memref<9x16xf32, #tpu.memory_space<vmem>>, vector<1x16xf32>
    %686 = vector.shape_cast %685 : vector<1x16xf32> to vector<16xf32>
    %687 = vector.shape_cast %686 : vector<16xf32> to vector<1x16xf32>
    %688 = vector.broadcast %687 : vector<1x16xf32> to vector<16x16xf32>
    %689 = arith.mulf %684, %688 : vector<16x16xf32>
    %690 = arith.addf %682, %689 : vector<16x16xf32>
    %c5_397 = arith.constant 5 : index
    %c0_398 = arith.constant 0 : index
    %c0_399 = arith.constant 0 : index
    %691 = vector.load %arg16[%c5_397, %c0_398, %c0_399] : memref<10x24x16xf32, #tpu.memory_space<vmem>>, vector<1x16x16xf32>
    %692 = vector.shape_cast %691 : vector<1x16x16xf32> to vector<16x16xf32>
    %c3_400 = arith.constant 3 : index
    %c0_401 = arith.constant 0 : index
    %693 = vector.load %arg6[%c3_400, %c0_401] : memref<9x16xf32, #tpu.memory_space<vmem>>, vector<1x16xf32>
    %694 = vector.shape_cast %693 : vector<1x16xf32> to vector<16xf32>
    %695 = vector.shape_cast %694 : vector<16xf32> to vector<1x16xf32>
    %696 = vector.broadcast %695 : vector<1x16xf32> to vector<16x16xf32>
    %697 = arith.mulf %692, %696 : vector<16x16xf32>
    %698 = arith.addf %690, %697 : vector<16x16xf32>
    %c5_402 = arith.constant 5 : index
    %c1_403 = arith.constant 1 : index
    %c0_404 = arith.constant 0 : index
    %699 = vector.load %arg16[%c5_402, %c1_403, %c0_404] : memref<10x24x16xf32, #tpu.memory_space<vmem>>, vector<1x16x16xf32>
    %700 = vector.shape_cast %699 : vector<1x16x16xf32> to vector<16x16xf32>
    %c4_405 = arith.constant 4 : index
    %c0_406 = arith.constant 0 : index
    %701 = vector.load %arg6[%c4_405, %c0_406] : memref<9x16xf32, #tpu.memory_space<vmem>>, vector<1x16xf32>
    %702 = vector.shape_cast %701 : vector<1x16xf32> to vector<16xf32>
    %703 = vector.shape_cast %702 : vector<16xf32> to vector<1x16xf32>
    %704 = vector.broadcast %703 : vector<1x16xf32> to vector<16x16xf32>
    %705 = arith.mulf %700, %704 : vector<16x16xf32>
    %706 = arith.addf %698, %705 : vector<16x16xf32>
    %c5_407 = arith.constant 5 : index
    %c2_408 = arith.constant 2 : index
    %c0_409 = arith.constant 0 : index
    %707 = vector.load %arg16[%c5_407, %c2_408, %c0_409] : memref<10x24x16xf32, #tpu.memory_space<vmem>>, vector<1x16x16xf32>
    %708 = vector.shape_cast %707 : vector<1x16x16xf32> to vector<16x16xf32>
    %c5_410 = arith.constant 5 : index
    %c0_411 = arith.constant 0 : index
    %709 = vector.load %arg6[%c5_410, %c0_411] : memref<9x16xf32, #tpu.memory_space<vmem>>, vector<1x16xf32>
    %710 = vector.shape_cast %709 : vector<1x16xf32> to vector<16xf32>
    %711 = vector.shape_cast %710 : vector<16xf32> to vector<1x16xf32>
    %712 = vector.broadcast %711 : vector<1x16xf32> to vector<16x16xf32>
    %713 = arith.mulf %708, %712 : vector<16x16xf32>
    %714 = arith.addf %706, %713 : vector<16x16xf32>
    %c6_412 = arith.constant 6 : index
    %c0_413 = arith.constant 0 : index
    %c0_414 = arith.constant 0 : index
    %715 = vector.load %arg16[%c6_412, %c0_413, %c0_414] : memref<10x24x16xf32, #tpu.memory_space<vmem>>, vector<1x16x16xf32>
    %716 = vector.shape_cast %715 : vector<1x16x16xf32> to vector<16x16xf32>
    %c6_415 = arith.constant 6 : index
    %c0_416 = arith.constant 0 : index
    %717 = vector.load %arg6[%c6_415, %c0_416] : memref<9x16xf32, #tpu.memory_space<vmem>>, vector<1x16xf32>
    %718 = vector.shape_cast %717 : vector<1x16xf32> to vector<16xf32>
    %719 = vector.shape_cast %718 : vector<16xf32> to vector<1x16xf32>
    %720 = vector.broadcast %719 : vector<1x16xf32> to vector<16x16xf32>
    %721 = arith.mulf %716, %720 : vector<16x16xf32>
    %722 = arith.addf %714, %721 : vector<16x16xf32>
    %c6_417 = arith.constant 6 : index
    %c1_418 = arith.constant 1 : index
    %c0_419 = arith.constant 0 : index
    %723 = vector.load %arg16[%c6_417, %c1_418, %c0_419] : memref<10x24x16xf32, #tpu.memory_space<vmem>>, vector<1x16x16xf32>
    %724 = vector.shape_cast %723 : vector<1x16x16xf32> to vector<16x16xf32>
    %c7_420 = arith.constant 7 : index
    %c0_421 = arith.constant 0 : index
    %725 = vector.load %arg6[%c7_420, %c0_421] : memref<9x16xf32, #tpu.memory_space<vmem>>, vector<1x16xf32>
    %726 = vector.shape_cast %725 : vector<1x16xf32> to vector<16xf32>
    %727 = vector.shape_cast %726 : vector<16xf32> to vector<1x16xf32>
    %728 = vector.broadcast %727 : vector<1x16xf32> to vector<16x16xf32>
    %729 = arith.mulf %724, %728 : vector<16x16xf32>
    %730 = arith.addf %722, %729 : vector<16x16xf32>
    %c6_422 = arith.constant 6 : index
    %c2_423 = arith.constant 2 : index
    %c0_424 = arith.constant 0 : index
    %731 = vector.load %arg16[%c6_422, %c2_423, %c0_424] : memref<10x24x16xf32, #tpu.memory_space<vmem>>, vector<1x16x16xf32>
    %732 = vector.shape_cast %731 : vector<1x16x16xf32> to vector<16x16xf32>
    %c8_425 = arith.constant 8 : index
    %c0_426 = arith.constant 0 : index
    %733 = vector.load %arg6[%c8_425, %c0_426] : memref<9x16xf32, #tpu.memory_space<vmem>>, vector<1x16xf32>
    %734 = vector.shape_cast %733 : vector<1x16xf32> to vector<16xf32>
    %735 = vector.shape_cast %734 : vector<16xf32> to vector<1x16xf32>
    %736 = vector.broadcast %735 : vector<1x16xf32> to vector<16x16xf32>
    %737 = arith.mulf %732, %736 : vector<16x16xf32>
    %738 = arith.addf %730, %737 : vector<16x16xf32>
    %739 = vector.broadcast %270 : vector<1x16xf32> to vector<16x16xf32>
    %740 = arith.mulf %738, %739 : vector<16x16xf32>
    %741 = vector.broadcast %271 : vector<1x16xf32> to vector<16x16xf32>
    %742 = arith.addf %740, %741 : vector<16x16xf32>
    %cst_427 = arith.constant 0.000000e+00 : f32
    %743 = vector.broadcast %cst_427 : f32 to vector<16x16xf32>
    %744 = arith.maximumf %742, %743 : vector<16x16xf32>
    %cst_428 = arith.constant dense<0.000000e+00> : vector<16x8xf32>
    %745 = tpu.matmul %744, %272, %cst_428 {dimension_numbers = #tpu.dot_dimension_numbers<[1], [0], [0], [1], [0, 0, 1, 1], [], []>} : vector<16x16xf32>, vector<16x8xf32>, vector<16x8xf32> -> vector<16x8xf32>
    %746 = vector.broadcast %273 : vector<1x8xf32> to vector<16x8xf32>
    %747 = arith.mulf %745, %746 : vector<16x8xf32>
    %748 = vector.broadcast %274 : vector<1x8xf32> to vector<16x8xf32>
    %749 = arith.addf %747, %748 : vector<16x8xf32>
    %c5_429 = arith.constant 5 : index
    %c1_430 = arith.constant 1 : index
    %c0_431 = arith.constant 0 : index
    %750 = vector.load %arg17[%c5_429, %c1_430, %c0_431] : memref<10x24x4xf32, #tpu.memory_space<vmem>>, vector<1x16x4xf32>
    %751 = vector.shape_cast %750 : vector<1x16x4xf32> to vector<16x4xf32>
    %cst_432 = arith.constant dense<0.000000e+00> : vector<16x8xf32>
    %752 = tpu.matmul %751, %275, %cst_432 {dimension_numbers = #tpu.dot_dimension_numbers<[1], [0], [0], [1], [0, 0, 1, 1], [], []>} : vector<16x4xf32>, vector<4x8xf32>, vector<16x8xf32> -> vector<16x8xf32>
    %753 = vector.broadcast %276 : vector<1x8xf32> to vector<16x8xf32>
    %754 = arith.mulf %752, %753 : vector<16x8xf32>
    %755 = vector.broadcast %277 : vector<1x8xf32> to vector<16x8xf32>
    %756 = arith.addf %754, %755 : vector<16x8xf32>
    %757 = arith.addf %749, %756 : vector<16x8xf32>
    %cst_433 = arith.constant 0.000000e+00 : f32
    %758 = vector.broadcast %cst_433 : f32 to vector<16x8xf32>
    %759 = arith.maximumf %757, %758 : vector<16x8xf32>
    %c0_434 = arith.constant 0 : index
    %c4_435 = arith.constant 4 : index
    %c0_436 = arith.constant 0 : index
    %c0_437 = arith.constant 0 : index
    %760 = vector.load %arg15[%c0_434, %c4_435, %c0_436, %c0_437] : memref<1x8x16x8xf32, #tpu.memory_space<vmem>>, vector<1x1x16x8xf32>
    %761 = vector.shape_cast %760 : vector<1x1x16x8xf32> to vector<16x8xf32>
    %762 = vector.shape_cast %759 : vector<16x8xf32> to vector<1x1x16x8xf32>
    tpu.vector_store %arg15[%c0_434, %c4_435, %c0_436, %c0_437], %762 {strides = array<i32>} : memref<1x8x16x8xf32, #tpu.memory_space<vmem>>, vector<1x1x16x8xf32>,
    %cst_438 = arith.constant 0.000000e+00 : f32
    %763 = vector.broadcast %cst_438 : f32 to vector<16x16xf32>
    %c5_439 = arith.constant 5 : index
    %c0_440 = arith.constant 0 : index
    %c0_441 = arith.constant 0 : index
    %764 = vector.load %arg16[%c5_439, %c0_440, %c0_441] : memref<10x24x16xf32, #tpu.memory_space<vmem>>, vector<1x16x16xf32>
    %765 = vector.shape_cast %764 : vector<1x16x16xf32> to vector<16x16xf32>
    %c0_442 = arith.constant 0 : index
    %c0_443 = arith.constant 0 : index
    %766 = vector.load %arg6[%c0_442, %c0_443] : memref<9x16xf32, #tpu.memory_space<vmem>>, vector<1x16xf32>
    %767 = vector.shape_cast %766 : vector<1x16xf32> to vector<16xf32>
    %768 = vector.shape_cast %767 : vector<16xf32> to vector<1x16xf32>
    %769 = vector.broadcast %768 : vector<1x16xf32> to vector<16x16xf32>
    %770 = arith.mulf %765, %769 : vector<16x16xf32>
    %771 = arith.addf %763, %770 : vector<16x16xf32>
    %c5_444 = arith.constant 5 : index
    %c1_445 = arith.constant 1 : index
    %c0_446 = arith.constant 0 : index
    %772 = vector.load %arg16[%c5_444, %c1_445, %c0_446] : memref<10x24x16xf32, #tpu.memory_space<vmem>>, vector<1x16x16xf32>
    %773 = vector.shape_cast %772 : vector<1x16x16xf32> to vector<16x16xf32>
    %c1_447 = arith.constant 1 : index
    %c0_448 = arith.constant 0 : index
    %774 = vector.load %arg6[%c1_447, %c0_448] : memref<9x16xf32, #tpu.memory_space<vmem>>, vector<1x16xf32>
    %775 = vector.shape_cast %774 : vector<1x16xf32> to vector<16xf32>
    %776 = vector.shape_cast %775 : vector<16xf32> to vector<1x16xf32>
    %777 = vector.broadcast %776 : vector<1x16xf32> to vector<16x16xf32>
    %778 = arith.mulf %773, %777 : vector<16x16xf32>
    %779 = arith.addf %771, %778 : vector<16x16xf32>
    %c5_449 = arith.constant 5 : index
    %c2_450 = arith.constant 2 : index
    %c0_451 = arith.constant 0 : index
    %780 = vector.load %arg16[%c5_449, %c2_450, %c0_451] : memref<10x24x16xf32, #tpu.memory_space<vmem>>, vector<1x16x16xf32>
    %781 = vector.shape_cast %780 : vector<1x16x16xf32> to vector<16x16xf32>
    %c2_452 = arith.constant 2 : index
    %c0_453 = arith.constant 0 : index
    %782 = vector.load %arg6[%c2_452, %c0_453] : memref<9x16xf32, #tpu.memory_space<vmem>>, vector<1x16xf32>
    %783 = vector.shape_cast %782 : vector<1x16xf32> to vector<16xf32>
    %784 = vector.shape_cast %783 : vector<16xf32> to vector<1x16xf32>
    %785 = vector.broadcast %784 : vector<1x16xf32> to vector<16x16xf32>
    %786 = arith.mulf %781, %785 : vector<16x16xf32>
    %787 = arith.addf %779, %786 : vector<16x16xf32>
    %c6_454 = arith.constant 6 : index
    %c0_455 = arith.constant 0 : index
    %c0_456 = arith.constant 0 : index
    %788 = vector.load %arg16[%c6_454, %c0_455, %c0_456] : memref<10x24x16xf32, #tpu.memory_space<vmem>>, vector<1x16x16xf32>
    %789 = vector.shape_cast %788 : vector<1x16x16xf32> to vector<16x16xf32>
    %c3_457 = arith.constant 3 : index
    %c0_458 = arith.constant 0 : index
    %790 = vector.load %arg6[%c3_457, %c0_458] : memref<9x16xf32, #tpu.memory_space<vmem>>, vector<1x16xf32>
    %791 = vector.shape_cast %790 : vector<1x16xf32> to vector<16xf32>
    %792 = vector.shape_cast %791 : vector<16xf32> to vector<1x16xf32>
    %793 = vector.broadcast %792 : vector<1x16xf32> to vector<16x16xf32>
    %794 = arith.mulf %789, %793 : vector<16x16xf32>
    %795 = arith.addf %787, %794 : vector<16x16xf32>
    %c6_459 = arith.constant 6 : index
    %c1_460 = arith.constant 1 : index
    %c0_461 = arith.constant 0 : index
    %796 = vector.load %arg16[%c6_459, %c1_460, %c0_461] : memref<10x24x16xf32, #tpu.memory_space<vmem>>, vector<1x16x16xf32>
    %797 = vector.shape_cast %796 : vector<1x16x16xf32> to vector<16x16xf32>
    %c4_462 = arith.constant 4 : index
    %c0_463 = arith.constant 0 : index
    %798 = vector.load %arg6[%c4_462, %c0_463] : memref<9x16xf32, #tpu.memory_space<vmem>>, vector<1x16xf32>
    %799 = vector.shape_cast %798 : vector<1x16xf32> to vector<16xf32>
    %800 = vector.shape_cast %799 : vector<16xf32> to vector<1x16xf32>
    %801 = vector.broadcast %800 : vector<1x16xf32> to vector<16x16xf32>
    %802 = arith.mulf %797, %801 : vector<16x16xf32>
    %803 = arith.addf %795, %802 : vector<16x16xf32>
    %c6_464 = arith.constant 6 : index
    %c2_465 = arith.constant 2 : index
    %c0_466 = arith.constant 0 : index
    %804 = vector.load %arg16[%c6_464, %c2_465, %c0_466] : memref<10x24x16xf32, #tpu.memory_space<vmem>>, vector<1x16x16xf32>
    %805 = vector.shape_cast %804 : vector<1x16x16xf32> to vector<16x16xf32>
    %c5_467 = arith.constant 5 : index
    %c0_468 = arith.constant 0 : index
    %806 = vector.load %arg6[%c5_467, %c0_468] : memref<9x16xf32, #tpu.memory_space<vmem>>, vector<1x16xf32>
    %807 = vector.shape_cast %806 : vector<1x16xf32> to vector<16xf32>
    %808 = vector.shape_cast %807 : vector<16xf32> to vector<1x16xf32>
    %809 = vector.broadcast %808 : vector<1x16xf32> to vector<16x16xf32>
    %810 = arith.mulf %805, %809 : vector<16x16xf32>
    %811 = arith.addf %803, %810 : vector<16x16xf32>
    %c7_469 = arith.constant 7 : index
    %c0_470 = arith.constant 0 : index
    %c0_471 = arith.constant 0 : index
    %812 = vector.load %arg16[%c7_469, %c0_470, %c0_471] : memref<10x24x16xf32, #tpu.memory_space<vmem>>, vector<1x16x16xf32>
    %813 = vector.shape_cast %812 : vector<1x16x16xf32> to vector<16x16xf32>
    %c6_472 = arith.constant 6 : index
    %c0_473 = arith.constant 0 : index
    %814 = vector.load %arg6[%c6_472, %c0_473] : memref<9x16xf32, #tpu.memory_space<vmem>>, vector<1x16xf32>
    %815 = vector.shape_cast %814 : vector<1x16xf32> to vector<16xf32>
    %816 = vector.shape_cast %815 : vector<16xf32> to vector<1x16xf32>
    %817 = vector.broadcast %816 : vector<1x16xf32> to vector<16x16xf32>
    %818 = arith.mulf %813, %817 : vector<16x16xf32>
    %819 = arith.addf %811, %818 : vector<16x16xf32>
    %c7_474 = arith.constant 7 : index
    %c1_475 = arith.constant 1 : index
    %c0_476 = arith.constant 0 : index
    %820 = vector.load %arg16[%c7_474, %c1_475, %c0_476] : memref<10x24x16xf32, #tpu.memory_space<vmem>>, vector<1x16x16xf32>
    %821 = vector.shape_cast %820 : vector<1x16x16xf32> to vector<16x16xf32>
    %c7_477 = arith.constant 7 : index
    %c0_478 = arith.constant 0 : index
    %822 = vector.load %arg6[%c7_477, %c0_478] : memref<9x16xf32, #tpu.memory_space<vmem>>, vector<1x16xf32>
    %823 = vector.shape_cast %822 : vector<1x16xf32> to vector<16xf32>
    %824 = vector.shape_cast %823 : vector<16xf32> to vector<1x16xf32>
    %825 = vector.broadcast %824 : vector<1x16xf32> to vector<16x16xf32>
    %826 = arith.mulf %821, %825 : vector<16x16xf32>
    %827 = arith.addf %819, %826 : vector<16x16xf32>
    %c7_479 = arith.constant 7 : index
    %c2_480 = arith.constant 2 : index
    %c0_481 = arith.constant 0 : index
    %828 = vector.load %arg16[%c7_479, %c2_480, %c0_481] : memref<10x24x16xf32, #tpu.memory_space<vmem>>, vector<1x16x16xf32>
    %829 = vector.shape_cast %828 : vector<1x16x16xf32> to vector<16x16xf32>
    %c8_482 = arith.constant 8 : index
    %c0_483 = arith.constant 0 : index
    %830 = vector.load %arg6[%c8_482, %c0_483] : memref<9x16xf32, #tpu.memory_space<vmem>>, vector<1x16xf32>
    %831 = vector.shape_cast %830 : vector<1x16xf32> to vector<16xf32>
    %832 = vector.shape_cast %831 : vector<16xf32> to vector<1x16xf32>
    %833 = vector.broadcast %832 : vector<1x16xf32> to vector<16x16xf32>
    %834 = arith.mulf %829, %833 : vector<16x16xf32>
    %835 = arith.addf %827, %834 : vector<16x16xf32>
    %836 = vector.broadcast %270 : vector<1x16xf32> to vector<16x16xf32>
    %837 = arith.mulf %835, %836 : vector<16x16xf32>
    %838 = vector.broadcast %271 : vector<1x16xf32> to vector<16x16xf32>
    %839 = arith.addf %837, %838 : vector<16x16xf32>
    %cst_484 = arith.constant 0.000000e+00 : f32
    %840 = vector.broadcast %cst_484 : f32 to vector<16x16xf32>
    %841 = arith.maximumf %839, %840 : vector<16x16xf32>
    %cst_485 = arith.constant dense<0.000000e+00> : vector<16x8xf32>
    %842 = tpu.matmul %841, %272, %cst_485 {dimension_numbers = #tpu.dot_dimension_numbers<[1], [0], [0], [1], [0, 0, 1, 1], [], []>} : vector<16x16xf32>, vector<16x8xf32>, vector<16x8xf32> -> vector<16x8xf32>
    %843 = vector.broadcast %273 : vector<1x8xf32> to vector<16x8xf32>
    %844 = arith.mulf %842, %843 : vector<16x8xf32>
    %845 = vector.broadcast %274 : vector<1x8xf32> to vector<16x8xf32>
    %846 = arith.addf %844, %845 : vector<16x8xf32>
    %c6_486 = arith.constant 6 : index
    %c1_487 = arith.constant 1 : index
    %c0_488 = arith.constant 0 : index
    %847 = vector.load %arg17[%c6_486, %c1_487, %c0_488] : memref<10x24x4xf32, #tpu.memory_space<vmem>>, vector<1x16x4xf32>
    %848 = vector.shape_cast %847 : vector<1x16x4xf32> to vector<16x4xf32>
    %cst_489 = arith.constant dense<0.000000e+00> : vector<16x8xf32>
    %849 = tpu.matmul %848, %275, %cst_489 {dimension_numbers = #tpu.dot_dimension_numbers<[1], [0], [0], [1], [0, 0, 1, 1], [], []>} : vector<16x4xf32>, vector<4x8xf32>, vector<16x8xf32> -> vector<16x8xf32>
    %850 = vector.broadcast %276 : vector<1x8xf32> to vector<16x8xf32>
    %851 = arith.mulf %849, %850 : vector<16x8xf32>
    %852 = vector.broadcast %277 : vector<1x8xf32> to vector<16x8xf32>
    %853 = arith.addf %851, %852 : vector<16x8xf32>
    %854 = arith.addf %846, %853 : vector<16x8xf32>
    %cst_490 = arith.constant 0.000000e+00 : f32
    %855 = vector.broadcast %cst_490 : f32 to vector<16x8xf32>
    %856 = arith.maximumf %854, %855 : vector<16x8xf32>
    %c0_491 = arith.constant 0 : index
    %c5_492 = arith.constant 5 : index
    %c0_493 = arith.constant 0 : index
    %c0_494 = arith.constant 0 : index
    %857 = vector.load %arg15[%c0_491, %c5_492, %c0_493, %c0_494] : memref<1x8x16x8xf32, #tpu.memory_space<vmem>>, vector<1x1x16x8xf32>
    %858 = vector.shape_cast %857 : vector<1x1x16x8xf32> to vector<16x8xf32>
    %859 = vector.shape_cast %856 : vector<16x8xf32> to vector<1x1x16x8xf32>
    tpu.vector_store %arg15[%c0_491, %c5_492, %c0_493, %c0_494], %859 {strides = array<i32>} : memref<1x8x16x8xf32, #tpu.memory_space<vmem>>, vector<1x1x16x8xf32>,
    %cst_495 = arith.constant 0.000000e+00 : f32
    %860 = vector.broadcast %cst_495 : f32 to vector<16x16xf32>
    %c6_496 = arith.constant 6 : index
    %c0_497 = arith.constant 0 : index
    %c0_498 = arith.constant 0 : index
    %861 = vector.load %arg16[%c6_496, %c0_497, %c0_498] : memref<10x24x16xf32, #tpu.memory_space<vmem>>, vector<1x16x16xf32>
    %862 = vector.shape_cast %861 : vector<1x16x16xf32> to vector<16x16xf32>
    %c0_499 = arith.constant 0 : index
    %c0_500 = arith.constant 0 : index
    %863 = vector.load %arg6[%c0_499, %c0_500] : memref<9x16xf32, #tpu.memory_space<vmem>>, vector<1x16xf32>
    %864 = vector.shape_cast %863 : vector<1x16xf32> to vector<16xf32>
    %865 = vector.shape_cast %864 : vector<16xf32> to vector<1x16xf32>
    %866 = vector.broadcast %865 : vector<1x16xf32> to vector<16x16xf32>
    %867 = arith.mulf %862, %866 : vector<16x16xf32>
    %868 = arith.addf %860, %867 : vector<16x16xf32>
    %c6_501 = arith.constant 6 : index
    %c1_502 = arith.constant 1 : index
    %c0_503 = arith.constant 0 : index
    %869 = vector.load %arg16[%c6_501, %c1_502, %c0_503] : memref<10x24x16xf32, #tpu.memory_space<vmem>>, vector<1x16x16xf32>
    %870 = vector.shape_cast %869 : vector<1x16x16xf32> to vector<16x16xf32>
    %c1_504 = arith.constant 1 : index
    %c0_505 = arith.constant 0 : index
    %871 = vector.load %arg6[%c1_504, %c0_505] : memref<9x16xf32, #tpu.memory_space<vmem>>, vector<1x16xf32>
    %872 = vector.shape_cast %871 : vector<1x16xf32> to vector<16xf32>
    %873 = vector.shape_cast %872 : vector<16xf32> to vector<1x16xf32>
    %874 = vector.broadcast %873 : vector<1x16xf32> to vector<16x16xf32>
    %875 = arith.mulf %870, %874 : vector<16x16xf32>
    %876 = arith.addf %868, %875 : vector<16x16xf32>
    %c6_506 = arith.constant 6 : index
    %c2_507 = arith.constant 2 : index
    %c0_508 = arith.constant 0 : index
    %877 = vector.load %arg16[%c6_506, %c2_507, %c0_508] : memref<10x24x16xf32, #tpu.memory_space<vmem>>, vector<1x16x16xf32>
    %878 = vector.shape_cast %877 : vector<1x16x16xf32> to vector<16x16xf32>
    %c2_509 = arith.constant 2 : index
    %c0_510 = arith.constant 0 : index
    %879 = vector.load %arg6[%c2_509, %c0_510] : memref<9x16xf32, #tpu.memory_space<vmem>>, vector<1x16xf32>
    %880 = vector.shape_cast %879 : vector<1x16xf32> to vector<16xf32>
    %881 = vector.shape_cast %880 : vector<16xf32> to vector<1x16xf32>
    %882 = vector.broadcast %881 : vector<1x16xf32> to vector<16x16xf32>
    %883 = arith.mulf %878, %882 : vector<16x16xf32>
    %884 = arith.addf %876, %883 : vector<16x16xf32>
    %c7_511 = arith.constant 7 : index
    %c0_512 = arith.constant 0 : index
    %c0_513 = arith.constant 0 : index
    %885 = vector.load %arg16[%c7_511, %c0_512, %c0_513] : memref<10x24x16xf32, #tpu.memory_space<vmem>>, vector<1x16x16xf32>
    %886 = vector.shape_cast %885 : vector<1x16x16xf32> to vector<16x16xf32>
    %c3_514 = arith.constant 3 : index
    %c0_515 = arith.constant 0 : index
    %887 = vector.load %arg6[%c3_514, %c0_515] : memref<9x16xf32, #tpu.memory_space<vmem>>, vector<1x16xf32>
    %888 = vector.shape_cast %887 : vector<1x16xf32> to vector<16xf32>
    %889 = vector.shape_cast %888 : vector<16xf32> to vector<1x16xf32>
    %890 = vector.broadcast %889 : vector<1x16xf32> to vector<16x16xf32>
    %891 = arith.mulf %886, %890 : vector<16x16xf32>
    %892 = arith.addf %884, %891 : vector<16x16xf32>
    %c7_516 = arith.constant 7 : index
    %c1_517 = arith.constant 1 : index
    %c0_518 = arith.constant 0 : index
    %893 = vector.load %arg16[%c7_516, %c1_517, %c0_518] : memref<10x24x16xf32, #tpu.memory_space<vmem>>, vector<1x16x16xf32>
    %894 = vector.shape_cast %893 : vector<1x16x16xf32> to vector<16x16xf32>
    %c4_519 = arith.constant 4 : index
    %c0_520 = arith.constant 0 : index
    %895 = vector.load %arg6[%c4_519, %c0_520] : memref<9x16xf32, #tpu.memory_space<vmem>>, vector<1x16xf32>
    %896 = vector.shape_cast %895 : vector<1x16xf32> to vector<16xf32>
    %897 = vector.shape_cast %896 : vector<16xf32> to vector<1x16xf32>
    %898 = vector.broadcast %897 : vector<1x16xf32> to vector<16x16xf32>
    %899 = arith.mulf %894, %898 : vector<16x16xf32>
    %900 = arith.addf %892, %899 : vector<16x16xf32>
    %c7_521 = arith.constant 7 : index
    %c2_522 = arith.constant 2 : index
    %c0_523 = arith.constant 0 : index
    %901 = vector.load %arg16[%c7_521, %c2_522, %c0_523] : memref<10x24x16xf32, #tpu.memory_space<vmem>>, vector<1x16x16xf32>
    %902 = vector.shape_cast %901 : vector<1x16x16xf32> to vector<16x16xf32>
    %c5_524 = arith.constant 5 : index
    %c0_525 = arith.constant 0 : index
    %903 = vector.load %arg6[%c5_524, %c0_525] : memref<9x16xf32, #tpu.memory_space<vmem>>, vector<1x16xf32>
    %904 = vector.shape_cast %903 : vector<1x16xf32> to vector<16xf32>
    %905 = vector.shape_cast %904 : vector<16xf32> to vector<1x16xf32>
    %906 = vector.broadcast %905 : vector<1x16xf32> to vector<16x16xf32>
    %907 = arith.mulf %902, %906 : vector<16x16xf32>
    %908 = arith.addf %900, %907 : vector<16x16xf32>
    %c8_526 = arith.constant 8 : index
    %c0_527 = arith.constant 0 : index
    %c0_528 = arith.constant 0 : index
    %909 = vector.load %arg16[%c8_526, %c0_527, %c0_528] : memref<10x24x16xf32, #tpu.memory_space<vmem>>, vector<1x16x16xf32>
    %910 = vector.shape_cast %909 : vector<1x16x16xf32> to vector<16x16xf32>
    %c6_529 = arith.constant 6 : index
    %c0_530 = arith.constant 0 : index
    %911 = vector.load %arg6[%c6_529, %c0_530] : memref<9x16xf32, #tpu.memory_space<vmem>>, vector<1x16xf32>
    %912 = vector.shape_cast %911 : vector<1x16xf32> to vector<16xf32>
    %913 = vector.shape_cast %912 : vector<16xf32> to vector<1x16xf32>
    %914 = vector.broadcast %913 : vector<1x16xf32> to vector<16x16xf32>
    %915 = arith.mulf %910, %914 : vector<16x16xf32>
    %916 = arith.addf %908, %915 : vector<16x16xf32>
    %c8_531 = arith.constant 8 : index
    %c1_532 = arith.constant 1 : index
    %c0_533 = arith.constant 0 : index
    %917 = vector.load %arg16[%c8_531, %c1_532, %c0_533] : memref<10x24x16xf32, #tpu.memory_space<vmem>>, vector<1x16x16xf32>
    %918 = vector.shape_cast %917 : vector<1x16x16xf32> to vector<16x16xf32>
    %c7_534 = arith.constant 7 : index
    %c0_535 = arith.constant 0 : index
    %919 = vector.load %arg6[%c7_534, %c0_535] : memref<9x16xf32, #tpu.memory_space<vmem>>, vector<1x16xf32>
    %920 = vector.shape_cast %919 : vector<1x16xf32> to vector<16xf32>
    %921 = vector.shape_cast %920 : vector<16xf32> to vector<1x16xf32>
    %922 = vector.broadcast %921 : vector<1x16xf32> to vector<16x16xf32>
    %923 = arith.mulf %918, %922 : vector<16x16xf32>
    %924 = arith.addf %916, %923 : vector<16x16xf32>
    %c8_536 = arith.constant 8 : index
    %c2_537 = arith.constant 2 : index
    %c0_538 = arith.constant 0 : index
    %925 = vector.load %arg16[%c8_536, %c2_537, %c0_538] : memref<10x24x16xf32, #tpu.memory_space<vmem>>, vector<1x16x16xf32>
    %926 = vector.shape_cast %925 : vector<1x16x16xf32> to vector<16x16xf32>
    %c8_539 = arith.constant 8 : index
    %c0_540 = arith.constant 0 : index
    %927 = vector.load %arg6[%c8_539, %c0_540] : memref<9x16xf32, #tpu.memory_space<vmem>>, vector<1x16xf32>
    %928 = vector.shape_cast %927 : vector<1x16xf32> to vector<16xf32>
    %929 = vector.shape_cast %928 : vector<16xf32> to vector<1x16xf32>
    %930 = vector.broadcast %929 : vector<1x16xf32> to vector<16x16xf32>
    %931 = arith.mulf %926, %930 : vector<16x16xf32>
    %932 = arith.addf %924, %931 : vector<16x16xf32>
    %933 = vector.broadcast %270 : vector<1x16xf32> to vector<16x16xf32>
    %934 = arith.mulf %932, %933 : vector<16x16xf32>
    %935 = vector.broadcast %271 : vector<1x16xf32> to vector<16x16xf32>
    %936 = arith.addf %934, %935 : vector<16x16xf32>
    %cst_541 = arith.constant 0.000000e+00 : f32
    %937 = vector.broadcast %cst_541 : f32 to vector<16x16xf32>
    %938 = arith.maximumf %936, %937 : vector<16x16xf32>
    %cst_542 = arith.constant dense<0.000000e+00> : vector<16x8xf32>
    %939 = tpu.matmul %938, %272, %cst_542 {dimension_numbers = #tpu.dot_dimension_numbers<[1], [0], [0], [1], [0, 0, 1, 1], [], []>} : vector<16x16xf32>, vector<16x8xf32>, vector<16x8xf32> -> vector<16x8xf32>
    %940 = vector.broadcast %273 : vector<1x8xf32> to vector<16x8xf32>
    %941 = arith.mulf %939, %940 : vector<16x8xf32>
    %942 = vector.broadcast %274 : vector<1x8xf32> to vector<16x8xf32>
    %943 = arith.addf %941, %942 : vector<16x8xf32>
    %c7_543 = arith.constant 7 : index
    %c1_544 = arith.constant 1 : index
    %c0_545 = arith.constant 0 : index
    %944 = vector.load %arg17[%c7_543, %c1_544, %c0_545] : memref<10x24x4xf32, #tpu.memory_space<vmem>>, vector<1x16x4xf32>
    %945 = vector.shape_cast %944 : vector<1x16x4xf32> to vector<16x4xf32>
    %cst_546 = arith.constant dense<0.000000e+00> : vector<16x8xf32>
    %946 = tpu.matmul %945, %275, %cst_546 {dimension_numbers = #tpu.dot_dimension_numbers<[1], [0], [0], [1], [0, 0, 1, 1], [], []>} : vector<16x4xf32>, vector<4x8xf32>, vector<16x8xf32> -> vector<16x8xf32>
    %947 = vector.broadcast %276 : vector<1x8xf32> to vector<16x8xf32>
    %948 = arith.mulf %946, %947 : vector<16x8xf32>
    %949 = vector.broadcast %277 : vector<1x8xf32> to vector<16x8xf32>
    %950 = arith.addf %948, %949 : vector<16x8xf32>
    %951 = arith.addf %943, %950 : vector<16x8xf32>
    %cst_547 = arith.constant 0.000000e+00 : f32
    %952 = vector.broadcast %cst_547 : f32 to vector<16x8xf32>
    %953 = arith.maximumf %951, %952 : vector<16x8xf32>
    %c0_548 = arith.constant 0 : index
    %c6_549 = arith.constant 6 : index
    %c0_550 = arith.constant 0 : index
    %c0_551 = arith.constant 0 : index
    %954 = vector.load %arg15[%c0_548, %c6_549, %c0_550, %c0_551] : memref<1x8x16x8xf32, #tpu.memory_space<vmem>>, vector<1x1x16x8xf32>
    %955 = vector.shape_cast %954 : vector<1x1x16x8xf32> to vector<16x8xf32>
    %956 = vector.shape_cast %953 : vector<16x8xf32> to vector<1x1x16x8xf32>
    tpu.vector_store %arg15[%c0_548, %c6_549, %c0_550, %c0_551], %956 {strides = array<i32>} : memref<1x8x16x8xf32, #tpu.memory_space<vmem>>, vector<1x1x16x8xf32>,
    %cst_552 = arith.constant 0.000000e+00 : f32
    %957 = vector.broadcast %cst_552 : f32 to vector<16x16xf32>
    %c7_553 = arith.constant 7 : index
    %c0_554 = arith.constant 0 : index
    %c0_555 = arith.constant 0 : index
    %958 = vector.load %arg16[%c7_553, %c0_554, %c0_555] : memref<10x24x16xf32, #tpu.memory_space<vmem>>, vector<1x16x16xf32>
    %959 = vector.shape_cast %958 : vector<1x16x16xf32> to vector<16x16xf32>
    %c0_556 = arith.constant 0 : index
    %c0_557 = arith.constant 0 : index
    %960 = vector.load %arg6[%c0_556, %c0_557] : memref<9x16xf32, #tpu.memory_space<vmem>>, vector<1x16xf32>
    %961 = vector.shape_cast %960 : vector<1x16xf32> to vector<16xf32>
    %962 = vector.shape_cast %961 : vector<16xf32> to vector<1x16xf32>
    %963 = vector.broadcast %962 : vector<1x16xf32> to vector<16x16xf32>
    %964 = arith.mulf %959, %963 : vector<16x16xf32>
    %965 = arith.addf %957, %964 : vector<16x16xf32>
    %c7_558 = arith.constant 7 : index
    %c1_559 = arith.constant 1 : index
    %c0_560 = arith.constant 0 : index
    %966 = vector.load %arg16[%c7_558, %c1_559, %c0_560] : memref<10x24x16xf32, #tpu.memory_space<vmem>>, vector<1x16x16xf32>
    %967 = vector.shape_cast %966 : vector<1x16x16xf32> to vector<16x16xf32>
    %c1_561 = arith.constant 1 : index
    %c0_562 = arith.constant 0 : index
    %968 = vector.load %arg6[%c1_561, %c0_562] : memref<9x16xf32, #tpu.memory_space<vmem>>, vector<1x16xf32>
    %969 = vector.shape_cast %968 : vector<1x16xf32> to vector<16xf32>
    %970 = vector.shape_cast %969 : vector<16xf32> to vector<1x16xf32>
    %971 = vector.broadcast %970 : vector<1x16xf32> to vector<16x16xf32>
    %972 = arith.mulf %967, %971 : vector<16x16xf32>
    %973 = arith.addf %965, %972 : vector<16x16xf32>
    %c7_563 = arith.constant 7 : index
    %c2_564 = arith.constant 2 : index
    %c0_565 = arith.constant 0 : index
    %974 = vector.load %arg16[%c7_563, %c2_564, %c0_565] : memref<10x24x16xf32, #tpu.memory_space<vmem>>, vector<1x16x16xf32>
    %975 = vector.shape_cast %974 : vector<1x16x16xf32> to vector<16x16xf32>
    %c2_566 = arith.constant 2 : index
    %c0_567 = arith.constant 0 : index
    %976 = vector.load %arg6[%c2_566, %c0_567] : memref<9x16xf32, #tpu.memory_space<vmem>>, vector<1x16xf32>
    %977 = vector.shape_cast %976 : vector<1x16xf32> to vector<16xf32>
    %978 = vector.shape_cast %977 : vector<16xf32> to vector<1x16xf32>
    %979 = vector.broadcast %978 : vector<1x16xf32> to vector<16x16xf32>
    %980 = arith.mulf %975, %979 : vector<16x16xf32>
    %981 = arith.addf %973, %980 : vector<16x16xf32>
    %c8_568 = arith.constant 8 : index
    %c0_569 = arith.constant 0 : index
    %c0_570 = arith.constant 0 : index
    %982 = vector.load %arg16[%c8_568, %c0_569, %c0_570] : memref<10x24x16xf32, #tpu.memory_space<vmem>>, vector<1x16x16xf32>
    %983 = vector.shape_cast %982 : vector<1x16x16xf32> to vector<16x16xf32>
    %c3_571 = arith.constant 3 : index
    %c0_572 = arith.constant 0 : index
    %984 = vector.load %arg6[%c3_571, %c0_572] : memref<9x16xf32, #tpu.memory_space<vmem>>, vector<1x16xf32>
    %985 = vector.shape_cast %984 : vector<1x16xf32> to vector<16xf32>
    %986 = vector.shape_cast %985 : vector<16xf32> to vector<1x16xf32>
    %987 = vector.broadcast %986 : vector<1x16xf32> to vector<16x16xf32>
    %988 = arith.mulf %983, %987 : vector<16x16xf32>
    %989 = arith.addf %981, %988 : vector<16x16xf32>
    %c8_573 = arith.constant 8 : index
    %c1_574 = arith.constant 1 : index
    %c0_575 = arith.constant 0 : index
    %990 = vector.load %arg16[%c8_573, %c1_574, %c0_575] : memref<10x24x16xf32, #tpu.memory_space<vmem>>, vector<1x16x16xf32>
    %991 = vector.shape_cast %990 : vector<1x16x16xf32> to vector<16x16xf32>
    %c4_576 = arith.constant 4 : index
    %c0_577 = arith.constant 0 : index
    %992 = vector.load %arg6[%c4_576, %c0_577] : memref<9x16xf32, #tpu.memory_space<vmem>>, vector<1x16xf32>
    %993 = vector.shape_cast %992 : vector<1x16xf32> to vector<16xf32>
    %994 = vector.shape_cast %993 : vector<16xf32> to vector<1x16xf32>
    %995 = vector.broadcast %994 : vector<1x16xf32> to vector<16x16xf32>
    %996 = arith.mulf %991, %995 : vector<16x16xf32>
    %997 = arith.addf %989, %996 : vector<16x16xf32>
    %c8_578 = arith.constant 8 : index
    %c2_579 = arith.constant 2 : index
    %c0_580 = arith.constant 0 : index
    %998 = vector.load %arg16[%c8_578, %c2_579, %c0_580] : memref<10x24x16xf32, #tpu.memory_space<vmem>>, vector<1x16x16xf32>
    %999 = vector.shape_cast %998 : vector<1x16x16xf32> to vector<16x16xf32>
    %c5_581 = arith.constant 5 : index
    %c0_582 = arith.constant 0 : index
    %1000 = vector.load %arg6[%c5_581, %c0_582] : memref<9x16xf32, #tpu.memory_space<vmem>>, vector<1x16xf32>
    %1001 = vector.shape_cast %1000 : vector<1x16xf32> to vector<16xf32>
    %1002 = vector.shape_cast %1001 : vector<16xf32> to vector<1x16xf32>
    %1003 = vector.broadcast %1002 : vector<1x16xf32> to vector<16x16xf32>
    %1004 = arith.mulf %999, %1003 : vector<16x16xf32>
    %1005 = arith.addf %997, %1004 : vector<16x16xf32>
    %c9_583 = arith.constant 9 : index
    %c0_584 = arith.constant 0 : index
    %c0_585 = arith.constant 0 : index
    %1006 = vector.load %arg16[%c9_583, %c0_584, %c0_585] : memref<10x24x16xf32, #tpu.memory_space<vmem>>, vector<1x16x16xf32>
    %1007 = vector.shape_cast %1006 : vector<1x16x16xf32> to vector<16x16xf32>
    %c6_586 = arith.constant 6 : index
    %c0_587 = arith.constant 0 : index
    %1008 = vector.load %arg6[%c6_586, %c0_587] : memref<9x16xf32, #tpu.memory_space<vmem>>, vector<1x16xf32>
    %1009 = vector.shape_cast %1008 : vector<1x16xf32> to vector<16xf32>
    %1010 = vector.shape_cast %1009 : vector<16xf32> to vector<1x16xf32>
    %1011 = vector.broadcast %1010 : vector<1x16xf32> to vector<16x16xf32>
    %1012 = arith.mulf %1007, %1011 : vector<16x16xf32>
    %1013 = arith.addf %1005, %1012 : vector<16x16xf32>
    %c9_588 = arith.constant 9 : index
    %c1_589 = arith.constant 1 : index
    %c0_590 = arith.constant 0 : index
    %1014 = vector.load %arg16[%c9_588, %c1_589, %c0_590] : memref<10x24x16xf32, #tpu.memory_space<vmem>>, vector<1x16x16xf32>
    %1015 = vector.shape_cast %1014 : vector<1x16x16xf32> to vector<16x16xf32>
    %c7_591 = arith.constant 7 : index
    %c0_592 = arith.constant 0 : index
    %1016 = vector.load %arg6[%c7_591, %c0_592] : memref<9x16xf32, #tpu.memory_space<vmem>>, vector<1x16xf32>
    %1017 = vector.shape_cast %1016 : vector<1x16xf32> to vector<16xf32>
    %1018 = vector.shape_cast %1017 : vector<16xf32> to vector<1x16xf32>
    %1019 = vector.broadcast %1018 : vector<1x16xf32> to vector<16x16xf32>
    %1020 = arith.mulf %1015, %1019 : vector<16x16xf32>
    %1021 = arith.addf %1013, %1020 : vector<16x16xf32>
    %c9_593 = arith.constant 9 : index
    %c2_594 = arith.constant 2 : index
    %c0_595 = arith.constant 0 : index
    %1022 = vector.load %arg16[%c9_593, %c2_594, %c0_595] : memref<10x24x16xf32, #tpu.memory_space<vmem>>, vector<1x16x16xf32>
    %1023 = vector.shape_cast %1022 : vector<1x16x16xf32> to vector<16x16xf32>
    %c8_596 = arith.constant 8 : index
    %c0_597 = arith.constant 0 : index
    %1024 = vector.load %arg6[%c8_596, %c0_597] : memref<9x16xf32, #tpu.memory_space<vmem>>, vector<1x16xf32>
    %1025 = vector.shape_cast %1024 : vector<1x16xf32> to vector<16xf32>
    %1026 = vector.shape_cast %1025 : vector<16xf32> to vector<1x16xf32>
    %1027 = vector.broadcast %1026 : vector<1x16xf32> to vector<16x16xf32>
    %1028 = arith.mulf %1023, %1027 : vector<16x16xf32>
    %1029 = arith.addf %1021, %1028 : vector<16x16xf32>
    %1030 = vector.broadcast %270 : vector<1x16xf32> to vector<16x16xf32>
    %1031 = arith.mulf %1029, %1030 : vector<16x16xf32>
    %1032 = vector.broadcast %271 : vector<1x16xf32> to vector<16x16xf32>
    %1033 = arith.addf %1031, %1032 : vector<16x16xf32>
    %cst_598 = arith.constant 0.000000e+00 : f32
    %1034 = vector.broadcast %cst_598 : f32 to vector<16x16xf32>
    %1035 = arith.maximumf %1033, %1034 : vector<16x16xf32>
    %cst_599 = arith.constant dense<0.000000e+00> : vector<16x8xf32>
    %1036 = tpu.matmul %1035, %272, %cst_599 {dimension_numbers = #tpu.dot_dimension_numbers<[1], [0], [0], [1], [0, 0, 1, 1], [], []>} : vector<16x16xf32>, vector<16x8xf32>, vector<16x8xf32> -> vector<16x8xf32>
    %1037 = vector.broadcast %273 : vector<1x8xf32> to vector<16x8xf32>
    %1038 = arith.mulf %1036, %1037 : vector<16x8xf32>
    %1039 = vector.broadcast %274 : vector<1x8xf32> to vector<16x8xf32>
    %1040 = arith.addf %1038, %1039 : vector<16x8xf32>
    %c8_600 = arith.constant 8 : index
    %c1_601 = arith.constant 1 : index
    %c0_602 = arith.constant 0 : index
    %1041 = vector.load %arg17[%c8_600, %c1_601, %c0_602] : memref<10x24x4xf32, #tpu.memory_space<vmem>>, vector<1x16x4xf32>
    %1042 = vector.shape_cast %1041 : vector<1x16x4xf32> to vector<16x4xf32>
    %cst_603 = arith.constant dense<0.000000e+00> : vector<16x8xf32>
    %1043 = tpu.matmul %1042, %275, %cst_603 {dimension_numbers = #tpu.dot_dimension_numbers<[1], [0], [0], [1], [0, 0, 1, 1], [], []>} : vector<16x4xf32>, vector<4x8xf32>, vector<16x8xf32> -> vector<16x8xf32>
    %1044 = vector.broadcast %276 : vector<1x8xf32> to vector<16x8xf32>
    %1045 = arith.mulf %1043, %1044 : vector<16x8xf32>
    %1046 = vector.broadcast %277 : vector<1x8xf32> to vector<16x8xf32>
    %1047 = arith.addf %1045, %1046 : vector<16x8xf32>
    %1048 = arith.addf %1040, %1047 : vector<16x8xf32>
    %cst_604 = arith.constant 0.000000e+00 : f32
    %1049 = vector.broadcast %cst_604 : f32 to vector<16x8xf32>
    %1050 = arith.maximumf %1048, %1049 : vector<16x8xf32>
    %c0_605 = arith.constant 0 : index
    %c7_606 = arith.constant 7 : index
    %c0_607 = arith.constant 0 : index
    %c0_608 = arith.constant 0 : index
    %1051 = vector.load %arg15[%c0_605, %c7_606, %c0_607, %c0_608] : memref<1x8x16x8xf32, #tpu.memory_space<vmem>>, vector<1x1x16x8xf32>
    %1052 = vector.shape_cast %1051 : vector<1x1x16x8xf32> to vector<16x8xf32>
    %1053 = vector.shape_cast %1050 : vector<16x8xf32> to vector<1x1x16x8xf32>
    tpu.vector_store %arg15[%c0_605, %c7_606, %c0_607, %c0_608], %1053 {strides = array<i32>} : memref<1x8x16x8xf32, #tpu.memory_space<vmem>>, vector<1x1x16x8xf32>,
    return
  }
  func.func @transform_0(%arg0: i32, %arg1: i32) -> (i32, i32, i32, i32) {
    %c0_i32 = arith.constant 0 : i32
    %c0_i32_0 = arith.constant 0 : i32
    %c0_i32_1 = arith.constant 0 : i32
    %c0_i32_2 = arith.constant 0 : i32
    return %arg0, %c0_i32, %c0_i32_0, %c0_i32_1 : i32, i32, i32, i32
  }
  func.func @transform_1(%arg0: i32, %arg1: i32) -> (i32, i32) {
    %c0_i32 = arith.constant 0 : i32
    %c0_i32_0 = arith.constant 0 : i32
    %c0_i32_1 = arith.constant 0 : i32
    return %c0_i32, %c0_i32_0 : i32, i32
  }
  func.func @transform_2(%arg0: i32, %arg1: i32) -> (i32, i32) {
    %c0_i32 = arith.constant 0 : i32
    %c0_i32_0 = arith.constant 0 : i32
    %c0_i32_1 = arith.constant 0 : i32
    return %c0_i32, %c0_i32_0 : i32, i32
  }
  func.func @transform_3(%arg0: i32, %arg1: i32) -> (i32, i32) {
    %c0_i32 = arith.constant 0 : i32
    %c0_i32_0 = arith.constant 0 : i32
    %c0_i32_1 = arith.constant 0 : i32
    return %c0_i32, %c0_i32_0 : i32, i32
  }
  func.func @transform_4(%arg0: i32, %arg1: i32) -> (i32, i32) {
    %c0_i32 = arith.constant 0 : i32
    %c0_i32_0 = arith.constant 0 : i32
    %c0_i32_1 = arith.constant 0 : i32
    return %c0_i32, %c0_i32_0 : i32, i32
  }
  func.func @transform_5(%arg0: i32, %arg1: i32) -> (i32, i32) {
    %c0_i32 = arith.constant 0 : i32
    %c0_i32_0 = arith.constant 0 : i32
    %c0_i32_1 = arith.constant 0 : i32
    return %c0_i32, %c0_i32_0 : i32, i32
  }
  func.func @transform_6(%arg0: i32, %arg1: i32) -> (i32, i32) {
    %c0_i32 = arith.constant 0 : i32
    %c0_i32_0 = arith.constant 0 : i32
    %c0_i32_1 = arith.constant 0 : i32
    return %c0_i32, %c0_i32_0 : i32, i32
  }
  func.func @transform_7(%arg0: i32, %arg1: i32) -> (i32, i32) {
    %c0_i32 = arith.constant 0 : i32
    %c0_i32_0 = arith.constant 0 : i32
    %c0_i32_1 = arith.constant 0 : i32
    return %c0_i32, %c0_i32_0 : i32, i32
  }
  func.func @transform_8(%arg0: i32, %arg1: i32) -> (i32, i32) {
    %c0_i32 = arith.constant 0 : i32
    %c0_i32_0 = arith.constant 0 : i32
    %c0_i32_1 = arith.constant 0 : i32
    return %c0_i32, %c0_i32_0 : i32, i32
  }
  func.func @transform_9(%arg0: i32, %arg1: i32) -> (i32, i32) {
    %c0_i32 = arith.constant 0 : i32
    %c0_i32_0 = arith.constant 0 : i32
    %c0_i32_1 = arith.constant 0 : i32
    return %c0_i32, %c0_i32_0 : i32, i32
  }
  func.func @transform_10(%arg0: i32, %arg1: i32) -> (i32, i32) {
    %c0_i32 = arith.constant 0 : i32
    %c0_i32_0 = arith.constant 0 : i32
    %c0_i32_1 = arith.constant 0 : i32
    return %c0_i32, %c0_i32_0 : i32, i32
  }
  func.func @transform_11(%arg0: i32, %arg1: i32) -> (i32, i32) {
    %c0_i32 = arith.constant 0 : i32
    %c0_i32_0 = arith.constant 0 : i32
    %c0_i32_1 = arith.constant 0 : i32
    return %c0_i32, %c0_i32_0 : i32, i32
  }
  func.func @transform_12(%arg0: i32, %arg1: i32) -> (i32, i32) {
    %c0_i32 = arith.constant 0 : i32
    %c0_i32_0 = arith.constant 0 : i32
    %c0_i32_1 = arith.constant 0 : i32
    return %c0_i32, %c0_i32_0 : i32, i32
  }
  func.func @transform_13(%arg0: i32, %arg1: i32) -> (i32, i32, i32, i32) {
    %c0_i32 = arith.constant 0 : i32
    %c0_i32_0 = arith.constant 0 : i32
    %c0_i32_1 = arith.constant 0 : i32
    return %arg0, %arg1, %c0_i32, %c0_i32_0 : i32, i32, i32, i32
  }
}

</mosaic_0001>

<llo_original>
// kernel: tpu_custom_call.1
$region0: #{tpu_custom_call.1}
  #allocation0 [shape = 'u32[]', space=smem, size = 0x4, offset = 0x4, fixed_abs, tag = 'smem constant byte address 0x4 - core index']
  #allocation1 [shape = 'u32[72,128]{1,0:T(1,128)}', space=vmem, size = 0x9000, scoped, tag = 'internal scratch']
  #allocation2 [shape = 'f32[10,24,16]{2,1,0:T(8,128)}', space=vmem, size = 0x1e000, scoped, tag = 'scratch operand']
  #allocation3 [shape = 'f32[10,24,4]{2,1,0:T(8,128)}', space=vmem, size = 0x1e000, scoped, tag = 'scratch operand']
  %s0 = inlined_call_operand.vmem [shape: f32[2,18,24,4], index: 0, kind: input, shape index: {}]
  %s1 = inlined_call_operand.vmem [shape: f32[4,16], index: 1, kind: input, shape index: {}]
  %s2 = inlined_call_operand.vmem [shape: f32[1,16], index: 2, kind: input, shape index: {}]
  %s3 = inlined_call_operand.vmem [shape: f32[1,16], index: 3, kind: input, shape index: {}]
  %s4 = inlined_call_operand.vmem [shape: f32[9,16], index: 4, kind: input, shape index: {}]
  %s5 = inlined_call_operand.vmem [shape: f32[1,16], index: 5, kind: input, shape index: {}]
  %s6 = inlined_call_operand.vmem [shape: f32[1,16], index: 6, kind: input, shape index: {}]
  %s7 = inlined_call_operand.vmem [shape: f32[16,8], index: 7, kind: input, shape index: {}]
  %s8 = inlined_call_operand.vmem [shape: f32[1,8], index: 8, kind: input, shape index: {}]
  %s9 = inlined_call_operand.vmem [shape: f32[1,8], index: 9, kind: input, shape index: {}]
  %s10 = inlined_call_operand.vmem [shape: f32[4,8], index: 10, kind: input, shape index: {}]
  %s11 = inlined_call_operand.vmem [shape: f32[1,8], index: 11, kind: input, shape index: {}]
  %s12 = inlined_call_operand.vmem [shape: f32[1,8], index: 12, kind: input, shape index: {}]
  %s13 = inlined_call_operand.vmem [shape: f32[2,16,16,8], index: 13, kind: output, shape index: {}]
  %s14 = sld [smem:[#allocation0]]
  $region85: #{tpu_custom_call.1} parent=0
    _
  %s16 = ssub.s32 1, %s14
  %s17 = scalar_select 0, %s16, %s14
  loop: start=0, step=1, limit=6
  $region2: #{tpu_custom_call.1} parent=0 // loop_pre_header
    _
  $region3: #{tpu_custom_call.1} parent=0 // loop_header
    %s19 = sphi 0, %s23
    %p20 = scmp.ge.s32.totalorder %s19, 6
    %s26 = sphi 0, %s38
    %s27 = sphi 0, %s34
    %s28 = sphi 0, %s26
    %s29 = sphi 0, %s27
    %s30 = sphi 0, %s28
    %s31 = sphi 0, %s29
    %s41 = sphi 0, %s43
    %s44 = sphi 0, %s41
    %s45 = sphi 0, %s44
    %s61 = sphi 0, %s45
    %s65 = sphi 0, %s65
    %s67 = sphi 0, %s65
    %s68 = sphi 0, %s67
    %s82 = sphi 0, %s68
    %s86 = sphi 0, %s86
    %s88 = sphi 0, %s86
    %s89 = sphi 0, %s88
    %s103 = sphi 0, %s89
    %s107 = sphi 0, %s107
    %s109 = sphi 0, %s107
    %s110 = sphi 0, %s109
    %s124 = sphi 0, %s110
    %s128 = sphi 0, %s128
    %s130 = sphi 0, %s128
    %s131 = sphi 0, %s130
    %s145 = sphi 0, %s131
    %s149 = sphi 0, %s149
    %s151 = sphi 0, %s149
    %s152 = sphi 0, %s151
    %s166 = sphi 0, %s152
    %s170 = sphi 0, %s170
    %s172 = sphi 0, %s170
    %s173 = sphi 0, %s172
    %s187 = sphi 0, %s173
    %s191 = sphi 0, %s191
    %s193 = sphi 0, %s191
    %s194 = sphi 0, %s193
    %s208 = sphi 0, %s194
    %s212 = sphi 0, %s212
    %s214 = sphi 0, %s212
    %s215 = sphi 0, %s214
    %s229 = sphi 0, %s215
    %s233 = sphi 0, %s233
    %s235 = sphi 0, %s233
    %s236 = sphi 0, %s235
    %s250 = sphi 0, %s236
    %s254 = sphi 0, %s254
    %s256 = sphi 0, %s254
    %s257 = sphi 0, %s256
    %s271 = sphi 0, %s257
    %s275 = sphi 0, %s275
    %s277 = sphi 0, %s275
    %s278 = sphi 0, %s277
    %s292 = sphi 0, %s278
    %s296 = sphi 0, %s296
    %s298 = sphi 0, %s296
    %s299 = sphi 0, %s298
    %s313 = sphi 0, %s299
    %s321 = sphi 0, %s323
    %s324 = sphi 0, %s321
    %s325 = sphi 0, %s324
    %s341 = sphi 0, %s325
  $region4: #{tpu_custom_call.1} parent=0 // loop_header_branch
    %22 = sbr.rel (%p20) target = $region8
  $region5: #{tpu_custom_call.1} parent=0 // loop_body
    %s24 = ssub.s32 %s19, 1
    %s25 = ssub.s32 %s19, 2
    %s32 = sadd.s32 1, %s27
    %p33 = scmp.ge.s32.totalorder %s32, 2
    %s34 = scalar_select %p33, 0, %s32
    %s35 = sadd.s32 1, %s26
    %s36 = scalar_select %p33, %s35, %s26
    %p37 = scmp.ge.s32.totalorder %s36, 2
    %s38 = scalar_select %p37, 0, %s36
    %s39 = ssub.s32 %s26, %s38
    %p40 = scmp.eq.s32.totalorder %s39, 0
    %s42 = sadd.s32 %s41, 1
    %s43 = scalar_select %p40, %s41, %s42
    %p46 = pneg %p40
    %p47 = scmp.eq.s32.totalorder %s19, 3
    %p48 = por %p46, %p47
    %p49 = scmp.ne.s32.totalorder %s41, %s44
    %p50 = scmp.eq.s32.totalorder %s19, 0
    %p51 = por %p49, %p50
    %p52 = scmp.ne.s32.totalorder %s41, %s44
    %p53 = scmp.eq.s32.totalorder %s24, 3
    %p54 = por %p52, %p53
    %p55 = scmp.ne.s32.totalorder %s44, %s45
    %p56 = scmp.eq.s32.totalorder %s24, 0
    %p57 = por %p55, %p56
    %p58 = scmp.ne.s32.totalorder %s44, %s45
    %p59 = scmp.eq.s32.totalorder %s25, 3
    %p60 = por %p58, %p59
    %p62 = scmp.ne.s32.totalorder %s45, %s61
    %p63 = scmp.eq.s32.totalorder %s25, 0
    %p64 = por %p62, %p63
    %s66 = sadd.s32 %s65, 1
    %p69 = scmp.eq.s32.totalorder %s19, 3
    %p70 = scmp.ne.s32.totalorder %s65, %s67
    %p71 = scmp.eq.s32.totalorder %s19, 0
    %p72 = por %p70, %p71
    %p73 = scmp.ne.s32.totalorder %s65, %s67
    %p74 = scmp.eq.s32.totalorder %s24, 3
    %p75 = por %p73, %p74
    %p76 = scmp.ne.s32.totalorder %s67, %s68
    %p77 = scmp.eq.s32.totalorder %s24, 0
    %p78 = por %p76, %p77
    %p79 = scmp.ne.s32.totalorder %s67, %s68
    %p80 = scmp.eq.s32.totalorder %s25, 3
    %p81 = por %p79, %p80
    %p83 = scmp.ne.s32.totalorder %s68, %s82
    %p84 = scmp.eq.s32.totalorder %s25, 0
    %p85 = por %p83, %p84
    %s87 = sadd.s32 %s86, 1
    %p90 = scmp.eq.s32.totalorder %s19, 3
    %p91 = scmp.ne.s32.totalorder %s86, %s88
    %p92 = scmp.eq.s32.totalorder %s19, 0
    %p93 = por %p91, %p92
    %p94 = scmp.ne.s32.totalorder %s86, %s88
    %p95 = scmp.eq.s32.totalorder %s24, 3
    %p96 = por %p94, %p95
    %p97 = scmp.ne.s32.totalorder %s88, %s89
    %p98 = scmp.eq.s32.totalorder %s24, 0
    %p99 = por %p97, %p98
    %p100 = scmp.ne.s32.totalorder %s88, %s89
    %p101 = scmp.eq.s32.totalorder %s25, 3
    %p102 = por %p100, %p101
    %p104 = scmp.ne.s32.totalorder %s89, %s103
    %p105 = scmp.eq.s32.totalorder %s25, 0
    %p106 = por %p104, %p105
    %s108 = sadd.s32 %s107, 1
    %p111 = scmp.eq.s32.totalorder %s19, 3
    %p112 = scmp.ne.s32.totalorder %s107, %s109
    %p113 = scmp.eq.s32.totalorder %s19, 0
    %p114 = por %p112, %p113
    %p115 = scmp.ne.s32.totalorder %s107, %s109
    %p116 = scmp.eq.s32.totalorder %s24, 3
    %p117 = por %p115, %p116
    %p118 = scmp.ne.s32.totalorder %s109, %s110
    %p119 = scmp.eq.s32.totalorder %s24, 0
    %p120 = por %p118, %p119
    %p121 = scmp.ne.s32.totalorder %s109, %s110
    %p122 = scmp.eq.s32.totalorder %s25, 3
    %p123 = por %p121, %p122
    %p125 = scmp.ne.s32.totalorder %s110, %s124
    %p126 = scmp.eq.s32.totalorder %s25, 0
    %p127 = por %p125, %p126
    %s129 = sadd.s32 %s128, 1
    %p132 = scmp.eq.s32.totalorder %s19, 3
    %p133 = scmp.ne.s32.totalorder %s128, %s130
    %p134 = scmp.eq.s32.totalorder %s19, 0
    %p135 = por %p133, %p134
    %p136 = scmp.ne.s32.totalorder %s128, %s130
    %p137 = scmp.eq.s32.totalorder %s24, 3
    %p138 = por %p136, %p137
    %p139 = scmp.ne.s32.totalorder %s130, %s131
    %p140 = scmp.eq.s32.totalorder %s24, 0
    %p141 = por %p139, %p140
    %p142 = scmp.ne.s32.totalorder %s130, %s131
    %p143 = scmp.eq.s32.totalorder %s25, 3
    %p144 = por %p142, %p143
    %p146 = scmp.ne.s32.totalorder %s131, %s145
    %p147 = scmp.eq.s32.totalorder %s25, 0
    %p148 = por %p146, %p147
    %s150 = sadd.s32 %s149, 1
    %p153 = scmp.eq.s32.totalorder %s19, 3
    %p154 = scmp.ne.s32.totalorder %s149, %s151
    %p155 = scmp.eq.s32.totalorder %s19, 0
    %p156 = por %p154, %p155
    %p157 = scmp.ne.s32.totalorder %s149, %s151
    %p158 = scmp.eq.s32.totalorder %s24, 3
    %p159 = por %p157, %p158
    %p160 = scmp.ne.s32.totalorder %s151, %s152
    %p161 = scmp.eq.s32.totalorder %s24, 0
    %p162 = por %p160, %p161
    %p163 = scmp.ne.s32.totalorder %s151, %s152
    %p164 = scmp.eq.s32.totalorder %s25, 3
    %p165 = por %p163, %p164
    %p167 = scmp.ne.s32.totalorder %s152, %s166
    %p168 = scmp.eq.s32.totalorder %s25, 0
    %p169 = por %p167, %p168
    %s171 = sadd.s32 %s170, 1
    %p174 = scmp.eq.s32.totalorder %s19, 3
    %p175 = scmp.ne.s32.totalorder %s170, %s172
    %p176 = scmp.eq.s32.totalorder %s19, 0
    %p177 = por %p175, %p176
    %p178 = scmp.ne.s32.totalorder %s170, %s172
    %p179 = scmp.eq.s32.totalorder %s24, 3
    %p180 = por %p178, %p179
    %p181 = scmp.ne.s32.totalorder %s172, %s173
    %p182 = scmp.eq.s32.totalorder %s24, 0
    %p183 = por %p181, %p182
    %p184 = scmp.ne.s32.totalorder %s172, %s173
    %p185 = scmp.eq.s32.totalorder %s25, 3
    %p186 = por %p184, %p185
    %p188 = scmp.ne.s32.totalorder %s173, %s187
    %p189 = scmp.eq.s32.totalorder %s25, 0
    %p190 = por %p188, %p189
    %s192 = sadd.s32 %s191, 1
    %p195 = scmp.eq.s32.totalorder %s19, 3
    %p196 = scmp.ne.s32.totalorder %s191, %s193
    %p197 = scmp.eq.s32.totalorder %s19, 0
    %p198 = por %p196, %p197
    %p199 = scmp.ne.s32.totalorder %s191, %s193
    %p200 = scmp.eq.s32.totalorder %s24, 3
    %p201 = por %p199, %p200
    %p202 = scmp.ne.s32.totalorder %s193, %s194
    %p203 = scmp.eq.s32.totalorder %s24, 0
    %p204 = por %p202, %p203
    %p205 = scmp.ne.s32.totalorder %s193, %s194
    %p206 = scmp.eq.s32.totalorder %s25, 3
    %p207 = por %p205, %p206
    %p209 = scmp.ne.s32.totalorder %s194, %s208
    %p210 = scmp.eq.s32.totalorder %s25, 0
    %p211 = por %p209, %p210
    %s213 = sadd.s32 %s212, 1
    %p216 = scmp.eq.s32.totalorder %s19, 3
    %p217 = scmp.ne.s32.totalorder %s212, %s214
    %p218 = scmp.eq.s32.totalorder %s19, 0
    %p219 = por %p217, %p218
    %p220 = scmp.ne.s32.totalorder %s212, %s214
    %p221 = scmp.eq.s32.totalorder %s24, 3
    %p222 = por %p220, %p221
    %p223 = scmp.ne.s32.totalorder %s214, %s215
    %p224 = scmp.eq.s32.totalorder %s24, 0
    %p225 = por %p223, %p224
    %p226 = scmp.ne.s32.totalorder %s214, %s215
    %p227 = scmp.eq.s32.totalorder %s25, 3
    %p228 = por %p226, %p227
    %p230 = scmp.ne.s32.totalorder %s215, %s229
    %p231 = scmp.eq.s32.totalorder %s25, 0
    %p232 = por %p230, %p231
    %s234 = sadd.s32 %s233, 1
    %p237 = scmp.eq.s32.totalorder %s19, 3
    %p238 = scmp.ne.s32.totalorder %s233, %s235
    %p239 = scmp.eq.s32.totalorder %s19, 0
    %p240 = por %p238, %p239
    %p241 = scmp.ne.s32.totalorder %s233, %s235
    %p242 = scmp.eq.s32.totalorder %s24, 3
    %p243 = por %p241, %p242
    %p244 = scmp.ne.s32.totalorder %s235, %s236
    %p245 = scmp.eq.s32.totalorder %s24, 0
    %p246 = por %p244, %p245
    %p247 = scmp.ne.s32.totalorder %s235, %s236
    %p248 = scmp.eq.s32.totalorder %s25, 3
    %p249 = por %p247, %p248
    %p251 = scmp.ne.s32.totalorder %s236, %s250
    %p252 = scmp.eq.s32.totalorder %s25, 0
    %p253 = por %p251, %p252
    %s255 = sadd.s32 %s254, 1
    %p258 = scmp.eq.s32.totalorder %s19, 3
    %p259 = scmp.ne.s32.totalorder %s254, %s256
    %p260 = scmp.eq.s32.totalorder %s19, 0
    %p261 = por %p259, %p260
    %p262 = scmp.ne.s32.totalorder %s254, %s256
    %p263 = scmp.eq.s32.totalorder %s24, 3
    %p264 = por %p262, %p263
    %p265 = scmp.ne.s32.totalorder %s256, %s257
    %p266 = scmp.eq.s32.totalorder %s24, 0
    %p267 = por %p265, %p266
    %p268 = scmp.ne.s32.totalorder %s256, %s257
    %p269 = scmp.eq.s32.totalorder %s25, 3
    %p270 = por %p268, %p269
    %p272 = scmp.ne.s32.totalorder %s257, %s271
    %p273 = scmp.eq.s32.totalorder %s25, 0
    %p274 = por %p272, %p273
    %s276 = sadd.s32 %s275, 1
    %p279 = scmp.eq.s32.totalorder %s19, 3
    %p280 = scmp.ne.s32.totalorder %s275, %s277
    %p281 = scmp.eq.s32.totalorder %s19, 0
    %p282 = por %p280, %p281
    %p283 = scmp.ne.s32.totalorder %s275, %s277
    %p284 = scmp.eq.s32.totalorder %s24, 3
    %p285 = por %p283, %p284
    %p286 = scmp.ne.s32.totalorder %s277, %s278
    %p287 = scmp.eq.s32.totalorder %s24, 0
    %p288 = por %p286, %p287
    %p289 = scmp.ne.s32.totalorder %s277, %s278
    %p290 = scmp.eq.s32.totalorder %s25, 3
    %p291 = por %p289, %p290
    %p293 = scmp.ne.s32.totalorder %s278, %s292
    %p294 = scmp.eq.s32.totalorder %s25, 0
    %p295 = por %p293, %p294
    %s297 = sadd.s32 %s296, 1
    %p300 = scmp.eq.s32.totalorder %s19, 3
    %p301 = scmp.ne.s32.totalorder %s296, %s298
    %p302 = scmp.eq.s32.totalorder %s19, 0
    %p303 = por %p301, %p302
    %p304 = scmp.ne.s32.totalorder %s296, %s298
    %p305 = scmp.eq.s32.totalorder %s24, 3
    %p306 = por %p304, %p305
    %p307 = scmp.ne.s32.totalorder %s298, %s299
    %p308 = scmp.eq.s32.totalorder %s24, 0
    %p309 = por %p307, %p308
    %p310 = scmp.ne.s32.totalorder %s298, %s299
    %p311 = scmp.eq.s32.totalorder %s25, 3
    %p312 = por %p310, %p311
    %p314 = scmp.ne.s32.totalorder %s299, %s313
    %p315 = scmp.eq.s32.totalorder %s25, 0
    %p316 = por %p314, %p315
    %s317 = ssub.s32 %s26, %s38
    %s318 = ssub.s32 %s27, %s34
    %s319 = sor.u32 %s317, %s318
    %p320 = scmp.eq.s32.totalorder %s319, 0
    %s322 = sadd.s32 %s321, 1
    %s323 = scalar_select %p320, %s321, %s322
    %p326 = pneg %p320
    %p327 = scmp.eq.s32.totalorder %s19, 3
    %p328 = por %p326, %p327
    %p329 = scmp.ne.s32.totalorder %s321, %s324
    %p330 = scmp.eq.s32.totalorder %s19, 0
    %p331 = por %p329, %p330
    %p332 = scmp.ne.s32.totalorder %s321, %s324
    %p333 = scmp.eq.s32.totalorder %s24, 3
    %p334 = por %p332, %p333
    %p335 = scmp.ne.s32.totalorder %s324, %s325
    %p336 = scmp.eq.s32.totalorder %s24, 0
    %p337 = por %p335, %p336
    %p338 = scmp.ne.s32.totalorder %s324, %s325
    %p339 = scmp.eq.s32.totalorder %s25, 3
    %p340 = por %p338, %p339
    %p342 = scmp.ne.s32.totalorder %s325, %s341
    %p343 = scmp.eq.s32.totalorder %s25, 0
    %p344 = por %p342, %p343
    %p345 = scmp.le.s32.totalorder 1, %s19
    %p346 = scmp.lt.s32.totalorder %s19, 5
    %p347 = pnand %p345, %p346
    %p348 = pneg %p347
    // Predicated region
    $region9: #{tpu_custom_call.1} parent=5 // pred_check
      _
    $region10: #{tpu_custom_call.1} parent=5 // pred_check_branch
      %350 = sbr.rel (%p347) target = $region12
    $region11: #{tpu_custom_call.1} parent=5 // pred_region
      %s351 = ssub.s32 %s19, 1
      // Predicated region
      $region13: #{tpu_custom_call.1} parent=11 // pred_check
        %p352 = pneg %p78
      $region14: #{tpu_custom_call.1} parent=11 // pred_check_branch
        %354 = sbr.rel (%p352) target = $region16
      $region15: #{tpu_custom_call.1} parent=11 // pred_region
        _
      $region16: #{tpu_custom_call.1} parent=11 // pred_fallthru
        _
      // Predicated region
      $region17: #{tpu_custom_call.1} parent=11 // pred_check
        %p355 = pneg %p99
      $region18: #{tpu_custom_call.1} parent=11 // pred_check_branch
        %357 = sbr.rel (%p355) target = $region20
      $region19: #{tpu_custom_call.1} parent=11 // pred_region
        _
      $region20: #{tpu_custom_call.1} parent=11 // pred_fallthru
        _
      // Predicated region
      $region21: #{tpu_custom_call.1} parent=11 // pred_check
        %p358 = pneg %p120
      $region22: #{tpu_custom_call.1} parent=11 // pred_check_branch
        %360 = sbr.rel (%p358) target = $region24
      $region23: #{tpu_custom_call.1} parent=11 // pred_region
        _
      $region24: #{tpu_custom_call.1} parent=11 // pred_fallthru
        _
      // Predicated region
      $region25: #{tpu_custom_call.1} parent=11 // pred_check
        %p361 = pneg %p141
      $region26: #{tpu_custom_call.1} parent=11 // pred_check_branch
        %363 = sbr.rel (%p361) target = $region28
      $region27: #{tpu_custom_call.1} parent=11 // pred_region
        _
      $region28: #{tpu_custom_call.1} parent=11 // pred_fallthru
        _
      // Predicated region
      $region29: #{tpu_custom_call.1} parent=11 // pred_check
        %p364 = pneg %p162
      $region30: #{tpu_custom_call.1} parent=11 // pred_check_branch
        %366 = sbr.rel (%p364) target = $region32
      $region31: #{tpu_custom_call.1} parent=11 // pred_region
        _
      $region32: #{tpu_custom_call.1} parent=11 // pred_fallthru
        _
      // Predicated region
      $region33: #{tpu_custom_call.1} parent=11 // pred_check
        %p367 = pneg %p183
      $region34: #{tpu_custom_call.1} parent=11 // pred_check_branch
        %369 = sbr.rel (%p367) target = $region36
      $region35: #{tpu_custom_call.1} parent=11 // pred_region
        _
      $region36: #{tpu_custom_call.1} parent=11 // pred_fallthru
        _
      // Predicated region
      $region37: #{tpu_custom_call.1} parent=11 // pred_check
        %p370 = pneg %p204
      $region38: #{tpu_custom_call.1} parent=11 // pred_check_branch
        %372 = sbr.rel (%p370) target = $region40
      $region39: #{tpu_custom_call.1} parent=11 // pred_region
        _
      $region40: #{tpu_custom_call.1} parent=11 // pred_fallthru
        _
      // Predicated region
      $region41: #{tpu_custom_call.1} parent=11 // pred_check
        %p373 = pneg %p225
      $region42: #{tpu_custom_call.1} parent=11 // pred_check_branch
        %375 = sbr.rel (%p373) target = $region44
      $region43: #{tpu_custom_call.1} parent=11 // pred_region
        _
      $region44: #{tpu_custom_call.1} parent=11 // pred_fallthru
        _
      // Predicated region
      $region45: #{tpu_custom_call.1} parent=11 // pred_check
        %p376 = pneg %p246
      $region46: #{tpu_custom_call.1} parent=11 // pred_check_branch
        %378 = sbr.rel (%p376) target = $region48
      $region47: #{tpu_custom_call.1} parent=11 // pred_region
        _
      $region48: #{tpu_custom_call.1} parent=11 // pred_fallthru
        _
      // Predicated region
      $region49: #{tpu_custom_call.1} parent=11 // pred_check
        %p379 = pneg %p267
      $region50: #{tpu_custom_call.1} parent=11 // pred_check_branch
        %381 = sbr.rel (%p379) target = $region52
      $region51: #{tpu_custom_call.1} parent=11 // pred_region
        _
      $region52: #{tpu_custom_call.1} parent=11 // pred_fallthru
        _
      // Predicated region
      $region53: #{tpu_custom_call.1} parent=11 // pred_check
        %p382 = pneg %p288
      $region54: #{tpu_custom_call.1} parent=11 // pred_check_branch
        %384 = sbr.rel (%p382) target = $region56
      $region55: #{tpu_custom_call.1} parent=11 // pred_region
        _
      $region56: #{tpu_custom_call.1} parent=11 // pred_fallthru
        _
      // Predicated region
      $region57: #{tpu_custom_call.1} parent=11 // pred_check
        %p385 = pneg %p309
      $region58: #{tpu_custom_call.1} parent=11 // pred_check_branch
        %387 = sbr.rel (%p385) target = $region60
      $region59: #{tpu_custom_call.1} parent=11 // pred_region
        _
      $region60: #{tpu_custom_call.1} parent=11 // pred_fallthru
        _
    $region12: #{tpu_custom_call.1} parent=5 // pred_fallthru
      _
    %p388 = scmp.lt.s32.totalorder %s19, 4
    // Predicated region
    $region61: #{tpu_custom_call.1} parent=5 // pred_check
      %p389 = pneg %p388
    $region62: #{tpu_custom_call.1} parent=5 // pred_check_branch
      %391 = sbr.rel (%p389) target = $region64
    $region63: #{tpu_custom_call.1} parent=5 // pred_region
      // Predicated region
      $region65: #{tpu_custom_call.1} parent=63 // pred_check
        %p392 = pneg %p51
      $region66: #{tpu_custom_call.1} parent=63 // pred_check_branch
        %394 = sbr.rel (%p392) target = $region68
      $region67: #{tpu_custom_call.1} parent=63 // pred_region
        %p395 = scmp.lt.s32.totalorder %s26, 1
        %s396 = scalar_select %p395, %s26, 1
        %s397 = smul.addr %s396, 54
        %s398 = smul.addr %s397, 8
        %s399 = scalar_lea.vmem %s0, %s398
      $region68: #{tpu_custom_call.1} parent=63 // pred_fallthru
        _
    $region64: #{tpu_custom_call.1} parent=5 // pred_fallthru
      _
    %p400 = scmp.le.s32.totalorder 1, %s19
    %p401 = scmp.lt.s32.totalorder %s19, 5
    %p402 = pnand %p400, %p401
    %p403 = pneg %p402
    // Predicated region
    $region69: #{tpu_custom_call.1} parent=5 // pred_check
      _
    $region70: #{tpu_custom_call.1} parent=5 // pred_check_branch
      %405 = sbr.rel (%p402) target = $region72
    $region71: #{tpu_custom_call.1} parent=5 // pred_region
      %s406 = ssub.s32 %s19, 1
      %p407 = scmp.lt.s32.totalorder %s28, 1
      %s408 = scalar_select %p407, %s28, 1
      %s409 = smul.addr %s408, 54
      %s410 = smul.addr %s409, 8
      %s411 = scalar_lea.vmem %s0, %s410
      %p412 = pneg %p57
      %p413 = pneg %p54
      %p414 = pneg %p78
      %p415 = pneg %p75
      %p416 = pneg %p99
      %p417 = pneg %p96
      %p418 = pneg %p120
      %p419 = pneg %p117
      %p420 = pneg %p141
      %p421 = pneg %p138
      %p422 = pneg %p162
      %p423 = pneg %p159
      %p424 = pneg %p183
      %p425 = pneg %p180
      %p426 = pneg %p204
      %p427 = pneg %p201
      %p428 = pneg %p225
      %p429 = pneg %p222
      %p430 = pneg %p246
      %p431 = pneg %p243
      %p432 = pneg %p267
      %p433 = pneg %p264
      %p434 = pneg %p288
      %p435 = pneg %p285
      %p436 = pneg %p309
      %p437 = pneg %p306
      %p438 = pneg %p337
      %p439 = pneg %p334
      %s440 = smul.u32 8, %s29
      %p441 = scmp.lt.s32.totalorder %s28, 1
      %s442 = scalar_select %p441, %s28, 1
      %p443 = scmp.lt.s32.totalorder %s440, 15
      %s444 = scalar_select %p443, %s440, 15
      %s445 = smul.addr %s444, 2
      %s446 = smul.addr %s442, 32
      %s447 = sadd.s32 %s445, %s446
      %s448 = smul.addr %s447, 8
      %s449 = scalar_lea.vmem %s13, %s448
      %p450 = scmp.lt.s32.totalorder %s28, 1
      %s451 = scalar_select %p450, %s28, 1
      %s452 = smul.addr %s451, 54
      %s453 = smul.addr %s452, 8
      %s454 = scalar_lea.vmem %s0, %s453
      %s455 = smul.u32 8, %s29
      %p456 = scmp.lt.s32.totalorder %s28, 1
      %s457 = scalar_select %p456, %s28, 1
      %p458 = scmp.lt.s32.totalorder %s455, 15
      %s459 = scalar_select %p458, %s455, 15
      %s460 = smul.addr %s459, 2
      %s461 = smul.addr %s457, 32
      %s462 = sadd.s32 %s460, %s461
      %s463 = smul.addr %s462, 8
      %s464 = scalar_lea.vmem %s13, %s463
      %s465 = smul.u32 8, %s29
      %s466 = smul.u32 %s29, 8
      %v467 = vlaneseq
      %v468 = vshrl.u32 %v467, 7
      %v469 = vadd.s32 %v468, 8
      %v470 = vadd.s32 %v468, 16
      %vm471 = vcmp.ge.s32.totalorder %v468, 1
      %vm472 = vcmp.ge.s32.totalorder %v469, 1
      %vm473 = vcmp.ge.s32.totalorder %v470, 1
      %vm474 = vcmp.le.s32.totalorder %v468, 16
      %vm475 = vcmp.le.s32.totalorder %v469, 16
      %vm476 = vcmp.le.s32.totalorder %v470, 16
      %vm477 = vmand %vm471, %vm474
      %vm478 = vmand %vm472, %vm475
      %vm479 = vmand %vm473, %vm476
      %v480 = vld [vmem:[%s1] sm:$0xf]
      %v481 = vld [vmem:[%s2] sm:$0x1]
      %v482 = vld [vmem:[%s3] sm:$0x1]
      %s483 = smul.u32 %s466, 24
      %s484 = scalar_lea.vmem %s454, %s483
      %v485 = vld [vmem:[%s484] sm:$0xff]
      %v486 = vld [vmem:[%s484 + $0x8] sm:$0xff]
      %v487 = vld [vmem:[%s484 + $0x10] sm:$0xff]
      %vm488 = vcmask 31744
      %489 = vst.msk [vmem:[#allocation3] sm:$0xff] %vm488, %v485
      %490 = vst.msk [vmem:[#allocation3 + $0x8] sm:$0xff] %vm488, %v486
      %491 = vst.msk [vmem:[#allocation3 + $0x10] sm:$0xff] %vm488, %v487
      %v493 = vsel %vm488, %v485, 0
      %v496 = vsel %vm488, %v486, 0
      %v499 = vsel %vm488, %v487, 0
      %vm501 = vcmask 1043456
      %v503 = vsel %vm501, %v480, 0
      %505 = vmatpush.msra.mxu0 0.0
      %506 = vmatpush.msra.mxu0 0.0
      %507 = vmatpush.msra.mxu0 0.0
      %508 = vmatpush.msra.mxu0 0.0
      %509 = vmatpush.msra.mxu0 0.0
      %510 = vmatpush.msra.mxu0 0.0
      %511 = vmatpush.msra.mxu0 0.0
      %512 = vmatpush.msra.mxu0 0.0
      %513 = vmatpush.msra.mxu0 0.0
      %514 = vmatpush.msra.mxu0 0.0
      %515 = vmatpush.msra.mxu0 0.0
      %516 = vmatpush.msra.mxu0 0.0
      %517 = vmatpush.msra.mxu0 0.0
      %518 = vmatpush.msra.mxu0 0.0
      %519 = vmatpush.msra.mxu0 0.0
      %520 = vmatpush.msra.mxu0 %v503
      %521 = vmatmul.f32.gmra.mxu0 %v493
      %v522 = vpop.f32.mrf.mxu0
      %v523 = vadd.f32 0.0, %v522
      %524 = vmatmul.f32.gmra.mxu0 %v496
      %v525 = vpop.f32.mrf.mxu0
      %v526 = vadd.f32 0.0, %v525
      %527 = vmatmul.f32.gmra.mxu0 %v499
      %v528 = vpop.f32.mrf.mxu0
      %v529 = vadd.f32 0.0, %v528
      %530 = vdwg.mxu0
      %v532 = vperm.slane %v481, 0
      %v534 = vmul.f32 %v523, %v532
      %v535 = vmul.f32 %v526, %v532
      %v536 = vmul.f32 %v529, %v532
      %v538 = vperm.slane %v482, 0
      %v540 = vadd.f32 %v534, %v538
      %v541 = vadd.f32 %v535, %v538
      %v542 = vadd.f32 %v536, %v538
      %v543 = vmax.f32 %v540, 0.0
      %v544 = vmax.f32 %v541, 0.0
      %v545 = vmax.f32 %v542, 0.0
      %p546 = scmp.ge.s32.totalorder %s466, 1
      %p547 = scmp.le.s32.totalorder %s466, 16
      %p548 = pnand %p546, %p547
      %p549 = pneg %p548
      %s550 = scalar_select %p549, 1, 0
      %v551 = vstv %s550
      %vm552 = vcmp.eq.s32.totalorder %v551, 1
      %vm553 = vmand %vm477, %vm552
      %vm554 = vmand %vm478, %vm552
      %vm555 = vmand %vm479, %vm552
      %v556 = vsel %vm553, 1, 0
      %v557 = vsel %vm554, 1, 0
      %v558 = vsel %vm555, 1, 0
      %vm559 = vcmp.eq.s32.totalorder %v556, 1
      %vm560 = vcmp.eq.s32.totalorder %v557, 1
      %vm561 = vcmp.eq.s32.totalorder %v558, 1
      %v562 = vsel %vm559, %v543, 0.0
      %v563 = vsel %vm560, %v544, 0.0
      %v564 = vsel %vm561, %v545, 0.0
      %vm565 = vcmask 130048
      %566 = vst.msk [vmem:[#allocation2] sm:$0xff] %vm565, %v562
      %567 = vst.msk [vmem:[#allocation2 + $0x8] sm:$0xff] %vm565, %v563
      %568 = vst.msk [vmem:[#allocation2 + $0x10] sm:$0xff] %vm565, %v564
      %s569 = sadd.s32 %s466, 1
      %s570 = smul.u32 %s569, 24
      %s571 = scalar_lea.vmem %s454, %s570
      %v572 = vld [vmem:[%s571] sm:$0xff]
      %v573 = vld [vmem:[%s571 + $0x8] sm:$0xff]
      %v574 = vld [vmem:[%s571 + $0x10] sm:$0xff]
      %s575 = scalar_lea.vmem [#allocation3], 24
      %576 = vst.msk [vmem:[%s575] sm:$0xff] %vm488, %v572
      %577 = vst.msk [vmem:[%s575 + $0x8] sm:$0xff] %vm488, %v573
      %578 = vst.msk [vmem:[%s575 + $0x10] sm:$0xff] %vm488, %v574
      %v580 = vsel %vm488, %v572, 0
      %v583 = vsel %vm488, %v573, 0
      %v586 = vsel %vm488, %v574, 0
      %588 = vmatpush.msra.mxu0 0.0
      %589 = vmatpush.msra.mxu0 0.0
      %590 = vmatpush.msra.mxu0 0.0
      %591 = vmatpush.msra.mxu0 0.0
      %592 = vmatpush.msra.mxu0 0.0
      %593 = vmatpush.msra.mxu0 0.0
      %594 = vmatpush.msra.mxu0 0.0
      %595 = vmatpush.msra.mxu0 0.0
      %596 = vmatpush.msra.mxu0 0.0
      %597 = vmatpush.msra.mxu0 0.0
      %598 = vmatpush.msra.mxu0 0.0
      %599 = vmatpush.msra.mxu0 0.0
      %600 = vmatpush.msra.mxu0 0.0
      %601 = vmatpush.msra.mxu0 0.0
      %602 = vmatpush.msra.mxu0 0.0
      %603 = vmatpush.msra.mxu0 %v503
      %604 = vmatmul.f32.gmra.mxu0 %v580
      %v605 = vpop.f32.mrf.mxu0
      %v606 = vadd.f32 0.0, %v605
      %607 = vmatmul.f32.gmra.mxu0 %v583
      %v608 = vpop.f32.mrf.mxu0
      %v609 = vadd.f32 0.0, %v608
      %610 = vmatmul.f32.gmra.mxu0 %v586
      %v611 = vpop.f32.mrf.mxu0
      %v612 = vadd.f32 0.0, %v611
      %613 = vdwg.mxu0
      %v614 = vmul.f32 %v606, %v532
      %v615 = vmul.f32 %v609, %v532
      %v616 = vmul.f32 %v612, %v532
      %v617 = vadd.f32 %v614, %v538
      %v618 = vadd.f32 %v615, %v538
      %v619 = vadd.f32 %v616, %v538
      %v620 = vmax.f32 %v617, 0.0
      %v621 = vmax.f32 %v618, 0.0
      %v622 = vmax.f32 %v619, 0.0
      %p623 = scmp.ge.s32.totalorder %s569, 1
      %p624 = scmp.le.s32.totalorder %s569, 16
      %p625 = pnand %p623, %p624
      %p626 = pneg %p625
      %s627 = scalar_select %p626, 1, 0
      %v628 = vstv %s627
      %vm629 = vcmp.eq.s32.totalorder %v628, 1
      %vm630 = vmand %vm477, %vm629
      %vm631 = vmand %vm478, %vm629
      %vm632 = vmand %vm479, %vm629
      %v633 = vsel %vm630, 1, 0
      %v634 = vsel %vm631, 1, 0
      %v635 = vsel %vm632, 1, 0
      %vm636 = vcmp.eq.s32.totalorder %v633, 1
      %vm637 = vcmp.eq.s32.totalorder %v634, 1
      %vm638 = vcmp.eq.s32.totalorder %v635, 1
      %v639 = vsel %vm636, %v620, 0.0
      %v640 = vsel %vm637, %v621, 0.0
      %v641 = vsel %vm638, %v622, 0.0
      %s642 = scalar_lea.vmem [#allocation2], 24
      %643 = vst.msk [vmem:[%s642] sm:$0xff] %vm565, %v639
      %644 = vst.msk [vmem:[%s642 + $0x8] sm:$0xff] %vm565, %v640
      %645 = vst.msk [vmem:[%s642 + $0x10] sm:$0xff] %vm565, %v641
      %s646 = sadd.s32 %s466, 2
      %s647 = smul.u32 %s646, 24
      %s648 = scalar_lea.vmem %s454, %s647
      %v649 = vld [vmem:[%s648] sm:$0xff]
      %v650 = vld [vmem:[%s648 + $0x8] sm:$0xff]
      %v651 = vld [vmem:[%s648 + $0x10] sm:$0xff]
      %s652 = scalar_lea.vmem [#allocation3], 48
      %653 = vst.msk [vmem:[%s652] sm:$0xff] %vm488, %v649
      %654 = vst.msk [vmem:[%s652 + $0x8] sm:$0xff] %vm488, %v650
      %655 = vst.msk [vmem:[%s652 + $0x10] sm:$0xff] %vm488, %v651
      %v657 = vsel %vm488, %v649, 0
      %v660 = vsel %vm488, %v650, 0
      %v663 = vsel %vm488, %v651, 0
      %665 = vmatpush.msra.mxu0 0.0
      %666 = vmatpush.msra.mxu0 0.0
      %667 = vmatpush.msra.mxu0 0.0
      %668 = vmatpush.msra.mxu0 0.0
      %669 = vmatpush.msra.mxu0 0.0
      %670 = vmatpush.msra.mxu0 0.0
      %671 = vmatpush.msra.mxu0 0.0
      %672 = vmatpush.msra.mxu0 0.0
      %673 = vmatpush.msra.mxu0 0.0
      %674 = vmatpush.msra.mxu0 0.0
      %675 = vmatpush.msra.mxu0 0.0
      %676 = vmatpush.msra.mxu0 0.0
      %677 = vmatpush.msra.mxu0 0.0
      %678 = vmatpush.msra.mxu0 0.0
      %679 = vmatpush.msra.mxu0 0.0
      %680 = vmatpush.msra.mxu0 %v503
      %681 = vmatmul.f32.gmra.mxu0 %v657
      %v682 = vpop.f32.mrf.mxu0
      %v683 = vadd.f32 0.0, %v682
      %684 = vmatmul.f32.gmra.mxu0 %v660
      %v685 = vpop.f32.mrf.mxu0
      %v686 = vadd.f32 0.0, %v685
      %687 = vmatmul.f32.gmra.mxu0 %v663
      %v688 = vpop.f32.mrf.mxu0
      %v689 = vadd.f32 0.0, %v688
      %690 = vdwg.mxu0
      %v691 = vmul.f32 %v683, %v532
      %v692 = vmul.f32 %v686, %v532
      %v693 = vmul.f32 %v689, %v532
      %v694 = vadd.f32 %v691, %v538
      %v695 = vadd.f32 %v692, %v538
      %v696 = vadd.f32 %v693, %v538
      %v697 = vmax.f32 %v694, 0.0
      %v698 = vmax.f32 %v695, 0.0
      %v699 = vmax.f32 %v696, 0.0
      %p700 = scmp.ge.s32.totalorder %s646, 1
      %p701 = scmp.le.s32.totalorder %s646, 16
      %p702 = pnand %p700, %p701
      %p703 = pneg %p702
      %s704 = scalar_select %p703, 1, 0
      %v705 = vstv %s704
      %vm706 = vcmp.eq.s32.totalorder %v705, 1
      %vm707 = vmand %vm477, %vm706
      %vm708 = vmand %vm478, %vm706
      %vm709 = vmand %vm479, %vm706
      %v710 = vsel %vm707, 1, 0
      %v711 = vsel %vm708, 1, 0
      %v712 = vsel %vm709, 1, 0
      %vm713 = vcmp.eq.s32.totalorder %v710, 1
      %vm714 = vcmp.eq.s32.totalorder %v711, 1
      %vm715 = vcmp.eq.s32.totalorder %v712, 1
      %v716 = vsel %vm713, %v697, 0.0
      %v717 = vsel %vm714, %v698, 0.0
      %v718 = vsel %vm715, %v699, 0.0
      %s719 = scalar_lea.vmem [#allocation2], 48
      %720 = vst.msk [vmem:[%s719] sm:$0xff] %vm565, %v716
      %721 = vst.msk [vmem:[%s719 + $0x8] sm:$0xff] %vm565, %v717
      %722 = vst.msk [vmem:[%s719 + $0x10] sm:$0xff] %vm565, %v718
      %s723 = sadd.s32 %s466, 3
      %s724 = smul.u32 %s723, 24
      %s725 = scalar_lea.vmem %s454, %s724
      %v726 = vld [vmem:[%s725] sm:$0xff]
      %v727 = vld [vmem:[%s725 + $0x8] sm:$0xff]
      %v728 = vld [vmem:[%s725 + $0x10] sm:$0xff]
      %s729 = scalar_lea.vmem [#allocation3], 72
      %730 = vst.msk [vmem:[%s729] sm:$0xff] %vm488, %v726
      %731 = vst.msk [vmem:[%s729 + $0x8] sm:$0xff] %vm488, %v727
      %732 = vst.msk [vmem:[%s729 + $0x10] sm:$0xff] %vm488, %v728
      %v734 = vsel %vm488, %v726, 0
      %v737 = vsel %vm488, %v727, 0
      %v740 = vsel %vm488, %v728, 0
      %742 = vmatpush.msra.mxu0 0.0
      %743 = vmatpush.msra.mxu0 0.0
      %744 = vmatpush.msra.mxu0 0.0
      %745 = vmatpush.msra.mxu0 0.0
      %746 = vmatpush.msra.mxu0 0.0
      %747 = vmatpush.msra.mxu0 0.0
      %748 = vmatpush.msra.mxu0 0.0
      %749 = vmatpush.msra.mxu0 0.0
      %750 = vmatpush.msra.mxu0 0.0
      %751 = vmatpush.msra.mxu0 0.0
      %752 = vmatpush.msra.mxu0 0.0
      %753 = vmatpush.msra.mxu0 0.0
      %754 = vmatpush.msra.mxu0 0.0
      %755 = vmatpush.msra.mxu0 0.0
      %756 = vmatpush.msra.mxu0 0.0
      %757 = vmatpush.msra.mxu0 %v503
      %758 = vmatmul.f32.gmra.mxu0 %v734
      %v759 = vpop.f32.mrf.mxu0
      %v760 = vadd.f32 0.0, %v759
      %761 = vmatmul.f32.gmra.mxu0 %v737
      %v762 = vpop.f32.mrf.mxu0
      %v763 = vadd.f32 0.0, %v762
      %764 = vmatmul.f32.gmra.mxu0 %v740
      %v765 = vpop.f32.mrf.mxu0
      %v766 = vadd.f32 0.0, %v765
      %767 = vdwg.mxu0
      %v768 = vmul.f32 %v760, %v532
      %v769 = vmul.f32 %v763, %v532
      %v770 = vmul.f32 %v766, %v532
      %v771 = vadd.f32 %v768, %v538
      %v772 = vadd.f32 %v769, %v538
      %v773 = vadd.f32 %v770, %v538
      %v774 = vmax.f32 %v771, 0.0
      %v775 = vmax.f32 %v772, 0.0
      %v776 = vmax.f32 %v773, 0.0
      %p777 = scmp.ge.s32.totalorder %s723, 1
      %p778 = scmp.le.s32.totalorder %s723, 16
      %p779 = pnand %p777, %p778
      %p780 = pneg %p779
      %s781 = scalar_select %p780, 1, 0
      %v782 = vstv %s781
      %vm783 = vcmp.eq.s32.totalorder %v782, 1
      %vm784 = vmand %vm477, %vm783
      %vm785 = vmand %vm478, %vm783
      %vm786 = vmand %vm479, %vm783
      %v787 = vsel %vm784, 1, 0
      %v788 = vsel %vm785, 1, 0
      %v789 = vsel %vm786, 1, 0
      %vm790 = vcmp.eq.s32.totalorder %v787, 1
      %vm791 = vcmp.eq.s32.totalorder %v788, 1
      %vm792 = vcmp.eq.s32.totalorder %v789, 1
      %v793 = vsel %vm790, %v774, 0.0
      %v794 = vsel %vm791, %v775, 0.0
      %v795 = vsel %vm792, %v776, 0.0
      %s796 = scalar_lea.vmem [#allocation2], 72
      %797 = vst.msk [vmem:[%s796] sm:$0xff] %vm565, %v793
      %798 = vst.msk [vmem:[%s796 + $0x8] sm:$0xff] %vm565, %v794
      %799 = vst.msk [vmem:[%s796 + $0x10] sm:$0xff] %vm565, %v795
      %s800 = sadd.s32 %s466, 4
      %s801 = smul.u32 %s800, 24
      %s802 = scalar_lea.vmem %s454, %s801
      %v803 = vld [vmem:[%s802] sm:$0xff]
      %v804 = vld [vmem:[%s802 + $0x8] sm:$0xff]
      %v805 = vld [vmem:[%s802 + $0x10] sm:$0xff]
      %s806 = scalar_lea.vmem [#allocation3], 96
      %807 = vst.msk [vmem:[%s806] sm:$0xff] %vm488, %v803
      %808 = vst.msk [vmem:[%s806 + $0x8] sm:$0xff] %vm488, %v804
      %809 = vst.msk [vmem:[%s806 + $0x10] sm:$0xff] %vm488, %v805
      %v811 = vsel %vm488, %v803, 0
      %v814 = vsel %vm488, %v804, 0
      %v817 = vsel %vm488, %v805, 0
      %819 = vmatpush.msra.mxu0 0.0
      %820 = vmatpush.msra.mxu0 0.0
      %821 = vmatpush.msra.mxu0 0.0
      %822 = vmatpush.msra.mxu0 0.0
      %823 = vmatpush.msra.mxu0 0.0
      %824 = vmatpush.msra.mxu0 0.0
      %825 = vmatpush.msra.mxu0 0.0
      %826 = vmatpush.msra.mxu0 0.0
      %827 = vmatpush.msra.mxu0 0.0
      %828 = vmatpush.msra.mxu0 0.0
      %829 = vmatpush.msra.mxu0 0.0
      %830 = vmatpush.msra.mxu0 0.0
      %831 = vmatpush.msra.mxu0 0.0
      %832 = vmatpush.msra.mxu0 0.0
      %833 = vmatpush.msra.mxu0 0.0
      %834 = vmatpush.msra.mxu0 %v503
      %835 = vmatmul.f32.gmra.mxu0 %v811
      %v836 = vpop.f32.mrf.mxu0
      %v837 = vadd.f32 0.0, %v836
      %838 = vmatmul.f32.gmra.mxu0 %v814
      %v839 = vpop.f32.mrf.mxu0
      %v840 = vadd.f32 0.0, %v839
      %841 = vmatmul.f32.gmra.mxu0 %v817
      %v842 = vpop.f32.mrf.mxu0
      %v843 = vadd.f32 0.0, %v842
      %844 = vdwg.mxu0
      %v845 = vmul.f32 %v837, %v532
      %v846 = vmul.f32 %v840, %v532
      %v847 = vmul.f32 %v843, %v532
      %v848 = vadd.f32 %v845, %v538
      %v849 = vadd.f32 %v846, %v538
      %v850 = vadd.f32 %v847, %v538
      %v851 = vmax.f32 %v848, 0.0
      %v852 = vmax.f32 %v849, 0.0
      %v853 = vmax.f32 %v850, 0.0
      %p854 = scmp.ge.s32.totalorder %s800, 1
      %p855 = scmp.le.s32.totalorder %s800, 16
      %p856 = pnand %p854, %p855
      %p857 = pneg %p856
      %s858 = scalar_select %p857, 1, 0
      %v859 = vstv %s858
      %vm860 = vcmp.eq.s32.totalorder %v859, 1
      %vm861 = vmand %vm477, %vm860
      %vm862 = vmand %vm478, %vm860
      %vm863 = vmand %vm479, %vm860
      %v864 = vsel %vm861, 1, 0
      %v865 = vsel %vm862, 1, 0
      %v866 = vsel %vm863, 1, 0
      %vm867 = vcmp.eq.s32.totalorder %v864, 1
      %vm868 = vcmp.eq.s32.totalorder %v865, 1
      %vm869 = vcmp.eq.s32.totalorder %v866, 1
      %v870 = vsel %vm867, %v851, 0.0
      %v871 = vsel %vm868, %v852, 0.0
      %v872 = vsel %vm869, %v853, 0.0
      %s873 = scalar_lea.vmem [#allocation2], 96
      %874 = vst.msk [vmem:[%s873] sm:$0xff] %vm565, %v870
      %875 = vst.msk [vmem:[%s873 + $0x8] sm:$0xff] %vm565, %v871
      %876 = vst.msk [vmem:[%s873 + $0x10] sm:$0xff] %vm565, %v872
      %s877 = sadd.s32 %s466, 5
      %s878 = smul.u32 %s877, 24
      %s879 = scalar_lea.vmem %s454, %s878
      %v880 = vld [vmem:[%s879] sm:$0xff]
      %v881 = vld [vmem:[%s879 + $0x8] sm:$0xff]
      %v882 = vld [vmem:[%s879 + $0x10] sm:$0xff]
      %s883 = scalar_lea.vmem [#allocation3], 120
      %884 = vst.msk [vmem:[%s883] sm:$0xff] %vm488, %v880
      %885 = vst.msk [vmem:[%s883 + $0x8] sm:$0xff] %vm488, %v881
      %886 = vst.msk [vmem:[%s883 + $0x10] sm:$0xff] %vm488, %v882
      %v888 = vsel %vm488, %v880, 0
      %v891 = vsel %vm488, %v881, 0
      %v894 = vsel %vm488, %v882, 0
      %896 = vmatpush.msra.mxu0 0.0
      %897 = vmatpush.msra.mxu0 0.0
      %898 = vmatpush.msra.mxu0 0.0
      %899 = vmatpush.msra.mxu0 0.0
      %900 = vmatpush.msra.mxu0 0.0
      %901 = vmatpush.msra.mxu0 0.0
      %902 = vmatpush.msra.mxu0 0.0
      %903 = vmatpush.msra.mxu0 0.0
      %904 = vmatpush.msra.mxu0 0.0
      %905 = vmatpush.msra.mxu0 0.0
      %906 = vmatpush.msra.mxu0 0.0
      %907 = vmatpush.msra.mxu0 0.0
      %908 = vmatpush.msra.mxu0 0.0
      %909 = vmatpush.msra.mxu0 0.0
      %910 = vmatpush.msra.mxu0 0.0
      %911 = vmatpush.msra.mxu0 %v503
      %912 = vmatmul.f32.gmra.mxu0 %v888
      %v913 = vpop.f32.mrf.mxu0
      %v914 = vadd.f32 0.0, %v913
      %915 = vmatmul.f32.gmra.mxu0 %v891
      %v916 = vpop.f32.mrf.mxu0
      %v917 = vadd.f32 0.0, %v916
      %918 = vmatmul.f32.gmra.mxu0 %v894
      %v919 = vpop.f32.mrf.mxu0
      %v920 = vadd.f32 0.0, %v919
      %921 = vdwg.mxu0
      %v922 = vmul.f32 %v914, %v532
      %v923 = vmul.f32 %v917, %v532
      %v924 = vmul.f32 %v920, %v532
      %v925 = vadd.f32 %v922, %v538
      %v926 = vadd.f32 %v923, %v538
      %v927 = vadd.f32 %v924, %v538
      %v928 = vmax.f32 %v925, 0.0
      %v929 = vmax.f32 %v926, 0.0
      %v930 = vmax.f32 %v927, 0.0
      %p931 = scmp.ge.s32.totalorder %s877, 1
      %p932 = scmp.le.s32.totalorder %s877, 16
      %p933 = pnand %p931, %p932
      %p934 = pneg %p933
      %s935 = scalar_select %p934, 1, 0
      %v936 = vstv %s935
      %vm937 = vcmp.eq.s32.totalorder %v936, 1
      %vm938 = vmand %vm477, %vm937
      %vm939 = vmand %vm478, %vm937
      %vm940 = vmand %vm479, %vm937
      %v941 = vsel %vm938, 1, 0
      %v942 = vsel %vm939, 1, 0
      %v943 = vsel %vm940, 1, 0
      %vm944 = vcmp.eq.s32.totalorder %v941, 1
      %vm945 = vcmp.eq.s32.totalorder %v942, 1
      %vm946 = vcmp.eq.s32.totalorder %v943, 1
      %v947 = vsel %vm944, %v928, 0.0
      %v948 = vsel %vm945, %v929, 0.0
      %v949 = vsel %vm946, %v930, 0.0
      %s950 = scalar_lea.vmem [#allocation2], 120
      %951 = vst.msk [vmem:[%s950] sm:$0xff] %vm565, %v947
      %952 = vst.msk [vmem:[%s950 + $0x8] sm:$0xff] %vm565, %v948
      %953 = vst.msk [vmem:[%s950 + $0x10] sm:$0xff] %vm565, %v949
      %s954 = sadd.s32 %s466, 6
      %s955 = smul.u32 %s954, 24
      %s956 = scalar_lea.vmem %s454, %s955
      %v957 = vld [vmem:[%s956] sm:$0xff]
      %v958 = vld [vmem:[%s956 + $0x8] sm:$0xff]
      %v959 = vld [vmem:[%s956 + $0x10] sm:$0xff]
      %s960 = scalar_lea.vmem [#allocation3], 144
      %961 = vst.msk [vmem:[%s960] sm:$0xff] %vm488, %v957
      %962 = vst.msk [vmem:[%s960 + $0x8] sm:$0xff] %vm488, %v958
      %963 = vst.msk [vmem:[%s960 + $0x10] sm:$0xff] %vm488, %v959
      %v965 = vsel %vm488, %v957, 0
      %v968 = vsel %vm488, %v958, 0
      %v971 = vsel %vm488, %v959, 0
      %973 = vmatpush.msra.mxu0 0.0
      %974 = vmatpush.msra.mxu0 0.0
      %975 = vmatpush.msra.mxu0 0.0
      %976 = vmatpush.msra.mxu0 0.0
      %977 = vmatpush.msra.mxu0 0.0
      %978 = vmatpush.msra.mxu0 0.0
      %979 = vmatpush.msra.mxu0 0.0
      %980 = vmatpush.msra.mxu0 0.0
      %981 = vmatpush.msra.mxu0 0.0
      %982 = vmatpush.msra.mxu0 0.0
      %983 = vmatpush.msra.mxu0 0.0
      %984 = vmatpush.msra.mxu0 0.0
      %985 = vmatpush.msra.mxu0 0.0
      %986 = vmatpush.msra.mxu0 0.0
      %987 = vmatpush.msra.mxu0 0.0
      %988 = vmatpush.msra.mxu0 %v503
      %989 = vmatmul.f32.gmra.mxu0 %v965
      %v990 = vpop.f32.mrf.mxu0
      %v991 = vadd.f32 0.0, %v990
      %992 = vmatmul.f32.gmra.mxu0 %v968
      %v993 = vpop.f32.mrf.mxu0
      %v994 = vadd.f32 0.0, %v993
      %995 = vmatmul.f32.gmra.mxu0 %v971
      %v996 = vpop.f32.mrf.mxu0
      %v997 = vadd.f32 0.0, %v996
      %998 = vdwg.mxu0
      %v999 = vmul.f32 %v991, %v532
      %v1000 = vmul.f32 %v994, %v532
      %v1001 = vmul.f32 %v997, %v532
      %v1002 = vadd.f32 %v999, %v538
      %v1003 = vadd.f32 %v1000, %v538
      %v1004 = vadd.f32 %v1001, %v538
      %v1005 = vmax.f32 %v1002, 0.0
      %v1006 = vmax.f32 %v1003, 0.0
      %v1007 = vmax.f32 %v1004, 0.0
      %p1008 = scmp.ge.s32.totalorder %s954, 1
      %p1009 = scmp.le.s32.totalorder %s954, 16
      %p1010 = pnand %p1008, %p1009
      %p1011 = pneg %p1010
      %s1012 = scalar_select %p1011, 1, 0
      %v1013 = vstv %s1012
      %vm1014 = vcmp.eq.s32.totalorder %v1013, 1
      %vm1015 = vmand %vm477, %vm1014
      %vm1016 = vmand %vm478, %vm1014
      %vm1017 = vmand %vm479, %vm1014
      %v1018 = vsel %vm1015, 1, 0
      %v1019 = vsel %vm1016, 1, 0
      %v1020 = vsel %vm1017, 1, 0
      %vm1021 = vcmp.eq.s32.totalorder %v1018, 1
      %vm1022 = vcmp.eq.s32.totalorder %v1019, 1
      %vm1023 = vcmp.eq.s32.totalorder %v1020, 1
      %v1024 = vsel %vm1021, %v1005, 0.0
      %v1025 = vsel %vm1022, %v1006, 0.0
      %v1026 = vsel %vm1023, %v1007, 0.0
      %s1027 = scalar_lea.vmem [#allocation2], 144
      %1028 = vst.msk [vmem:[%s1027] sm:$0xff] %vm565, %v1024
      %1029 = vst.msk [vmem:[%s1027 + $0x8] sm:$0xff] %vm565, %v1025
      %1030 = vst.msk [vmem:[%s1027 + $0x10] sm:$0xff] %vm565, %v1026
      %s1031 = sadd.s32 %s466, 7
      %s1032 = smul.u32 %s1031, 24
      %s1033 = scalar_lea.vmem %s454, %s1032
      %v1034 = vld [vmem:[%s1033] sm:$0xff]
      %v1035 = vld [vmem:[%s1033 + $0x8] sm:$0xff]
      %v1036 = vld [vmem:[%s1033 + $0x10] sm:$0xff]
      %s1037 = scalar_lea.vmem [#allocation3], 168
      %1038 = vst.msk [vmem:[%s1037] sm:$0xff] %vm488, %v1034
      %1039 = vst.msk [vmem:[%s1037 + $0x8] sm:$0xff] %vm488, %v1035
      %1040 = vst.msk [vmem:[%s1037 + $0x10] sm:$0xff] %vm488, %v1036
      %v1042 = vsel %vm488, %v1034, 0
      %v1045 = vsel %vm488, %v1035, 0
      %v1048 = vsel %vm488, %v1036, 0
      %1050 = vmatpush.msra.mxu0 0.0
      %1051 = vmatpush.msra.mxu0 0.0
      %1052 = vmatpush.msra.mxu0 0.0
      %1053 = vmatpush.msra.mxu0 0.0
      %1054 = vmatpush.msra.mxu0 0.0
      %1055 = vmatpush.msra.mxu0 0.0
      %1056 = vmatpush.msra.mxu0 0.0
      %1057 = vmatpush.msra.mxu0 0.0
      %1058 = vmatpush.msra.mxu0 0.0
      %1059 = vmatpush.msra.mxu0 0.0
      %1060 = vmatpush.msra.mxu0 0.0
      %1061 = vmatpush.msra.mxu0 0.0
      %1062 = vmatpush.msra.mxu0 0.0
      %1063 = vmatpush.msra.mxu0 0.0
      %1064 = vmatpush.msra.mxu0 0.0
      %1065 = vmatpush.msra.mxu0 %v503
      %1066 = vmatmul.f32.gmra.mxu0 %v1042
      %v1067 = vpop.f32.mrf.mxu0
      %v1068 = vadd.f32 0.0, %v1067
      %1069 = vmatmul.f32.gmra.mxu0 %v1045
      %v1070 = vpop.f32.mrf.mxu0
      %v1071 = vadd.f32 0.0, %v1070
      %1072 = vmatmul.f32.gmra.mxu0 %v1048
      %v1073 = vpop.f32.mrf.mxu0
      %v1074 = vadd.f32 0.0, %v1073
      %1075 = vdwg.mxu0
      %v1076 = vmul.f32 %v1068, %v532
      %v1077 = vmul.f32 %v1071, %v532
      %v1078 = vmul.f32 %v1074, %v532
      %v1079 = vadd.f32 %v1076, %v538
      %v1080 = vadd.f32 %v1077, %v538
      %v1081 = vadd.f32 %v1078, %v538
      %v1082 = vmax.f32 %v1079, 0.0
      %v1083 = vmax.f32 %v1080, 0.0
      %v1084 = vmax.f32 %v1081, 0.0
      %p1085 = scmp.ge.s32.totalorder %s1031, 1
      %p1086 = scmp.le.s32.totalorder %s1031, 16
      %p1087 = pnand %p1085, %p1086
      %p1088 = pneg %p1087
      %s1089 = scalar_select %p1088, 1, 0
      %v1090 = vstv %s1089
      %vm1091 = vcmp.eq.s32.totalorder %v1090, 1
      %vm1092 = vmand %vm477, %vm1091
      %vm1093 = vmand %vm478, %vm1091
      %vm1094 = vmand %vm479, %vm1091
      %v1095 = vsel %vm1092, 1, 0
      %v1096 = vsel %vm1093, 1, 0
      %v1097 = vsel %vm1094, 1, 0
      %vm1098 = vcmp.eq.s32.totalorder %v1095, 1
      %vm1099 = vcmp.eq.s32.totalorder %v1096, 1
      %vm1100 = vcmp.eq.s32.totalorder %v1097, 1
      %v1101 = vsel %vm1098, %v1082, 0.0
      %v1102 = vsel %vm1099, %v1083, 0.0
      %v1103 = vsel %vm1100, %v1084, 0.0
      %s1104 = scalar_lea.vmem [#allocation2], 168
      %1105 = vst.msk [vmem:[%s1104] sm:$0xff] %vm565, %v1101
      %1106 = vst.msk [vmem:[%s1104 + $0x8] sm:$0xff] %vm565, %v1102
      %1107 = vst.msk [vmem:[%s1104 + $0x10] sm:$0xff] %vm565, %v1103
      %s1108 = sadd.s32 %s466, 8
      %s1109 = smul.u32 %s1108, 24
      %s1110 = scalar_lea.vmem %s454, %s1109
      %v1111 = vld [vmem:[%s1110] sm:$0xff]
      %v1112 = vld [vmem:[%s1110 + $0x8] sm:$0xff]
      %v1113 = vld [vmem:[%s1110 + $0x10] sm:$0xff]
      %s1114 = scalar_lea.vmem [#allocation3], 192
      %1115 = vst.msk [vmem:[%s1114] sm:$0xff] %vm488, %v1111
      %1116 = vst.msk [vmem:[%s1114 + $0x8] sm:$0xff] %vm488, %v1112
      %1117 = vst.msk [vmem:[%s1114 + $0x10] sm:$0xff] %vm488, %v1113
      %v1119 = vsel %vm488, %v1111, 0
      %v1122 = vsel %vm488, %v1112, 0
      %v1125 = vsel %vm488, %v1113, 0
      %1127 = vmatpush.msra.mxu0 0.0
      %1128 = vmatpush.msra.mxu0 0.0
      %1129 = vmatpush.msra.mxu0 0.0
      %1130 = vmatpush.msra.mxu0 0.0
      %1131 = vmatpush.msra.mxu0 0.0
      %1132 = vmatpush.msra.mxu0 0.0
      %1133 = vmatpush.msra.mxu0 0.0
      %1134 = vmatpush.msra.mxu0 0.0
      %1135 = vmatpush.msra.mxu0 0.0
      %1136 = vmatpush.msra.mxu0 0.0
      %1137 = vmatpush.msra.mxu0 0.0
      %1138 = vmatpush.msra.mxu0 0.0
      %1139 = vmatpush.msra.mxu0 0.0
      %1140 = vmatpush.msra.mxu0 0.0
      %1141 = vmatpush.msra.mxu0 0.0
      %1142 = vmatpush.msra.mxu0 %v503
      %1143 = vmatmul.f32.gmra.mxu0 %v1119
      %v1144 = vpop.f32.mrf.mxu0
      %v1145 = vadd.f32 0.0, %v1144
      %1146 = vmatmul.f32.gmra.mxu0 %v1122
      %v1147 = vpop.f32.mrf.mxu0
      %v1148 = vadd.f32 0.0, %v1147
      %1149 = vmatmul.f32.gmra.mxu0 %v1125
      %v1150 = vpop.f32.mrf.mxu0
      %v1151 = vadd.f32 0.0, %v1150
      %1152 = vdwg.mxu0
      %v1153 = vmul.f32 %v1145, %v532
      %v1154 = vmul.f32 %v1148, %v532
      %v1155 = vmul.f32 %v1151, %v532
      %v1156 = vadd.f32 %v1153, %v538
      %v1157 = vadd.f32 %v1154, %v538
      %v1158 = vadd.f32 %v1155, %v538
      %v1159 = vmax.f32 %v1156, 0.0
      %v1160 = vmax.f32 %v1157, 0.0
      %v1161 = vmax.f32 %v1158, 0.0
      %p1162 = scmp.ge.s32.totalorder %s1108, 1
      %p1163 = scmp.le.s32.totalorder %s1108, 16
      %p1164 = pnand %p1162, %p1163
      %p1165 = pneg %p1164
      %s1166 = scalar_select %p1165, 1, 0
      %v1167 = vstv %s1166
      %vm1168 = vcmp.eq.s32.totalorder %v1167, 1
      %vm1169 = vmand %vm477, %vm1168
      %vm1170 = vmand %vm478, %vm1168
      %vm1171 = vmand %vm479, %vm1168
      %v1172 = vsel %vm1169, 1, 0
      %v1173 = vsel %vm1170, 1, 0
      %v1174 = vsel %vm1171, 1, 0
      %vm1175 = vcmp.eq.s32.totalorder %v1172, 1
      %vm1176 = vcmp.eq.s32.totalorder %v1173, 1
      %vm1177 = vcmp.eq.s32.totalorder %v1174, 1
      %v1178 = vsel %vm1175, %v1159, 0.0
      %v1179 = vsel %vm1176, %v1160, 0.0
      %v1180 = vsel %vm1177, %v1161, 0.0
      %s1181 = scalar_lea.vmem [#allocation2], 192
      %1182 = vst.msk [vmem:[%s1181] sm:$0xff] %vm565, %v1178
      %1183 = vst.msk [vmem:[%s1181 + $0x8] sm:$0xff] %vm565, %v1179
      %1184 = vst.msk [vmem:[%s1181 + $0x10] sm:$0xff] %vm565, %v1180
      %s1185 = sadd.s32 %s466, 9
      %s1186 = smul.u32 %s1185, 24
      %s1187 = scalar_lea.vmem %s454, %s1186
      %v1188 = vld [vmem:[%s1187] sm:$0xff]
      %v1189 = vld [vmem:[%s1187 + $0x8] sm:$0xff]
      %v1190 = vld [vmem:[%s1187 + $0x10] sm:$0xff]
      %s1191 = scalar_lea.vmem [#allocation3], 216
      %1192 = vst.msk [vmem:[%s1191] sm:$0xff] %vm488, %v1188
      %1193 = vst.msk [vmem:[%s1191 + $0x8] sm:$0xff] %vm488, %v1189
      %1194 = vst.msk [vmem:[%s1191 + $0x10] sm:$0xff] %vm488, %v1190
      %v1196 = vsel %vm488, %v1188, 0
      %v1199 = vsel %vm488, %v1189, 0
      %v1202 = vsel %vm488, %v1190, 0
      %1204 = vmatpush.msra.mxu0 0.0
      %1205 = vmatpush.msra.mxu0 0.0
      %1206 = vmatpush.msra.mxu0 0.0
      %1207 = vmatpush.msra.mxu0 0.0
      %1208 = vmatpush.msra.mxu0 0.0
      %1209 = vmatpush.msra.mxu0 0.0
      %1210 = vmatpush.msra.mxu0 0.0
      %1211 = vmatpush.msra.mxu0 0.0
      %1212 = vmatpush.msra.mxu0 0.0
      %1213 = vmatpush.msra.mxu0 0.0
      %1214 = vmatpush.msra.mxu0 0.0
      %1215 = vmatpush.msra.mxu0 0.0
      %1216 = vmatpush.msra.mxu0 0.0
      %1217 = vmatpush.msra.mxu0 0.0
      %1218 = vmatpush.msra.mxu0 0.0
      %1219 = vmatpush.msra.mxu0 %v503
      %1220 = vmatmul.f32.gmra.mxu0 %v1196
      %v1221 = vpop.f32.mrf.mxu0
      %v1222 = vadd.f32 0.0, %v1221
      %1223 = vmatmul.f32.gmra.mxu0 %v1199
      %v1224 = vpop.f32.mrf.mxu0
      %v1225 = vadd.f32 0.0, %v1224
      %1226 = vmatmul.f32.gmra.mxu0 %v1202
      %v1227 = vpop.f32.mrf.mxu0
      %v1228 = vadd.f32 0.0, %v1227
      %1229 = vdwg.mxu0
      %v1230 = vmul.f32 %v1222, %v532
      %v1231 = vmul.f32 %v1225, %v532
      %v1232 = vmul.f32 %v1228, %v532
      %v1233 = vadd.f32 %v1230, %v538
      %v1234 = vadd.f32 %v1231, %v538
      %v1235 = vadd.f32 %v1232, %v538
      %v1236 = vmax.f32 %v1233, 0.0
      %v1237 = vmax.f32 %v1234, 0.0
      %v1238 = vmax.f32 %v1235, 0.0
      %p1239 = scmp.ge.s32.totalorder %s1185, 1
      %p1240 = scmp.le.s32.totalorder %s1185, 16
      %p1241 = pnand %p1239, %p1240
      %p1242 = pneg %p1241
      %s1243 = scalar_select %p1242, 1, 0
      %v1244 = vstv %s1243
      %vm1245 = vcmp.eq.s32.totalorder %v1244, 1
      %vm1246 = vmand %vm477, %vm1245
      %vm1247 = vmand %vm478, %vm1245
      %vm1248 = vmand %vm479, %vm1245
      %v1249 = vsel %vm1246, 1, 0
      %v1250 = vsel %vm1247, 1, 0
      %v1251 = vsel %vm1248, 1, 0
      %vm1252 = vcmp.eq.s32.totalorder %v1249, 1
      %vm1253 = vcmp.eq.s32.totalorder %v1250, 1
      %vm1254 = vcmp.eq.s32.totalorder %v1251, 1
      %v1255 = vsel %vm1252, %v1236, 0.0
      %v1256 = vsel %vm1253, %v1237, 0.0
      %v1257 = vsel %vm1254, %v1238, 0.0
      %s1258 = scalar_lea.vmem [#allocation2], 216
      %1259 = vst.msk [vmem:[%s1258] sm:$0xff] %vm565, %v1255
      %1260 = vst.msk [vmem:[%s1258 + $0x8] sm:$0xff] %vm565, %v1256
      %1261 = vst.msk [vmem:[%s1258 + $0x10] sm:$0xff] %vm565, %v1257
      %v1262 = vld [vmem:[%s5] sm:$0x1]
      %v1263 = vld [vmem:[%s6] sm:$0x1]
      %v1264 = vld [vmem:[%s7] sm:$0xff]
      %v1265 = vld [vmem:[%s7 + $0x8] sm:$0xff]
      %v1266 = vld [vmem:[%s8] sm:$0x1]
      %v1267 = vld [vmem:[%s9] sm:$0x1]
      %v1268 = vld [vmem:[%s10] sm:$0xf]
      %v1269 = vld [vmem:[%s11] sm:$0x1]
      %v1270 = vld [vmem:[%s12] sm:$0x1]
      %v1271 = vld [vmem:[#allocation2] sm:$0xff]
      %v1272 = vld [vmem:[#allocation2 + $0x8] sm:$0xff]
      %v1273 = vld [vmem:[%s4] sm:$0x1]
      %v1274 = vperm.slane %v1273, 0
      %v1275 = vmul.f32 %v1271, %v1274
      %v1276 = vmul.f32 %v1272, %v1274
      %v1277 = vadd.f32 %v1275, 0.0
      %v1278 = vadd.f32 %v1276, 0.0
      %v1279 = vld [vmem:[#allocation2 + $0x1] sm:$0xff]
      %v1280 = vld [vmem:[#allocation2 + $0x9] sm:$0xff]
      %v1281 = vld [vmem:[%s4 + $0x1] sm:$0x1]
      %v1282 = vperm.slane %v1281, 0
      %v1283 = vmul.f32 %v1279, %v1282
      %v1284 = vmul.f32 %v1280, %v1282
      %v1285 = vadd.f32 %v1277, %v1283
      %v1286 = vadd.f32 %v1278, %v1284
      %v1287 = vld [vmem:[#allocation2 + $0x2] sm:$0xff]
      %v1288 = vld [vmem:[#allocation2 + $0xa] sm:$0xff]
      %v1289 = vld [vmem:[%s4 + $0x2] sm:$0x1]
      %v1290 = vperm.slane %v1289, 0
      %v1291 = vmul.f32 %v1287, %v1290
      %v1292 = vmul.f32 %v1288, %v1290
      %v1293 = vadd.f32 %v1285, %v1291
      %v1294 = vadd.f32 %v1286, %v1292
      %v1295 = vld [vmem:[%s642] sm:$0xff]
      %v1296 = vld [vmem:[%s642 + $0x8] sm:$0xff]
      %v1297 = vld [vmem:[%s4 + $0x3] sm:$0x1]
      %v1298 = vperm.slane %v1297, 0
      %v1299 = vmul.f32 %v1295, %v1298
      %v1300 = vmul.f32 %v1296, %v1298
      %v1301 = vadd.f32 %v1293, %v1299
      %v1302 = vadd.f32 %v1294, %v1300
      %v1303 = vld [vmem:[%s642 + $0x1] sm:$0xff]
      %v1304 = vld [vmem:[%s642 + $0x9] sm:$0xff]
      %v1305 = vld [vmem:[%s4 + $0x4] sm:$0x1]
      %v1306 = vperm.slane %v1305, 0
      %v1307 = vmul.f32 %v1303, %v1306
      %v1308 = vmul.f32 %v1304, %v1306
      %v1309 = vadd.f32 %v1301, %v1307
      %v1310 = vadd.f32 %v1302, %v1308
      %v1311 = vld [vmem:[%s642 + $0x2] sm:$0xff]
      %v1312 = vld [vmem:[%s642 + $0xa] sm:$0xff]
      %v1313 = vld [vmem:[%s4 + $0x5] sm:$0x1]
      %v1314 = vperm.slane %v1313, 0
      %v1315 = vmul.f32 %v1311, %v1314
      %v1316 = vmul.f32 %v1312, %v1314
      %v1317 = vadd.f32 %v1309, %v1315
      %v1318 = vadd.f32 %v1310, %v1316
      %v1319 = vld [vmem:[%s719] sm:$0xff]
      %v1320 = vld [vmem:[%s719 + $0x8] sm:$0xff]
      %v1321 = vld [vmem:[%s4 + $0x6] sm:$0x1]
      %v1322 = vperm.slane %v1321, 0
      %v1323 = vmul.f32 %v1319, %v1322
      %v1324 = vmul.f32 %v1320, %v1322
      %v1325 = vadd.f32 %v1317, %v1323
      %v1326 = vadd.f32 %v1318, %v1324
      %v1327 = vld [vmem:[%s719 + $0x1] sm:$0xff]
      %v1328 = vld [vmem:[%s719 + $0x9] sm:$0xff]
      %v1329 = vld [vmem:[%s4 + $0x7] sm:$0x1]
      %v1330 = vperm.slane %v1329, 0
      %v1331 = vmul.f32 %v1327, %v1330
      %v1332 = vmul.f32 %v1328, %v1330
      %v1333 = vadd.f32 %v1325, %v1331
      %v1334 = vadd.f32 %v1326, %v1332
      %v1335 = vld [vmem:[%s719 + $0x2] sm:$0xff]
      %v1336 = vld [vmem:[%s719 + $0xa] sm:$0xff]
      %v1337 = vld [vmem:[%s4 + $0x8] sm:$0x1]
      %v1338 = vperm.slane %v1337, 0
      %v1339 = vmul.f32 %v1335, %v1338
      %v1340 = vmul.f32 %v1336, %v1338
      %v1341 = vadd.f32 %v1333, %v1339
      %v1342 = vadd.f32 %v1334, %v1340
      %v1344 = vperm.slane %v1262, 0
      %v1346 = vmul.f32 %v1341, %v1344
      %v1347 = vmul.f32 %v1342, %v1344
      %v1349 = vperm.slane %v1263, 0
      %v1351 = vadd.f32 %v1346, %v1349
      %v1352 = vadd.f32 %v1347, %v1349
      %v1353 = vmax.f32 %v1351, 0.0
      %v1354 = vmax.f32 %v1352, 0.0
      %v1356 = vsel %vm565, %v1353, 0
      %v1359 = vsel %vm565, %v1354, 0
      %1361 = vmatpush.msra.mxu0 0.0
      %1362 = vmatpush.msra.mxu0 0.0
      %1363 = vmatpush.msra.mxu0 0.0
      %1364 = vmatpush.msra.mxu0 0.0
      %1365 = vmatpush.msra.mxu0 0.0
      %1366 = vmatpush.msra.mxu0 0.0
      %1367 = vmatpush.msra.mxu0 0.0
      %1368 = vmatpush.msra.mxu0 0.0
      %1369 = vmatpush.msra.mxu0 0.0
      %1370 = vmatpush.msra.mxu0 0.0
      %1371 = vmatpush.msra.mxu0 0.0
      %1372 = vmatpush.msra.mxu0 0.0
      %1373 = vmatpush.msra.mxu0 0.0
      %1374 = vmatpush.msra.mxu0 0.0
      %1375 = vmatpush.msra.mxu0 %v1265
      %1376 = vmatpush.msra.mxu0 %v1264
      %1377 = vmatmul.f32.gmra.mxu0 %v1356
      %v1378 = vpop.f32.mrf.mxu0
      %v1379 = vadd.f32 0.0, %v1378
      %1380 = vmatmul.f32.gmra.mxu0 %v1359
      %v1381 = vpop.f32.mrf.mxu0
      %v1382 = vadd.f32 0.0, %v1381
      %1383 = vdwg.mxu0
      %v1385 = vperm.slane %v1266, 0
      %v1387 = vmul.f32 %v1379, %v1385
      %v1388 = vmul.f32 %v1382, %v1385
      %v1390 = vperm.slane %v1267, 0
      %v1392 = vadd.f32 %v1387, %v1390
      %v1393 = vadd.f32 %v1388, %v1390
      %v1394 = vld [vmem:[%s575 + $0x1] sm:$0xff]
      %v1395 = vld [vmem:[%s575 + $0x9] sm:$0xff]
      %v1397 = vsel %vm488, %v1394, 0
      %v1400 = vsel %vm488, %v1395, 0
      %v1403 = vsel %vm501, %v1268, 0
      %1405 = vmatpush.msra.mxu0 0.0
      %1406 = vmatpush.msra.mxu0 0.0
      %1407 = vmatpush.msra.mxu0 0.0
      %1408 = vmatpush.msra.mxu0 0.0
      %1409 = vmatpush.msra.mxu0 0.0
      %1410 = vmatpush.msra.mxu0 0.0
      %1411 = vmatpush.msra.mxu0 0.0
      %1412 = vmatpush.msra.mxu0 0.0
      %1413 = vmatpush.msra.mxu0 0.0
      %1414 = vmatpush.msra.mxu0 0.0
      %1415 = vmatpush.msra.mxu0 0.0
      %1416 = vmatpush.msra.mxu0 0.0
      %1417 = vmatpush.msra.mxu0 0.0
      %1418 = vmatpush.msra.mxu0 0.0
      %1419 = vmatpush.msra.mxu0 0.0
      %1420 = vmatpush.msra.mxu0 %v1403
      %1421 = vmatmul.f32.gmra.mxu0 %v1397
      %v1422 = vpop.f32.mrf.mxu0
      %v1423 = vadd.f32 0.0, %v1422
      %1424 = vmatmul.f32.gmra.mxu0 %v1400
      %v1425 = vpop.f32.mrf.mxu0
      %v1426 = vadd.f32 0.0, %v1425
      %1427 = vdwg.mxu0
      %v1429 = vperm.slane %v1269, 0
      %v1431 = vmul.f32 %v1423, %v1429
      %v1432 = vmul.f32 %v1426, %v1429
      %v1434 = vperm.slane %v1270, 0
      %v1436 = vadd.f32 %v1431, %v1434
      %v1437 = vadd.f32 %v1432, %v1434
      %v1438 = vadd.f32 %v1392, %v1436
      %v1439 = vadd.f32 %v1393, %v1437
      %v1440 = vmax.f32 %v1438, 0.0
      %v1441 = vmax.f32 %v1439, 0.0
      %vm1442 = vcmask 64512
      %1443 = vst.msk [vmem:[%s464] sm:$0xff] %vm1442, %v1440
      %1444 = vst.msk [vmem:[%s464 + $0x8] sm:$0xff] %vm1442, %v1441
      %v1445 = vld [vmem:[%s642] sm:$0xff]
      %v1446 = vld [vmem:[%s642 + $0x8] sm:$0xff]
      %v1447 = vld [vmem:[%s4] sm:$0x1]
      %v1448 = vperm.slane %v1447, 0
      %v1449 = vmul.f32 %v1445, %v1448
      %v1450 = vmul.f32 %v1446, %v1448
      %v1451 = vadd.f32 %v1449, 0.0
      %v1452 = vadd.f32 %v1450, 0.0
      %v1453 = vld [vmem:[%s642 + $0x1] sm:$0xff]
      %v1454 = vld [vmem:[%s642 + $0x9] sm:$0xff]
      %v1455 = vld [vmem:[%s4 + $0x1] sm:$0x1]
      %v1456 = vperm.slane %v1455, 0
      %v1457 = vmul.f32 %v1453, %v1456
      %v1458 = vmul.f32 %v1454, %v1456
      %v1459 = vadd.f32 %v1451, %v1457
      %v1460 = vadd.f32 %v1452, %v1458
      %v1461 = vld [vmem:[%s642 + $0x2] sm:$0xff]
      %v1462 = vld [vmem:[%s642 + $0xa] sm:$0xff]
      %v1463 = vld [vmem:[%s4 + $0x2] sm:$0x1]
      %v1464 = vperm.slane %v1463, 0
      %v1465 = vmul.f32 %v1461, %v1464
      %v1466 = vmul.f32 %v1462, %v1464
      %v1467 = vadd.f32 %v1459, %v1465
      %v1468 = vadd.f32 %v1460, %v1466
      %v1469 = vld [vmem:[%s719] sm:$0xff]
      %v1470 = vld [vmem:[%s719 + $0x8] sm:$0xff]
      %v1471 = vld [vmem:[%s4 + $0x3] sm:$0x1]
      %v1472 = vperm.slane %v1471, 0
      %v1473 = vmul.f32 %v1469, %v1472
      %v1474 = vmul.f32 %v1470, %v1472
      %v1475 = vadd.f32 %v1467, %v1473
      %v1476 = vadd.f32 %v1468, %v1474
      %v1477 = vld [vmem:[%s719 + $0x1] sm:$0xff]
      %v1478 = vld [vmem:[%s719 + $0x9] sm:$0xff]
      %v1479 = vld [vmem:[%s4 + $0x4] sm:$0x1]
      %v1480 = vperm.slane %v1479, 0
      %v1481 = vmul.f32 %v1477, %v1480
      %v1482 = vmul.f32 %v1478, %v1480
      %v1483 = vadd.f32 %v1475, %v1481
      %v1484 = vadd.f32 %v1476, %v1482
      %v1485 = vld [vmem:[%s719 + $0x2] sm:$0xff]
      %v1486 = vld [vmem:[%s719 + $0xa] sm:$0xff]
      %v1487 = vld [vmem:[%s4 + $0x5] sm:$0x1]
      %v1488 = vperm.slane %v1487, 0
      %v1489 = vmul.f32 %v1485, %v1488
      %v1490 = vmul.f32 %v1486, %v1488
      %v1491 = vadd.f32 %v1483, %v1489
      %v1492 = vadd.f32 %v1484, %v1490
      %v1493 = vld [vmem:[%s796] sm:$0xff]
      %v1494 = vld [vmem:[%s796 + $0x8] sm:$0xff]
      %v1495 = vld [vmem:[%s4 + $0x6] sm:$0x1]
      %v1496 = vperm.slane %v1495, 0
      %v1497 = vmul.f32 %v1493, %v1496
      %v1498 = vmul.f32 %v1494, %v1496
      %v1499 = vadd.f32 %v1491, %v1497
      %v1500 = vadd.f32 %v1492, %v1498
      %v1501 = vld [vmem:[%s796 + $0x1] sm:$0xff]
      %v1502 = vld [vmem:[%s796 + $0x9] sm:$0xff]
      %v1503 = vld [vmem:[%s4 + $0x7] sm:$0x1]
      %v1504 = vperm.slane %v1503, 0
      %v1505 = vmul.f32 %v1501, %v1504
      %v1506 = vmul.f32 %v1502, %v1504
      %v1507 = vadd.f32 %v1499, %v1505
      %v1508 = vadd.f32 %v1500, %v1506
      %v1509 = vld [vmem:[%s796 + $0x2] sm:$0xff]
      %v1510 = vld [vmem:[%s796 + $0xa] sm:$0xff]
      %v1511 = vld [vmem:[%s4 + $0x8] sm:$0x1]
      %v1512 = vperm.slane %v1511, 0
      %v1513 = vmul.f32 %v1509, %v1512
      %v1514 = vmul.f32 %v1510, %v1512
      %v1515 = vadd.f32 %v1507, %v1513
      %v1516 = vadd.f32 %v1508, %v1514
      %v1517 = vmul.f32 %v1515, %v1344
      %v1518 = vmul.f32 %v1516, %v1344
      %v1519 = vadd.f32 %v1517, %v1349
      %v1520 = vadd.f32 %v1518, %v1349
      %v1521 = vmax.f32 %v1519, 0.0
      %v1522 = vmax.f32 %v1520, 0.0
      %v1524 = vsel %vm565, %v1521, 0
      %v1527 = vsel %vm565, %v1522, 0
      %1529 = vmatpush.msra.mxu0 0.0
      %1530 = vmatpush.msra.mxu0 0.0
      %1531 = vmatpush.msra.mxu0 0.0
      %1532 = vmatpush.msra.mxu0 0.0
      %1533 = vmatpush.msra.mxu0 0.0
      %1534 = vmatpush.msra.mxu0 0.0
      %1535 = vmatpush.msra.mxu0 0.0
      %1536 = vmatpush.msra.mxu0 0.0
      %1537 = vmatpush.msra.mxu0 0.0
      %1538 = vmatpush.msra.mxu0 0.0
      %1539 = vmatpush.msra.mxu0 0.0
      %1540 = vmatpush.msra.mxu0 0.0
      %1541 = vmatpush.msra.mxu0 0.0
      %1542 = vmatpush.msra.mxu0 0.0
      %1543 = vmatpush.msra.mxu0 %v1265
      %1544 = vmatpush.msra.mxu0 %v1264
      %1545 = vmatmul.f32.gmra.mxu0 %v1524
      %v1546 = vpop.f32.mrf.mxu0
      %v1547 = vadd.f32 0.0, %v1546
      %1548 = vmatmul.f32.gmra.mxu0 %v1527
      %v1549 = vpop.f32.mrf.mxu0
      %v1550 = vadd.f32 0.0, %v1549
      %1551 = vdwg.mxu0
      %v1552 = vmul.f32 %v1547, %v1385
      %v1553 = vmul.f32 %v1550, %v1385
      %v1554 = vadd.f32 %v1552, %v1390
      %v1555 = vadd.f32 %v1553, %v1390
      %v1556 = vld [vmem:[%s652 + $0x1] sm:$0xff]
      %v1557 = vld [vmem:[%s652 + $0x9] sm:$0xff]
      %v1559 = vsel %vm488, %v1556, 0
      %v1562 = vsel %vm488, %v1557, 0
      %1564 = vmatpush.msra.mxu0 0.0
      %1565 = vmatpush.msra.mxu0 0.0
      %1566 = vmatpush.msra.mxu0 0.0
      %1567 = vmatpush.msra.mxu0 0.0
      %1568 = vmatpush.msra.mxu0 0.0
      %1569 = vmatpush.msra.mxu0 0.0
      %1570 = vmatpush.msra.mxu0 0.0
      %1571 = vmatpush.msra.mxu0 0.0
      %1572 = vmatpush.msra.mxu0 0.0
      %1573 = vmatpush.msra.mxu0 0.0
      %1574 = vmatpush.msra.mxu0 0.0
      %1575 = vmatpush.msra.mxu0 0.0
      %1576 = vmatpush.msra.mxu0 0.0
      %1577 = vmatpush.msra.mxu0 0.0
      %1578 = vmatpush.msra.mxu0 0.0
      %1579 = vmatpush.msra.mxu0 %v1403
      %1580 = vmatmul.f32.gmra.mxu0 %v1559
      %v1581 = vpop.f32.mrf.mxu0
      %v1582 = vadd.f32 0.0, %v1581
      %1583 = vmatmul.f32.gmra.mxu0 %v1562
      %v1584 = vpop.f32.mrf.mxu0
      %v1585 = vadd.f32 0.0, %v1584
      %1586 = vdwg.mxu0
      %v1587 = vmul.f32 %v1582, %v1429
      %v1588 = vmul.f32 %v1585, %v1429
      %v1589 = vadd.f32 %v1587, %v1434
      %v1590 = vadd.f32 %v1588, %v1434
      %v1591 = vadd.f32 %v1554, %v1589
      %v1592 = vadd.f32 %v1555, %v1590
      %v1593 = vmax.f32 %v1591, 0.0
      %v1594 = vmax.f32 %v1592, 0.0
      %s1595 = scalar_lea.vmem %s464, 16
      %1596 = vst.msk [vmem:[%s1595] sm:$0xff] %vm1442, %v1593
      %1597 = vst.msk [vmem:[%s1595 + $0x8] sm:$0xff] %vm1442, %v1594
      %v1598 = vld [vmem:[%s719] sm:$0xff]
      %v1599 = vld [vmem:[%s719 + $0x8] sm:$0xff]
      %v1600 = vld [vmem:[%s4] sm:$0x1]
      %v1601 = vperm.slane %v1600, 0
      %v1602 = vmul.f32 %v1598, %v1601
      %v1603 = vmul.f32 %v1599, %v1601
      %v1604 = vadd.f32 %v1602, 0.0
      %v1605 = vadd.f32 %v1603, 0.0
      %v1606 = vld [vmem:[%s719 + $0x1] sm:$0xff]
      %v1607 = vld [vmem:[%s719 + $0x9] sm:$0xff]
      %v1608 = vld [vmem:[%s4 + $0x1] sm:$0x1]
      %v1609 = vperm.slane %v1608, 0
      %v1610 = vmul.f32 %v1606, %v1609
      %v1611 = vmul.f32 %v1607, %v1609
      %v1612 = vadd.f32 %v1604, %v1610
      %v1613 = vadd.f32 %v1605, %v1611
      %v1614 = vld [vmem:[%s719 + $0x2] sm:$0xff]
      %v1615 = vld [vmem:[%s719 + $0xa] sm:$0xff]
      %v1616 = vld [vmem:[%s4 + $0x2] sm:$0x1]
      %v1617 = vperm.slane %v1616, 0
      %v1618 = vmul.f32 %v1614, %v1617
      %v1619 = vmul.f32 %v1615, %v1617
      %v1620 = vadd.f32 %v1612, %v1618
      %v1621 = vadd.f32 %v1613, %v1619
      %v1622 = vld [vmem:[%s796] sm:$0xff]
      %v1623 = vld [vmem:[%s796 + $0x8] sm:$0xff]
      %v1624 = vld [vmem:[%s4 + $0x3] sm:$0x1]
      %v1625 = vperm.slane %v1624, 0
      %v1626 = vmul.f32 %v1622, %v1625
      %v1627 = vmul.f32 %v1623, %v1625
      %v1628 = vadd.f32 %v1620, %v1626
      %v1629 = vadd.f32 %v1621, %v1627
      %v1630 = vld [vmem:[%s796 + $0x1] sm:$0xff]
      %v1631 = vld [vmem:[%s796 + $0x9] sm:$0xff]
      %v1632 = vld [vmem:[%s4 + $0x4] sm:$0x1]
      %v1633 = vperm.slane %v1632, 0
      %v1634 = vmul.f32 %v1630, %v1633
      %v1635 = vmul.f32 %v1631, %v1633
      %v1636 = vadd.f32 %v1628, %v1634
      %v1637 = vadd.f32 %v1629, %v1635
      %v1638 = vld [vmem:[%s796 + $0x2] sm:$0xff]
      %v1639 = vld [vmem:[%s796 + $0xa] sm:$0xff]
      %v1640 = vld [vmem:[%s4 + $0x5] sm:$0x1]
      %v1641 = vperm.slane %v1640, 0
      %v1642 = vmul.f32 %v1638, %v1641
      %v1643 = vmul.f32 %v1639, %v1641
      %v1644 = vadd.f32 %v1636, %v1642
      %v1645 = vadd.f32 %v1637, %v1643
      %v1646 = vld [vmem:[%s873] sm:$0xff]
      %v1647 = vld [vmem:[%s873 + $0x8] sm:$0xff]
      %v1648 = vld [vmem:[%s4 + $0x6] sm:$0x1]
      %v1649 = vperm.slane %v1648, 0
      %v1650 = vmul.f32 %v1646, %v1649
      %v1651 = vmul.f32 %v1647, %v1649
      %v1652 = vadd.f32 %v1644, %v1650
      %v1653 = vadd.f32 %v1645, %v1651
      %v1654 = vld [vmem:[%s873 + $0x1] sm:$0xff]
      %v1655 = vld [vmem:[%s873 + $0x9] sm:$0xff]
      %v1656 = vld [vmem:[%s4 + $0x7] sm:$0x1]
      %v1657 = vperm.slane %v1656, 0
      %v1658 = vmul.f32 %v1654, %v1657
      %v1659 = vmul.f32 %v1655, %v1657
      %v1660 = vadd.f32 %v1652, %v1658
      %v1661 = vadd.f32 %v1653, %v1659
      %v1662 = vld [vmem:[%s873 + $0x2] sm:$0xff]
      %v1663 = vld [vmem:[%s873 + $0xa] sm:$0xff]
      %v1664 = vld [vmem:[%s4 + $0x8] sm:$0x1]
      %v1665 = vperm.slane %v1664, 0
      %v1666 = vmul.f32 %v1662, %v1665
      %v1667 = vmul.f32 %v1663, %v1665
      %v1668 = vadd.f32 %v1660, %v1666
      %v1669 = vadd.f32 %v1661, %v1667
      %v1670 = vmul.f32 %v1668, %v1344
      %v1671 = vmul.f32 %v1669, %v1344
      %v1672 = vadd.f32 %v1670, %v1349
      %v1673 = vadd.f32 %v1671, %v1349
      %v1674 = vmax.f32 %v1672, 0.0
      %v1675 = vmax.f32 %v1673, 0.0
      %v1677 = vsel %vm565, %v1674, 0
      %v1680 = vsel %vm565, %v1675, 0
      %1682 = vmatpush.msra.mxu0 0.0
      %1683 = vmatpush.msra.mxu0 0.0
      %1684 = vmatpush.msra.mxu0 0.0
      %1685 = vmatpush.msra.mxu0 0.0
      %1686 = vmatpush.msra.mxu0 0.0
      %1687 = vmatpush.msra.mxu0 0.0
      %1688 = vmatpush.msra.mxu0 0.0
      %1689 = vmatpush.msra.mxu0 0.0
      %1690 = vmatpush.msra.mxu0 0.0
      %1691 = vmatpush.msra.mxu0 0.0
      %1692 = vmatpush.msra.mxu0 0.0
      %1693 = vmatpush.msra.mxu0 0.0
      %1694 = vmatpush.msra.mxu0 0.0
      %1695 = vmatpush.msra.mxu0 0.0
      %1696 = vmatpush.msra.mxu0 %v1265
      %1697 = vmatpush.msra.mxu0 %v1264
      %1698 = vmatmul.f32.gmra.mxu0 %v1677
      %v1699 = vpop.f32.mrf.mxu0
      %v1700 = vadd.f32 0.0, %v1699
      %1701 = vmatmul.f32.gmra.mxu0 %v1680
      %v1702 = vpop.f32.mrf.mxu0
      %v1703 = vadd.f32 0.0, %v1702
      %1704 = vdwg.mxu0
      %v1705 = vmul.f32 %v1700, %v1385
      %v1706 = vmul.f32 %v1703, %v1385
      %v1707 = vadd.f32 %v1705, %v1390
      %v1708 = vadd.f32 %v1706, %v1390
      %v1709 = vld [vmem:[%s729 + $0x1] sm:$0xff]
      %v1710 = vld [vmem:[%s729 + $0x9] sm:$0xff]
      %v1712 = vsel %vm488, %v1709, 0
      %v1715 = vsel %vm488, %v1710, 0
      %1717 = vmatpush.msra.mxu0 0.0
      %1718 = vmatpush.msra.mxu0 0.0
      %1719 = vmatpush.msra.mxu0 0.0
      %1720 = vmatpush.msra.mxu0 0.0
      %1721 = vmatpush.msra.mxu0 0.0
      %1722 = vmatpush.msra.mxu0 0.0
      %1723 = vmatpush.msra.mxu0 0.0
      %1724 = vmatpush.msra.mxu0 0.0
      %1725 = vmatpush.msra.mxu0 0.0
      %1726 = vmatpush.msra.mxu0 0.0
      %1727 = vmatpush.msra.mxu0 0.0
      %1728 = vmatpush.msra.mxu0 0.0
      %1729 = vmatpush.msra.mxu0 0.0
      %1730 = vmatpush.msra.mxu0 0.0
      %1731 = vmatpush.msra.mxu0 0.0
      %1732 = vmatpush.msra.mxu0 %v1403
      %1733 = vmatmul.f32.gmra.mxu0 %v1712
      %v1734 = vpop.f32.mrf.mxu0
      %v1735 = vadd.f32 0.0, %v1734
      %1736 = vmatmul.f32.gmra.mxu0 %v1715
      %v1737 = vpop.f32.mrf.mxu0
      %v1738 = vadd.f32 0.0, %v1737
      %1739 = vdwg.mxu0
      %v1740 = vmul.f32 %v1735, %v1429
      %v1741 = vmul.f32 %v1738, %v1429
      %v1742 = vadd.f32 %v1740, %v1434
      %v1743 = vadd.f32 %v1741, %v1434
      %v1744 = vadd.f32 %v1707, %v1742
      %v1745 = vadd.f32 %v1708, %v1743
      %v1746 = vmax.f32 %v1744, 0.0
      %v1747 = vmax.f32 %v1745, 0.0
      %s1748 = scalar_lea.vmem %s464, 32
      %1749 = vst.msk [vmem:[%s1748] sm:$0xff] %vm1442, %v1746
      %1750 = vst.msk [vmem:[%s1748 + $0x8] sm:$0xff] %vm1442, %v1747
      %v1751 = vld [vmem:[%s796] sm:$0xff]
      %v1752 = vld [vmem:[%s796 + $0x8] sm:$0xff]
      %v1753 = vld [vmem:[%s4] sm:$0x1]
      %v1754 = vperm.slane %v1753, 0
      %v1755 = vmul.f32 %v1751, %v1754
      %v1756 = vmul.f32 %v1752, %v1754
      %v1757 = vadd.f32 %v1755, 0.0
      %v1758 = vadd.f32 %v1756, 0.0
      %v1759 = vld [vmem:[%s796 + $0x1] sm:$0xff]
      %v1760 = vld [vmem:[%s796 + $0x9] sm:$0xff]
      %v1761 = vld [vmem:[%s4 + $0x1] sm:$0x1]
      %v1762 = vperm.slane %v1761, 0
      %v1763 = vmul.f32 %v1759, %v1762
      %v1764 = vmul.f32 %v1760, %v1762
      %v1765 = vadd.f32 %v1757, %v1763
      %v1766 = vadd.f32 %v1758, %v1764
      %v1767 = vld [vmem:[%s796 + $0x2] sm:$0xff]
      %v1768 = vld [vmem:[%s796 + $0xa] sm:$0xff]
      %v1769 = vld [vmem:[%s4 + $0x2] sm:$0x1]
      %v1770 = vperm.slane %v1769, 0
      %v1771 = vmul.f32 %v1767, %v1770
      %v1772 = vmul.f32 %v1768, %v1770
      %v1773 = vadd.f32 %v1765, %v1771
      %v1774 = vadd.f32 %v1766, %v1772
      %v1775 = vld [vmem:[%s873] sm:$0xff]
      %v1776 = vld [vmem:[%s873 + $0x8] sm:$0xff]
      %v1777 = vld [vmem:[%s4 + $0x3] sm:$0x1]
      %v1778 = vperm.slane %v1777, 0
      %v1779 = vmul.f32 %v1775, %v1778
      %v1780 = vmul.f32 %v1776, %v1778
      %v1781 = vadd.f32 %v1773, %v1779
      %v1782 = vadd.f32 %v1774, %v1780
      %v1783 = vld [vmem:[%s873 + $0x1] sm:$0xff]
      %v1784 = vld [vmem:[%s873 + $0x9] sm:$0xff]
      %v1785 = vld [vmem:[%s4 + $0x4] sm:$0x1]
      %v1786 = vperm.slane %v1785, 0
      %v1787 = vmul.f32 %v1783, %v1786
      %v1788 = vmul.f32 %v1784, %v1786
      %v1789 = vadd.f32 %v1781, %v1787
      %v1790 = vadd.f32 %v1782, %v1788
      %v1791 = vld [vmem:[%s873 + $0x2] sm:$0xff]
      %v1792 = vld [vmem:[%s873 + $0xa] sm:$0xff]
      %v1793 = vld [vmem:[%s4 + $0x5] sm:$0x1]
      %v1794 = vperm.slane %v1793, 0
      %v1795 = vmul.f32 %v1791, %v1794
      %v1796 = vmul.f32 %v1792, %v1794
      %v1797 = vadd.f32 %v1789, %v1795
      %v1798 = vadd.f32 %v1790, %v1796
      %v1799 = vld [vmem:[%s950] sm:$0xff]
      %v1800 = vld [vmem:[%s950 + $0x8] sm:$0xff]
      %v1801 = vld [vmem:[%s4 + $0x6] sm:$0x1]
      %v1802 = vperm.slane %v1801, 0
      %v1803 = vmul.f32 %v1799, %v1802
      %v1804 = vmul.f32 %v1800, %v1802
      %v1805 = vadd.f32 %v1797, %v1803
      %v1806 = vadd.f32 %v1798, %v1804
      %v1807 = vld [vmem:[%s950 + $0x1] sm:$0xff]
      %v1808 = vld [vmem:[%s950 + $0x9] sm:$0xff]
      %v1809 = vld [vmem:[%s4 + $0x7] sm:$0x1]
      %v1810 = vperm.slane %v1809, 0
      %v1811 = vmul.f32 %v1807, %v1810
      %v1812 = vmul.f32 %v1808, %v1810
      %v1813 = vadd.f32 %v1805, %v1811
      %v1814 = vadd.f32 %v1806, %v1812
      %v1815 = vld [vmem:[%s950 + $0x2] sm:$0xff]
      %v1816 = vld [vmem:[%s950 + $0xa] sm:$0xff]
      %v1817 = vld [vmem:[%s4 + $0x8] sm:$0x1]
      %v1818 = vperm.slane %v1817, 0
      %v1819 = vmul.f32 %v1815, %v1818
      %v1820 = vmul.f32 %v1816, %v1818
      %v1821 = vadd.f32 %v1813, %v1819
      %v1822 = vadd.f32 %v1814, %v1820
      %v1823 = vmul.f32 %v1821, %v1344
      %v1824 = vmul.f32 %v1822, %v1344
      %v1825 = vadd.f32 %v1823, %v1349
      %v1826 = vadd.f32 %v1824, %v1349
      %v1827 = vmax.f32 %v1825, 0.0
      %v1828 = vmax.f32 %v1826, 0.0
      %v1830 = vsel %vm565, %v1827, 0
      %v1833 = vsel %vm565, %v1828, 0
      %1835 = vmatpush.msra.mxu0 0.0
      %1836 = vmatpush.msra.mxu0 0.0
      %1837 = vmatpush.msra.mxu0 0.0
      %1838 = vmatpush.msra.mxu0 0.0
      %1839 = vmatpush.msra.mxu0 0.0
      %1840 = vmatpush.msra.mxu0 0.0
      %1841 = vmatpush.msra.mxu0 0.0
      %1842 = vmatpush.msra.mxu0 0.0
      %1843 = vmatpush.msra.mxu0 0.0
      %1844 = vmatpush.msra.mxu0 0.0
      %1845 = vmatpush.msra.mxu0 0.0
      %1846 = vmatpush.msra.mxu0 0.0
      %1847 = vmatpush.msra.mxu0 0.0
      %1848 = vmatpush.msra.mxu0 0.0
      %1849 = vmatpush.msra.mxu0 %v1265
      %1850 = vmatpush.msra.mxu0 %v1264
      %1851 = vmatmul.f32.gmra.mxu0 %v1830
      %v1852 = vpop.f32.mrf.mxu0
      %v1853 = vadd.f32 0.0, %v1852
      %1854 = vmatmul.f32.gmra.mxu0 %v1833
      %v1855 = vpop.f32.mrf.mxu0
      %v1856 = vadd.f32 0.0, %v1855
      %1857 = vdwg.mxu0
      %v1858 = vmul.f32 %v1853, %v1385
      %v1859 = vmul.f32 %v1856, %v1385
      %v1860 = vadd.f32 %v1858, %v1390
      %v1861 = vadd.f32 %v1859, %v1390
      %v1862 = vld [vmem:[%s806 + $0x1] sm:$0xff]
      %v1863 = vld [vmem:[%s806 + $0x9] sm:$0xff]
      %v1865 = vsel %vm488, %v1862, 0
      %v1868 = vsel %vm488, %v1863, 0
      %1870 = vmatpush.msra.mxu0 0.0
      %1871 = vmatpush.msra.mxu0 0.0
      %1872 = vmatpush.msra.mxu0 0.0
      %1873 = vmatpush.msra.mxu0 0.0
      %1874 = vmatpush.msra.mxu0 0.0
      %1875 = vmatpush.msra.mxu0 0.0
      %1876 = vmatpush.msra.mxu0 0.0
      %1877 = vmatpush.msra.mxu0 0.0
      %1878 = vmatpush.msra.mxu0 0.0
      %1879 = vmatpush.msra.mxu0 0.0
      %1880 = vmatpush.msra.mxu0 0.0
      %1881 = vmatpush.msra.mxu0 0.0
      %1882 = vmatpush.msra.mxu0 0.0
      %1883 = vmatpush.msra.mxu0 0.0
      %1884 = vmatpush.msra.mxu0 0.0
      %1885 = vmatpush.msra.mxu0 %v1403
      %1886 = vmatmul.f32.gmra.mxu0 %v1865
      %v1887 = vpop.f32.mrf.mxu0
      %v1888 = vadd.f32 0.0, %v1887
      %1889 = vmatmul.f32.gmra.mxu0 %v1868
      %v1890 = vpop.f32.mrf.mxu0
      %v1891 = vadd.f32 0.0, %v1890
      %1892 = vdwg.mxu0
      %v1893 = vmul.f32 %v1888, %v1429
      %v1894 = vmul.f32 %v1891, %v1429
      %v1895 = vadd.f32 %v1893, %v1434
      %v1896 = vadd.f32 %v1894, %v1434
      %v1897 = vadd.f32 %v1860, %v1895
      %v1898 = vadd.f32 %v1861, %v1896
      %v1899 = vmax.f32 %v1897, 0.0
      %v1900 = vmax.f32 %v1898, 0.0
      %s1901 = scalar_lea.vmem %s464, 48
      %1902 = vst.msk [vmem:[%s1901] sm:$0xff] %vm1442, %v1899
      %1903 = vst.msk [vmem:[%s1901 + $0x8] sm:$0xff] %vm1442, %v1900
      %v1904 = vld [vmem:[%s873] sm:$0xff]
      %v1905 = vld [vmem:[%s873 + $0x8] sm:$0xff]
      %v1906 = vld [vmem:[%s4] sm:$0x1]
      %v1907 = vperm.slane %v1906, 0
      %v1908 = vmul.f32 %v1904, %v1907
      %v1909 = vmul.f32 %v1905, %v1907
      %v1910 = vadd.f32 %v1908, 0.0
      %v1911 = vadd.f32 %v1909, 0.0
      %v1912 = vld [vmem:[%s873 + $0x1] sm:$0xff]
      %v1913 = vld [vmem:[%s873 + $0x9] sm:$0xff]
      %v1914 = vld [vmem:[%s4 + $0x1] sm:$0x1]
      %v1915 = vperm.slane %v1914, 0
      %v1916 = vmul.f32 %v1912, %v1915
      %v1917 = vmul.f32 %v1913, %v1915
      %v1918 = vadd.f32 %v1910, %v1916
      %v1919 = vadd.f32 %v1911, %v1917
      %v1920 = vld [vmem:[%s873 + $0x2] sm:$0xff]
      %v1921 = vld [vmem:[%s873 + $0xa] sm:$0xff]
      %v1922 = vld [vmem:[%s4 + $0x2] sm:$0x1]
      %v1923 = vperm.slane %v1922, 0
      %v1924 = vmul.f32 %v1920, %v1923
      %v1925 = vmul.f32 %v1921, %v1923
      %v1926 = vadd.f32 %v1918, %v1924
      %v1927 = vadd.f32 %v1919, %v1925
      %v1928 = vld [vmem:[%s950] sm:$0xff]
      %v1929 = vld [vmem:[%s950 + $0x8] sm:$0xff]
      %v1930 = vld [vmem:[%s4 + $0x3] sm:$0x1]
      %v1931 = vperm.slane %v1930, 0
      %v1932 = vmul.f32 %v1928, %v1931
      %v1933 = vmul.f32 %v1929, %v1931
      %v1934 = vadd.f32 %v1926, %v1932
      %v1935 = vadd.f32 %v1927, %v1933
      %v1936 = vld [vmem:[%s950 + $0x1] sm:$0xff]
      %v1937 = vld [vmem:[%s950 + $0x9] sm:$0xff]
      %v1938 = vld [vmem:[%s4 + $0x4] sm:$0x1]
      %v1939 = vperm.slane %v1938, 0
      %v1940 = vmul.f32 %v1936, %v1939
      %v1941 = vmul.f32 %v1937, %v1939
      %v1942 = vadd.f32 %v1934, %v1940
      %v1943 = vadd.f32 %v1935, %v1941
      %v1944 = vld [vmem:[%s950 + $0x2] sm:$0xff]
      %v1945 = vld [vmem:[%s950 + $0xa] sm:$0xff]
      %v1946 = vld [vmem:[%s4 + $0x5] sm:$0x1]
      %v1947 = vperm.slane %v1946, 0
      %v1948 = vmul.f32 %v1944, %v1947
      %v1949 = vmul.f32 %v1945, %v1947
      %v1950 = vadd.f32 %v1942, %v1948
      %v1951 = vadd.f32 %v1943, %v1949
      %v1952 = vld [vmem:[%s1027] sm:$0xff]
      %v1953 = vld [vmem:[%s1027 + $0x8] sm:$0xff]
      %v1954 = vld [vmem:[%s4 + $0x6] sm:$0x1]
      %v1955 = vperm.slane %v1954, 0
      %v1956 = vmul.f32 %v1952, %v1955
      %v1957 = vmul.f32 %v1953, %v1955
      %v1958 = vadd.f32 %v1950, %v1956
      %v1959 = vadd.f32 %v1951, %v1957
      %v1960 = vld [vmem:[%s1027 + $0x1] sm:$0xff]
      %v1961 = vld [vmem:[%s1027 + $0x9] sm:$0xff]
      %v1962 = vld [vmem:[%s4 + $0x7] sm:$0x1]
      %v1963 = vperm.slane %v1962, 0
      %v1964 = vmul.f32 %v1960, %v1963
      %v1965 = vmul.f32 %v1961, %v1963
      %v1966 = vadd.f32 %v1958, %v1964
      %v1967 = vadd.f32 %v1959, %v1965
      %v1968 = vld [vmem:[%s1027 + $0x2] sm:$0xff]
      %v1969 = vld [vmem:[%s1027 + $0xa] sm:$0xff]
      %v1970 = vld [vmem:[%s4 + $0x8] sm:$0x1]
      %v1971 = vperm.slane %v1970, 0
      %v1972 = vmul.f32 %v1968, %v1971
      %v1973 = vmul.f32 %v1969, %v1971
      %v1974 = vadd.f32 %v1966, %v1972
      %v1975 = vadd.f32 %v1967, %v1973
      %v1976 = vmul.f32 %v1974, %v1344
      %v1977 = vmul.f32 %v1975, %v1344
      %v1978 = vadd.f32 %v1976, %v1349
      %v1979 = vadd.f32 %v1977, %v1349
      %v1980 = vmax.f32 %v1978, 0.0
      %v1981 = vmax.f32 %v1979, 0.0
      %v1983 = vsel %vm565, %v1980, 0
      %v1986 = vsel %vm565, %v1981, 0
      %1988 = vmatpush.msra.mxu0 0.0
      %1989 = vmatpush.msra.mxu0 0.0
      %1990 = vmatpush.msra.mxu0 0.0
      %1991 = vmatpush.msra.mxu0 0.0
      %1992 = vmatpush.msra.mxu0 0.0
      %1993 = vmatpush.msra.mxu0 0.0
      %1994 = vmatpush.msra.mxu0 0.0
      %1995 = vmatpush.msra.mxu0 0.0
      %1996 = vmatpush.msra.mxu0 0.0
      %1997 = vmatpush.msra.mxu0 0.0
      %1998 = vmatpush.msra.mxu0 0.0
      %1999 = vmatpush.msra.mxu0 0.0
      %2000 = vmatpush.msra.mxu0 0.0
      %2001 = vmatpush.msra.mxu0 0.0
      %2002 = vmatpush.msra.mxu0 %v1265
      %2003 = vmatpush.msra.mxu0 %v1264
      %2004 = vmatmul.f32.gmra.mxu0 %v1983
      %v2005 = vpop.f32.mrf.mxu0
      %v2006 = vadd.f32 0.0, %v2005
      %2007 = vmatmul.f32.gmra.mxu0 %v1986
      %v2008 = vpop.f32.mrf.mxu0
      %v2009 = vadd.f32 0.0, %v2008
      %2010 = vdwg.mxu0
      %v2011 = vmul.f32 %v2006, %v1385
      %v2012 = vmul.f32 %v2009, %v1385
      %v2013 = vadd.f32 %v2011, %v1390
      %v2014 = vadd.f32 %v2012, %v1390
      %v2015 = vld [vmem:[%s883 + $0x1] sm:$0xff]
      %v2016 = vld [vmem:[%s883 + $0x9] sm:$0xff]
      %v2018 = vsel %vm488, %v2015, 0
      %v2021 = vsel %vm488, %v2016, 0
      %2023 = vmatpush.msra.mxu0 0.0
      %2024 = vmatpush.msra.mxu0 0.0
      %2025 = vmatpush.msra.mxu0 0.0
      %2026 = vmatpush.msra.mxu0 0.0
      %2027 = vmatpush.msra.mxu0 0.0
      %2028 = vmatpush.msra.mxu0 0.0
      %2029 = vmatpush.msra.mxu0 0.0
      %2030 = vmatpush.msra.mxu0 0.0
      %2031 = vmatpush.msra.mxu0 0.0
      %2032 = vmatpush.msra.mxu0 0.0
      %2033 = vmatpush.msra.mxu0 0.0
      %2034 = vmatpush.msra.mxu0 0.0
      %2035 = vmatpush.msra.mxu0 0.0
      %2036 = vmatpush.msra.mxu0 0.0
      %2037 = vmatpush.msra.mxu0 0.0
      %2038 = vmatpush.msra.mxu0 %v1403
      %2039 = vmatmul.f32.gmra.mxu0 %v2018
      %v2040 = vpop.f32.mrf.mxu0
      %v2041 = vadd.f32 0.0, %v2040
      %2042 = vmatmul.f32.gmra.mxu0 %v2021
      %v2043 = vpop.f32.mrf.mxu0
      %v2044 = vadd.f32 0.0, %v2043
      %2045 = vdwg.mxu0
      %v2046 = vmul.f32 %v2041, %v1429
      %v2047 = vmul.f32 %v2044, %v1429
      %v2048 = vadd.f32 %v2046, %v1434
      %v2049 = vadd.f32 %v2047, %v1434
      %v2050 = vadd.f32 %v2013, %v2048
      %v2051 = vadd.f32 %v2014, %v2049
      %v2052 = vmax.f32 %v2050, 0.0
      %v2053 = vmax.f32 %v2051, 0.0
      %s2054 = scalar_lea.vmem %s464, 64
      %2055 = vst.msk [vmem:[%s2054] sm:$0xff] %vm1442, %v2052
      %2056 = vst.msk [vmem:[%s2054 + $0x8] sm:$0xff] %vm1442, %v2053
      %v2057 = vld [vmem:[%s950] sm:$0xff]
      %v2058 = vld [vmem:[%s950 + $0x8] sm:$0xff]
      %v2059 = vld [vmem:[%s4] sm:$0x1]
      %v2060 = vperm.slane %v2059, 0
      %v2061 = vmul.f32 %v2057, %v2060
      %v2062 = vmul.f32 %v2058, %v2060
      %v2063 = vadd.f32 %v2061, 0.0
      %v2064 = vadd.f32 %v2062, 0.0
      %v2065 = vld [vmem:[%s950 + $0x1] sm:$0xff]
      %v2066 = vld [vmem:[%s950 + $0x9] sm:$0xff]
      %v2067 = vld [vmem:[%s4 + $0x1] sm:$0x1]
      %v2068 = vperm.slane %v2067, 0
      %v2069 = vmul.f32 %v2065, %v2068
      %v2070 = vmul.f32 %v2066, %v2068
      %v2071 = vadd.f32 %v2063, %v2069
      %v2072 = vadd.f32 %v2064, %v2070
      %v2073 = vld [vmem:[%s950 + $0x2] sm:$0xff]
      %v2074 = vld [vmem:[%s950 + $0xa] sm:$0xff]
      %v2075 = vld [vmem:[%s4 + $0x2] sm:$0x1]
      %v2076 = vperm.slane %v2075, 0
      %v2077 = vmul.f32 %v2073, %v2076
      %v2078 = vmul.f32 %v2074, %v2076
      %v2079 = vadd.f32 %v2071, %v2077
      %v2080 = vadd.f32 %v2072, %v2078
      %v2081 = vld [vmem:[%s1027] sm:$0xff]
      %v2082 = vld [vmem:[%s1027 + $0x8] sm:$0xff]
      %v2083 = vld [vmem:[%s4 + $0x3] sm:$0x1]
      %v2084 = vperm.slane %v2083, 0
      %v2085 = vmul.f32 %v2081, %v2084
      %v2086 = vmul.f32 %v2082, %v2084
      %v2087 = vadd.f32 %v2079, %v2085
      %v2088 = vadd.f32 %v2080, %v2086
      %v2089 = vld [vmem:[%s1027 + $0x1] sm:$0xff]
      %v2090 = vld [vmem:[%s1027 + $0x9] sm:$0xff]
      %v2091 = vld [vmem:[%s4 + $0x4] sm:$0x1]
      %v2092 = vperm.slane %v2091, 0
      %v2093 = vmul.f32 %v2089, %v2092
      %v2094 = vmul.f32 %v2090, %v2092
      %v2095 = vadd.f32 %v2087, %v2093
      %v2096 = vadd.f32 %v2088, %v2094
      %v2097 = vld [vmem:[%s1027 + $0x2] sm:$0xff]
      %v2098 = vld [vmem:[%s1027 + $0xa] sm:$0xff]
      %v2099 = vld [vmem:[%s4 + $0x5] sm:$0x1]
      %v2100 = vperm.slane %v2099, 0
      %v2101 = vmul.f32 %v2097, %v2100
      %v2102 = vmul.f32 %v2098, %v2100
      %v2103 = vadd.f32 %v2095, %v2101
      %v2104 = vadd.f32 %v2096, %v2102
      %v2105 = vld [vmem:[%s1104] sm:$0xff]
      %v2106 = vld [vmem:[%s1104 + $0x8] sm:$0xff]
      %v2107 = vld [vmem:[%s4 + $0x6] sm:$0x1]
      %v2108 = vperm.slane %v2107, 0
      %v2109 = vmul.f32 %v2105, %v2108
      %v2110 = vmul.f32 %v2106, %v2108
      %v2111 = vadd.f32 %v2103, %v2109
      %v2112 = vadd.f32 %v2104, %v2110
      %v2113 = vld [vmem:[%s1104 + $0x1] sm:$0xff]
      %v2114 = vld [vmem:[%s1104 + $0x9] sm:$0xff]
      %v2115 = vld [vmem:[%s4 + $0x7] sm:$0x1]
      %v2116 = vperm.slane %v2115, 0
      %v2117 = vmul.f32 %v2113, %v2116
      %v2118 = vmul.f32 %v2114, %v2116
      %v2119 = vadd.f32 %v2111, %v2117
      %v2120 = vadd.f32 %v2112, %v2118
      %v2121 = vld [vmem:[%s1104 + $0x2] sm:$0xff]
      %v2122 = vld [vmem:[%s1104 + $0xa] sm:$0xff]
      %v2123 = vld [vmem:[%s4 + $0x8] sm:$0x1]
      %v2124 = vperm.slane %v2123, 0
      %v2125 = vmul.f32 %v2121, %v2124
      %v2126 = vmul.f32 %v2122, %v2124
      %v2127 = vadd.f32 %v2119, %v2125
      %v2128 = vadd.f32 %v2120, %v2126
      %v2129 = vmul.f32 %v2127, %v1344
      %v2130 = vmul.f32 %v2128, %v1344
      %v2131 = vadd.f32 %v2129, %v1349
      %v2132 = vadd.f32 %v2130, %v1349
      %v2133 = vmax.f32 %v2131, 0.0
      %v2134 = vmax.f32 %v2132, 0.0
      %v2136 = vsel %vm565, %v2133, 0
      %v2139 = vsel %vm565, %v2134, 0
      %2141 = vmatpush.msra.mxu0 0.0
      %2142 = vmatpush.msra.mxu0 0.0
      %2143 = vmatpush.msra.mxu0 0.0
      %2144 = vmatpush.msra.mxu0 0.0
      %2145 = vmatpush.msra.mxu0 0.0
      %2146 = vmatpush.msra.mxu0 0.0
      %2147 = vmatpush.msra.mxu0 0.0
      %2148 = vmatpush.msra.mxu0 0.0
      %2149 = vmatpush.msra.mxu0 0.0
      %2150 = vmatpush.msra.mxu0 0.0
      %2151 = vmatpush.msra.mxu0 0.0
      %2152 = vmatpush.msra.mxu0 0.0
      %2153 = vmatpush.msra.mxu0 0.0
      %2154 = vmatpush.msra.mxu0 0.0
      %2155 = vmatpush.msra.mxu0 %v1265
      %2156 = vmatpush.msra.mxu0 %v1264
      %2157 = vmatmul.f32.gmra.mxu0 %v2136
      %v2158 = vpop.f32.mrf.mxu0
      %v2159 = vadd.f32 0.0, %v2158
      %2160 = vmatmul.f32.gmra.mxu0 %v2139
      %v2161 = vpop.f32.mrf.mxu0
      %v2162 = vadd.f32 0.0, %v2161
      %2163 = vdwg.mxu0
      %v2164 = vmul.f32 %v2159, %v1385
      %v2165 = vmul.f32 %v2162, %v1385
      %v2166 = vadd.f32 %v2164, %v1390
      %v2167 = vadd.f32 %v2165, %v1390
      %v2168 = vld [vmem:[%s960 + $0x1] sm:$0xff]
      %v2169 = vld [vmem:[%s960 + $0x9] sm:$0xff]
      %v2171 = vsel %vm488, %v2168, 0
      %v2174 = vsel %vm488, %v2169, 0
      %2176 = vmatpush.msra.mxu0 0.0
      %2177 = vmatpush.msra.mxu0 0.0
      %2178 = vmatpush.msra.mxu0 0.0
      %2179 = vmatpush.msra.mxu0 0.0
      %2180 = vmatpush.msra.mxu0 0.0
      %2181 = vmatpush.msra.mxu0 0.0
      %2182 = vmatpush.msra.mxu0 0.0
      %2183 = vmatpush.msra.mxu0 0.0
      %2184 = vmatpush.msra.mxu0 0.0
      %2185 = vmatpush.msra.mxu0 0.0
      %2186 = vmatpush.msra.mxu0 0.0
      %2187 = vmatpush.msra.mxu0 0.0
      %2188 = vmatpush.msra.mxu0 0.0
      %2189 = vmatpush.msra.mxu0 0.0
      %2190 = vmatpush.msra.mxu0 0.0
      %2191 = vmatpush.msra.mxu0 %v1403
      %2192 = vmatmul.f32.gmra.mxu0 %v2171
      %v2193 = vpop.f32.mrf.mxu0
      %v2194 = vadd.f32 0.0, %v2193
      %2195 = vmatmul.f32.gmra.mxu0 %v2174
      %v2196 = vpop.f32.mrf.mxu0
      %v2197 = vadd.f32 0.0, %v2196
      %2198 = vdwg.mxu0
      %v2199 = vmul.f32 %v2194, %v1429
      %v2200 = vmul.f32 %v2197, %v1429
      %v2201 = vadd.f32 %v2199, %v1434
      %v2202 = vadd.f32 %v2200, %v1434
      %v2203 = vadd.f32 %v2166, %v2201
      %v2204 = vadd.f32 %v2167, %v2202
      %v2205 = vmax.f32 %v2203, 0.0
      %v2206 = vmax.f32 %v2204, 0.0
      %s2207 = scalar_lea.vmem %s464, 80
      %2208 = vst.msk [vmem:[%s2207] sm:$0xff] %vm1442, %v2205
      %2209 = vst.msk [vmem:[%s2207 + $0x8] sm:$0xff] %vm1442, %v2206
      %v2210 = vld [vmem:[%s1027] sm:$0xff]
      %v2211 = vld [vmem:[%s1027 + $0x8] sm:$0xff]
      %v2212 = vld [vmem:[%s4] sm:$0x1]
      %v2213 = vperm.slane %v2212, 0
      %v2214 = vmul.f32 %v2210, %v2213
      %v2215 = vmul.f32 %v2211, %v2213
      %v2216 = vadd.f32 %v2214, 0.0
      %v2217 = vadd.f32 %v2215, 0.0
      %v2218 = vld [vmem:[%s1027 + $0x1] sm:$0xff]
      %v2219 = vld [vmem:[%s1027 + $0x9] sm:$0xff]
      %v2220 = vld [vmem:[%s4 + $0x1] sm:$0x1]
      %v2221 = vperm.slane %v2220, 0
      %v2222 = vmul.f32 %v2218, %v2221
      %v2223 = vmul.f32 %v2219, %v2221
      %v2224 = vadd.f32 %v2216, %v2222
      %v2225 = vadd.f32 %v2217, %v2223
      %v2226 = vld [vmem:[%s1027 + $0x2] sm:$0xff]
      %v2227 = vld [vmem:[%s1027 + $0xa] sm:$0xff]
      %v2228 = vld [vmem:[%s4 + $0x2] sm:$0x1]
      %v2229 = vperm.slane %v2228, 0
      %v2230 = vmul.f32 %v2226, %v2229
      %v2231 = vmul.f32 %v2227, %v2229
      %v2232 = vadd.f32 %v2224, %v2230
      %v2233 = vadd.f32 %v2225, %v2231
      %v2234 = vld [vmem:[%s1104] sm:$0xff]
      %v2235 = vld [vmem:[%s1104 + $0x8] sm:$0xff]
      %v2236 = vld [vmem:[%s4 + $0x3] sm:$0x1]
      %v2237 = vperm.slane %v2236, 0
      %v2238 = vmul.f32 %v2234, %v2237
      %v2239 = vmul.f32 %v2235, %v2237
      %v2240 = vadd.f32 %v2232, %v2238
      %v2241 = vadd.f32 %v2233, %v2239
      %v2242 = vld [vmem:[%s1104 + $0x1] sm:$0xff]
      %v2243 = vld [vmem:[%s1104 + $0x9] sm:$0xff]
      %v2244 = vld [vmem:[%s4 + $0x4] sm:$0x1]
      %v2245 = vperm.slane %v2244, 0
      %v2246 = vmul.f32 %v2242, %v2245
      %v2247 = vmul.f32 %v2243, %v2245
      %v2248 = vadd.f32 %v2240, %v2246
      %v2249 = vadd.f32 %v2241, %v2247
      %v2250 = vld [vmem:[%s1104 + $0x2] sm:$0xff]
      %v2251 = vld [vmem:[%s1104 + $0xa] sm:$0xff]
      %v2252 = vld [vmem:[%s4 + $0x5] sm:$0x1]
      %v2253 = vperm.slane %v2252, 0
      %v2254 = vmul.f32 %v2250, %v2253
      %v2255 = vmul.f32 %v2251, %v2253
      %v2256 = vadd.f32 %v2248, %v2254
      %v2257 = vadd.f32 %v2249, %v2255
      %v2258 = vld [vmem:[%s1181] sm:$0xff]
      %v2259 = vld [vmem:[%s1181 + $0x8] sm:$0xff]
      %v2260 = vld [vmem:[%s4 + $0x6] sm:$0x1]
      %v2261 = vperm.slane %v2260, 0
      %v2262 = vmul.f32 %v2258, %v2261
      %v2263 = vmul.f32 %v2259, %v2261
      %v2264 = vadd.f32 %v2256, %v2262
      %v2265 = vadd.f32 %v2257, %v2263
      %v2266 = vld [vmem:[%s1181 + $0x1] sm:$0xff]
      %v2267 = vld [vmem:[%s1181 + $0x9] sm:$0xff]
      %v2268 = vld [vmem:[%s4 + $0x7] sm:$0x1]
      %v2269 = vperm.slane %v2268, 0
      %v2270 = vmul.f32 %v2266, %v2269
      %v2271 = vmul.f32 %v2267, %v2269
      %v2272 = vadd.f32 %v2264, %v2270
      %v2273 = vadd.f32 %v2265, %v2271
      %v2274 = vld [vmem:[%s1181 + $0x2] sm:$0xff]
      %v2275 = vld [vmem:[%s1181 + $0xa] sm:$0xff]
      %v2276 = vld [vmem:[%s4 + $0x8] sm:$0x1]
      %v2277 = vperm.slane %v2276, 0
      %v2278 = vmul.f32 %v2274, %v2277
      %v2279 = vmul.f32 %v2275, %v2277
      %v2280 = vadd.f32 %v2272, %v2278
      %v2281 = vadd.f32 %v2273, %v2279
      %v2282 = vmul.f32 %v2280, %v1344
      %v2283 = vmul.f32 %v2281, %v1344
      %v2284 = vadd.f32 %v2282, %v1349
      %v2285 = vadd.f32 %v2283, %v1349
      %v2286 = vmax.f32 %v2284, 0.0
      %v2287 = vmax.f32 %v2285, 0.0
      %v2289 = vsel %vm565, %v2286, 0
      %v2292 = vsel %vm565, %v2287, 0
      %2294 = vmatpush.msra.mxu0 0.0
      %2295 = vmatpush.msra.mxu0 0.0
      %2296 = vmatpush.msra.mxu0 0.0
      %2297 = vmatpush.msra.mxu0 0.0
      %2298 = vmatpush.msra.mxu0 0.0
      %2299 = vmatpush.msra.mxu0 0.0
      %2300 = vmatpush.msra.mxu0 0.0
      %2301 = vmatpush.msra.mxu0 0.0
      %2302 = vmatpush.msra.mxu0 0.0
      %2303 = vmatpush.msra.mxu0 0.0
      %2304 = vmatpush.msra.mxu0 0.0
      %2305 = vmatpush.msra.mxu0 0.0
      %2306 = vmatpush.msra.mxu0 0.0
      %2307 = vmatpush.msra.mxu0 0.0
      %2308 = vmatpush.msra.mxu0 %v1265
      %2309 = vmatpush.msra.mxu0 %v1264
      %2310 = vmatmul.f32.gmra.mxu0 %v2289
      %v2311 = vpop.f32.mrf.mxu0
      %v2312 = vadd.f32 0.0, %v2311
      %2313 = vmatmul.f32.gmra.mxu0 %v2292
      %v2314 = vpop.f32.mrf.mxu0
      %v2315 = vadd.f32 0.0, %v2314
      %2316 = vdwg.mxu0
      %v2317 = vmul.f32 %v2312, %v1385
      %v2318 = vmul.f32 %v2315, %v1385
      %v2319 = vadd.f32 %v2317, %v1390
      %v2320 = vadd.f32 %v2318, %v1390
      %v2321 = vld [vmem:[%s1037 + $0x1] sm:$0xff]
      %v2322 = vld [vmem:[%s1037 + $0x9] sm:$0xff]
      %v2324 = vsel %vm488, %v2321, 0
      %v2327 = vsel %vm488, %v2322, 0
      %2329 = vmatpush.msra.mxu0 0.0
      %2330 = vmatpush.msra.mxu0 0.0
      %2331 = vmatpush.msra.mxu0 0.0
      %2332 = vmatpush.msra.mxu0 0.0
      %2333 = vmatpush.msra.mxu0 0.0
      %2334 = vmatpush.msra.mxu0 0.0
      %2335 = vmatpush.msra.mxu0 0.0
      %2336 = vmatpush.msra.mxu0 0.0
      %2337 = vmatpush.msra.mxu0 0.0
      %2338 = vmatpush.msra.mxu0 0.0
      %2339 = vmatpush.msra.mxu0 0.0
      %2340 = vmatpush.msra.mxu0 0.0
      %2341 = vmatpush.msra.mxu0 0.0
      %2342 = vmatpush.msra.mxu0 0.0
      %2343 = vmatpush.msra.mxu0 0.0
      %2344 = vmatpush.msra.mxu0 %v1403
      %2345 = vmatmul.f32.gmra.mxu0 %v2324
      %v2346 = vpop.f32.mrf.mxu0
      %v2347 = vadd.f32 0.0, %v2346
      %2348 = vmatmul.f32.gmra.mxu0 %v2327
      %v2349 = vpop.f32.mrf.mxu0
      %v2350 = vadd.f32 0.0, %v2349
      %2351 = vdwg.mxu0
      %v2352 = vmul.f32 %v2347, %v1429
      %v2353 = vmul.f32 %v2350, %v1429
      %v2354 = vadd.f32 %v2352, %v1434
      %v2355 = vadd.f32 %v2353, %v1434
      %v2356 = vadd.f32 %v2319, %v2354
      %v2357 = vadd.f32 %v2320, %v2355
      %v2358 = vmax.f32 %v2356, 0.0
      %v2359 = vmax.f32 %v2357, 0.0
      %s2360 = scalar_lea.vmem %s464, 96
      %2361 = vst.msk [vmem:[%s2360] sm:$0xff] %vm1442, %v2358
      %2362 = vst.msk [vmem:[%s2360 + $0x8] sm:$0xff] %vm1442, %v2359
      %v2363 = vld [vmem:[%s1104] sm:$0xff]
      %v2364 = vld [vmem:[%s1104 + $0x8] sm:$0xff]
      %v2365 = vld [vmem:[%s4] sm:$0x1]
      %v2366 = vperm.slane %v2365, 0
      %v2367 = vmul.f32 %v2363, %v2366
      %v2368 = vmul.f32 %v2364, %v2366
      %v2369 = vadd.f32 %v2367, 0.0
      %v2370 = vadd.f32 %v2368, 0.0
      %v2371 = vld [vmem:[%s1104 + $0x1] sm:$0xff]
      %v2372 = vld [vmem:[%s1104 + $0x9] sm:$0xff]
      %v2373 = vld [vmem:[%s4 + $0x1] sm:$0x1]
      %v2374 = vperm.slane %v2373, 0
      %v2375 = vmul.f32 %v2371, %v2374
      %v2376 = vmul.f32 %v2372, %v2374
      %v2377 = vadd.f32 %v2369, %v2375
      %v2378 = vadd.f32 %v2370, %v2376
      %v2379 = vld [vmem:[%s1104 + $0x2] sm:$0xff]
      %v2380 = vld [vmem:[%s1104 + $0xa] sm:$0xff]
      %v2381 = vld [vmem:[%s4 + $0x2] sm:$0x1]
      %v2382 = vperm.slane %v2381, 0
      %v2383 = vmul.f32 %v2379, %v2382
      %v2384 = vmul.f32 %v2380, %v2382
      %v2385 = vadd.f32 %v2377, %v2383
      %v2386 = vadd.f32 %v2378, %v2384
      %v2387 = vld [vmem:[%s1181] sm:$0xff]
      %v2388 = vld [vmem:[%s1181 + $0x8] sm:$0xff]
      %v2389 = vld [vmem:[%s4 + $0x3] sm:$0x1]
      %v2390 = vperm.slane %v2389, 0
      %v2391 = vmul.f32 %v2387, %v2390
      %v2392 = vmul.f32 %v2388, %v2390
      %v2393 = vadd.f32 %v2385, %v2391
      %v2394 = vadd.f32 %v2386, %v2392
      %v2395 = vld [vmem:[%s1181 + $0x1] sm:$0xff]
      %v2396 = vld [vmem:[%s1181 + $0x9] sm:$0xff]
      %v2397 = vld [vmem:[%s4 + $0x4] sm:$0x1]
      %v2398 = vperm.slane %v2397, 0
      %v2399 = vmul.f32 %v2395, %v2398
      %v2400 = vmul.f32 %v2396, %v2398
      %v2401 = vadd.f32 %v2393, %v2399
      %v2402 = vadd.f32 %v2394, %v2400
      %v2403 = vld [vmem:[%s1181 + $0x2] sm:$0xff]
      %v2404 = vld [vmem:[%s1181 + $0xa] sm:$0xff]
      %v2405 = vld [vmem:[%s4 + $0x5] sm:$0x1]
      %v2406 = vperm.slane %v2405, 0
      %v2407 = vmul.f32 %v2403, %v2406
      %v2408 = vmul.f32 %v2404, %v2406
      %v2409 = vadd.f32 %v2401, %v2407
      %v2410 = vadd.f32 %v2402, %v2408
      %v2411 = vld [vmem:[%s1258] sm:$0xff]
      %v2412 = vld [vmem:[%s1258 + $0x8] sm:$0xff]
      %v2413 = vld [vmem:[%s4 + $0x6] sm:$0x1]
      %v2414 = vperm.slane %v2413, 0
      %v2415 = vmul.f32 %v2411, %v2414
      %v2416 = vmul.f32 %v2412, %v2414
      %v2417 = vadd.f32 %v2409, %v2415
      %v2418 = vadd.f32 %v2410, %v2416
      %v2419 = vld [vmem:[%s1258 + $0x1] sm:$0xff]
      %v2420 = vld [vmem:[%s1258 + $0x9] sm:$0xff]
      %v2421 = vld [vmem:[%s4 + $0x7] sm:$0x1]
      %v2422 = vperm.slane %v2421, 0
      %v2423 = vmul.f32 %v2419, %v2422
      %v2424 = vmul.f32 %v2420, %v2422
      %v2425 = vadd.f32 %v2417, %v2423
      %v2426 = vadd.f32 %v2418, %v2424
      %v2427 = vld [vmem:[%s1258 + $0x2] sm:$0xff]
      %v2428 = vld [vmem:[%s1258 + $0xa] sm:$0xff]
      %v2429 = vld [vmem:[%s4 + $0x8] sm:$0x1]
      %v2430 = vperm.slane %v2429, 0
      %v2431 = vmul.f32 %v2427, %v2430
      %v2432 = vmul.f32 %v2428, %v2430
      %v2433 = vadd.f32 %v2425, %v2431
      %v2434 = vadd.f32 %v2426, %v2432
      %v2435 = vmul.f32 %v2433, %v1344
      %v2436 = vmul.f32 %v2434, %v1344
      %v2437 = vadd.f32 %v2435, %v1349
      %v2438 = vadd.f32 %v2436, %v1349
      %v2439 = vmax.f32 %v2437, 0.0
      %v2440 = vmax.f32 %v2438, 0.0
      %v2442 = vsel %vm565, %v2439, 0
      %v2445 = vsel %vm565, %v2440, 0
      %2447 = vmatpush.msra.mxu0 0.0
      %2448 = vmatpush.msra.mxu0 0.0
      %2449 = vmatpush.msra.mxu0 0.0
      %2450 = vmatpush.msra.mxu0 0.0
      %2451 = vmatpush.msra.mxu0 0.0
      %2452 = vmatpush.msra.mxu0 0.0
      %2453 = vmatpush.msra.mxu0 0.0
      %2454 = vmatpush.msra.mxu0 0.0
      %2455 = vmatpush.msra.mxu0 0.0
      %2456 = vmatpush.msra.mxu0 0.0
      %2457 = vmatpush.msra.mxu0 0.0
      %2458 = vmatpush.msra.mxu0 0.0
      %2459 = vmatpush.msra.mxu0 0.0
      %2460 = vmatpush.msra.mxu0 0.0
      %2461 = vmatpush.msra.mxu0 %v1265
      %2462 = vmatpush.msra.mxu0 %v1264
      %2463 = vmatmul.f32.gmra.mxu0 %v2442
      %v2464 = vpop.f32.mrf.mxu0
      %v2465 = vadd.f32 0.0, %v2464
      %2466 = vmatmul.f32.gmra.mxu0 %v2445
      %v2467 = vpop.f32.mrf.mxu0
      %v2468 = vadd.f32 0.0, %v2467
      %2469 = vdwg.mxu0
      %v2470 = vmul.f32 %v2465, %v1385
      %v2471 = vmul.f32 %v2468, %v1385
      %v2472 = vadd.f32 %v2470, %v1390
      %v2473 = vadd.f32 %v2471, %v1390
      %v2474 = vld [vmem:[%s1114 + $0x1] sm:$0xff]
      %v2475 = vld [vmem:[%s1114 + $0x9] sm:$0xff]
      %v2477 = vsel %vm488, %v2474, 0
      %v2480 = vsel %vm488, %v2475, 0
      %2482 = vmatpush.msra.mxu0 0.0
      %2483 = vmatpush.msra.mxu0 0.0
      %2484 = vmatpush.msra.mxu0 0.0
      %2485 = vmatpush.msra.mxu0 0.0
      %2486 = vmatpush.msra.mxu0 0.0
      %2487 = vmatpush.msra.mxu0 0.0
      %2488 = vmatpush.msra.mxu0 0.0
      %2489 = vmatpush.msra.mxu0 0.0
      %2490 = vmatpush.msra.mxu0 0.0
      %2491 = vmatpush.msra.mxu0 0.0
      %2492 = vmatpush.msra.mxu0 0.0
      %2493 = vmatpush.msra.mxu0 0.0
      %2494 = vmatpush.msra.mxu0 0.0
      %2495 = vmatpush.msra.mxu0 0.0
      %2496 = vmatpush.msra.mxu0 0.0
      %2497 = vmatpush.msra.mxu0 %v1403
      %2498 = vmatmul.f32.gmra.mxu0 %v2477
      %v2499 = vpop.f32.mrf.mxu0
      %v2500 = vadd.f32 0.0, %v2499
      %2501 = vmatmul.f32.gmra.mxu0 %v2480
      %v2502 = vpop.f32.mrf.mxu0
      %v2503 = vadd.f32 0.0, %v2502
      %2504 = vdwg.mxu0
      %v2505 = vmul.f32 %v2500, %v1429
      %v2506 = vmul.f32 %v2503, %v1429
      %v2507 = vadd.f32 %v2505, %v1434
      %v2508 = vadd.f32 %v2506, %v1434
      %v2509 = vadd.f32 %v2472, %v2507
      %v2510 = vadd.f32 %v2473, %v2508
      %v2511 = vmax.f32 %v2509, 0.0
      %v2512 = vmax.f32 %v2510, 0.0
      %s2513 = scalar_lea.vmem %s464, 112
      %2514 = vst.msk [vmem:[%s2513] sm:$0xff] %vm1442, %v2511
      %2515 = vst.msk [vmem:[%s2513 + $0x8] sm:$0xff] %vm1442, %v2512
      %s2516 = smul.u32 8, %s29
      %p2517 = scmp.lt.s32.totalorder %s28, 1
      %s2518 = scalar_select %p2517, %s28, 1
      %p2519 = scmp.lt.s32.totalorder %s2516, 15
      %s2520 = scalar_select %p2519, %s2516, 15
      %s2521 = smul.addr %s2520, 2
      %s2522 = smul.addr %s2518, 32
      %s2523 = sadd.s32 %s2521, %s2522
      %s2524 = smul.addr %s2523, 8
      %s2525 = scalar_lea.vmem %s13, %s2524
      // Predicated region
      $region73: #{tpu_custom_call.1} parent=71 // pred_check
        %p2526 = pneg %p334
      $region74: #{tpu_custom_call.1} parent=71 // pred_check_branch
        %2528 = sbr.rel (%p2526) target = $region76
      $region75: #{tpu_custom_call.1} parent=71 // pred_region
        %s2529 = smul.u32 8, %s29
      $region76: #{tpu_custom_call.1} parent=71 // pred_fallthru
        _
    $region72: #{tpu_custom_call.1} parent=5 // pred_fallthru
      _
    %p2530 = scmp.le.s32.totalorder 2, %s19
    // Predicated region
    $region77: #{tpu_custom_call.1} parent=5 // pred_check
      %p2531 = pneg %p2530
    $region78: #{tpu_custom_call.1} parent=5 // pred_check_branch
      %2533 = sbr.rel (%p2531) target = $region80
    $region79: #{tpu_custom_call.1} parent=5 // pred_region
      %s2534 = ssub.s32 %s19, 2
      // Predicated region
      $region81: #{tpu_custom_call.1} parent=79 // pred_check
        %p2535 = pneg %p340
      $region82: #{tpu_custom_call.1} parent=79 // pred_check_branch
        %2537 = sbr.rel (%p2535) target = $region84
      $region83: #{tpu_custom_call.1} parent=79 // pred_region
        %s2538 = smul.u32 8, %s31
        %p2539 = scmp.lt.s32.totalorder %s30, 1
        %s2540 = scalar_select %p2539, %s30, 1
        %p2541 = scmp.lt.s32.totalorder %s2538, 15
        %s2542 = scalar_select %p2541, %s2538, 15
        %s2543 = smul.addr %s2542, 2
        %s2544 = smul.addr %s2540, 32
        %s2545 = sadd.s32 %s2543, %s2544
        %s2546 = smul.addr %s2545, 8
        %s2547 = scalar_lea.vmem %s13, %s2546
      $region84: #{tpu_custom_call.1} parent=79 // pred_fallthru
        _
    $region80: #{tpu_custom_call.1} parent=5 // pred_fallthru
      _
  $region6: #{tpu_custom_call.1} parent=0 // loop_footer
    %s23 = sadd.s32 1, %s19
  $region7: #{tpu_custom_call.1} parent=0 // loop_footer_branch
    %18 = sbr.rel target = $region3
  $region8: #{tpu_custom_call.1} parent=0 // loop_exit
    _

</llo_original>
